<compile_context>
chip_gen: v5e
topology: v5e:2x2
jax: 0.10.0
libtpu: 0.0.40
codegen_flags: <defaults>
</compile_context>

<pallas_src>
import jax
import jax.numpy as jnp
from jax.experimental import pallas as pl
from jax.experimental.pallas import tpu as pltpu

X_DIM = 784
X_PAD = 896            # 7 * 128, lane-aligned input width
H1, H2, H3, H4 = 256, 128, 32, 8
H3_PAD = 128           # pad 32 -> 128 output lanes (zero cols/rows, exact)
H4_PAD = 128           # pad 8  -> 128 output lanes so the store is unmasked


def encoder_kernel(x_ref,
                   w1_ref, b1_ref,
                   w2_ref, b2_ref,
                   w3_ref, b3_ref,
                   w4_ref, b4_ref,
                   o_ref):
    # Layer 1: (TM, 896)bf16 @ (896, 256)bf16 -> f32 acc, +bias, ReLU (f32)
    h = jnp.dot(x_ref[...], w1_ref[...], preferred_element_type=jnp.float32)
    h = jnp.maximum(h + b1_ref[...], 0.0).astype(jnp.bfloat16)
    # Layer 2: (TM, 256) @ (256, 128)
    h = jnp.dot(h, w2_ref[...], preferred_element_type=jnp.float32)
    h = jnp.maximum(h + b2_ref[...], 0.0).astype(jnp.bfloat16)
    # Layer 3: (TM, 128) @ (128, 128)   (cols 32..127 are zero-padded)
    h = jnp.dot(h, w3_ref[...], preferred_element_type=jnp.float32)
    h = jnp.maximum(h + b3_ref[...], 0.0).astype(jnp.bfloat16)
    # Layer 4: (TM, 128) @ (128, 128)   (rows/cols beyond 32/8 are zero)
    h = jnp.dot(h, w4_ref[...], preferred_element_type=jnp.float32)
    o_ref[...] = (h + b4_ref[...]).astype(o_ref.dtype)


def _pad2(a, rows, cols):
    return jnp.pad(a, ((0, rows - a.shape[0]), (0, cols - a.shape[1])))


def encoder_forward(x, params, *, tm=256):
    """x: (B, 784) float32; params: dict of (in,out) f32 weights, (1,out) f32 biases.

    Returns (B, 8) float32. Batch and feature dims are padded internally."""
    B = x.shape[0]
    B_pad = pl.cdiv(B, tm) * tm

    # Lane-align + bf16-cast the streamed input (halves HBM traffic of the
    # only array that scales with batch).
    x_p = jnp.pad(x, ((0, B_pad - B), (0, X_PAD - X_DIM))).astype(jnp.bfloat16)

    # Zero-pad weights once in the wrapper; MXU operands in bf16, biases f32.
    w1 = _pad2(params["w1"], X_PAD, H1).astype(jnp.bfloat16)
    b1 = params["b1"].astype(jnp.float32)
    w2 = params["w2"].astype(jnp.bfloat16)
    b2 = params["b2"].astype(jnp.float32)
    w3 = _pad2(params["w3"], H2, H3_PAD).astype(jnp.bfloat16)
    b3 = _pad2(params["b3"], 1, H3_PAD).astype(jnp.float32)
    w4 = _pad2(params["w4"], H3_PAD, H4_PAD).astype(jnp.bfloat16)
    b4 = _pad2(params["b4"], 1, H4_PAD).astype(jnp.float32)

    def full(shape):
        # whole array, same block at every grid point (resident, not re-fetched)
        return pl.BlockSpec(shape, lambda i: (0, 0))

    out = pl.pallas_call(
        encoder_kernel,
        out_shape=jax.ShapeDtypeStruct((B_pad, H4_PAD), jnp.float32),
        grid_spec=pltpu.PrefetchScalarGridSpec(
            num_scalar_prefetch=0,
            grid=(B_pad // tm,),
            in_specs=[
                pl.BlockSpec((tm, X_PAD), lambda i: (i, 0)),
                full(w1.shape), full(b1.shape),
                full(w2.shape), full(b2.shape),
                full(w3.shape), full(b3.shape),
                full(w4.shape), full(b4.shape),
            ],
            out_specs=pl.BlockSpec((tm, H4_PAD), lambda i: (i, 0)),
        ),
        compiler_params=pltpu.CompilerParams(
            dimension_semantics=("parallel",),
        ),
    )(x_p, w1, b1, w2, b2, w3, b3, w4, b4)

    return out[:B, :H4]


def init_params(key):
    """torch.nn.Linear default init: U(-1/sqrt(fan_in), +1/sqrt(fan_in)),
    with weights stored as (in_features, out_features)."""
    dims = [(X_DIM, H1), (H1, H2), (H2, H3), (H3, H4)]
    params = {}
    keys = jax.random.split(key, 2 * len(dims))
    for idx, (fan_in, fan_out) in enumerate(dims):
        bound = 1.0 / jnp.sqrt(jnp.float32(fan_in))
        wk, bk = keys[2 * idx], keys[2 * idx + 1]
        params[f"w{idx + 1}"] = jax.random.uniform(
            wk, (fan_in, fan_out), jnp.float32, -bound, bound)
        params[f"b{idx + 1}"] = jax.random.uniform(
            bk, (1, fan_out), jnp.float32, -bound, bound)
    return params


def encoder_reference(x, params):
    """Plain-JAX f32 reference of the same forward pass."""
    h = jnp.maximum(x @ params["w1"] + params["b1"], 0.0)
    h = jnp.maximum(h @ params["w2"] + params["b2"], 0.0)
    h = jnp.maximum(h @ params["w3"] + params["b3"], 0.0)
    return h @ params["w4"] + params["b4"]


if __name__ == "__main__":
    key = jax.random.PRNGKey(0)
    pkey, xkey, xkey2 = jax.random.split(key, 3)
    params = init_params(pkey)

    # Small test batch; wrapper pads batch up to the tile internally.
    B = 8
    x = jax.random.normal(xkey, (B, X_DIM), jnp.float32)

    out = encoder_forward(x, params, tm=256)
    out = jax.block_until_ready(out)
    ref = encoder_reference(x, params)
    assert out.shape == (B, H4), out.shape
    # bf16 MXU operands with f32 accumulation -> loosened tolerance vs f32 ref.
    assert jnp.allclose(out, ref, atol=3e-2, rtol=3e-2), "mismatch vs reference"

    # Second check: ragged batch + multi-step grid (exercises cdiv padding).
    B2 = 300
    x2 = jax.random.normal(xkey2, (B2, X_DIM), jnp.float32)
    out2 = jax.block_until_ready(encoder_forward(x2, params, tm=128))
    ref2 = encoder_reference(x2, params)
    assert out2.shape == (B2, H4), out2.shape
    assert jnp.allclose(out2, ref2, atol=3e-2, rtol=3e-2), "mismatch (ragged batch)"

    print("KERNEL_OK")
</pallas_src>

<mosaic_0001>
module attributes {stable_mosaic.version = 11 : i64} {
  func.func @encoder_kernel(%arg0: i32, %arg1: memref<256x896xbf16, #tpu.memory_space<vmem>>, %arg2: memref<896x256xbf16, #tpu.memory_space<vmem>>, %arg3: memref<1x256xf32, #tpu.memory_space<vmem>>, %arg4: memref<256x128xbf16, #tpu.memory_space<vmem>>, %arg5: memref<1x128xf32, #tpu.memory_space<vmem>>, %arg6: memref<128x128xbf16, #tpu.memory_space<vmem>>, %arg7: memref<1x128xf32, #tpu.memory_space<vmem>>, %arg8: memref<128x128xbf16, #tpu.memory_space<vmem>>, %arg9: memref<1x128xf32, #tpu.memory_space<vmem>>, %arg10: memref<256x128xf32, #tpu.memory_space<vmem>>) attributes {dimension_semantics = [#tpu.dimension_semantics<parallel>], iteration_bounds = array<i64: 1>, scalar_prefetch = 0 : i64, scratch_operands = 0 : i64, tpu.core_type = #tpu.core_type<tc>, window_params = [{transform_indices = @transform_0, window_bounds = array<i64: 256, 896>}, {pipeline_mode = #tpu.pipeline_mode<synchronous>, transform_indices = @transform_1, window_bounds = array<i64: 896, 256>}, {pipeline_mode = #tpu.pipeline_mode<synchronous>, transform_indices = @transform_2, window_bounds = array<i64: 1, 256>}, {pipeline_mode = #tpu.pipeline_mode<synchronous>, transform_indices = @transform_3, window_bounds = array<i64: 256, 128>}, {pipeline_mode = #tpu.pipeline_mode<synchronous>, transform_indices = @transform_4, window_bounds = array<i64: 1, 128>}, {pipeline_mode = #tpu.pipeline_mode<synchronous>, transform_indices = @transform_5, window_bounds = array<i64: 128, 128>}, {pipeline_mode = #tpu.pipeline_mode<synchronous>, transform_indices = @transform_6, window_bounds = array<i64: 1, 128>}, {pipeline_mode = #tpu.pipeline_mode<synchronous>, transform_indices = @transform_7, window_bounds = array<i64: 128, 128>}, {pipeline_mode = #tpu.pipeline_mode<synchronous>, transform_indices = @transform_8, window_bounds = array<i64: 1, 128>}, {transform_indices = @transform_9, window_bounds = array<i64: 256, 128>}]} {
    %c0 = arith.constant 0 : index
    %c0_0 = arith.constant 0 : index
    %0 = vector.load %arg1[%c0, %c0_0] : memref<256x896xbf16, #tpu.memory_space<vmem>>, vector<256x896xbf16>
    %c0_1 = arith.constant 0 : index
    %c0_2 = arith.constant 0 : index
    %1 = vector.load %arg2[%c0_1, %c0_2] : memref<896x256xbf16, #tpu.memory_space<vmem>>, vector<896x256xbf16>
    %cst = arith.constant dense<0.000000e+00> : vector<256x256xf32>
    %2 = tpu.matmul %0, %1, %cst {dimension_numbers = #tpu.dot_dimension_numbers<[1], [0], [0], [1], [0, 0, 1, 1], [], []>} : vector<256x896xbf16>, vector<896x256xbf16>, vector<256x256xf32> -> vector<256x256xf32>
    %c0_3 = arith.constant 0 : index
    %c0_4 = arith.constant 0 : index
    %3 = vector.load %arg3[%c0_3, %c0_4] : memref<1x256xf32, #tpu.memory_space<vmem>>, vector<1x256xf32>
    %4 = vector.broadcast %3 : vector<1x256xf32> to vector<256x256xf32>
    %5 = arith.addf %2, %4 : vector<256x256xf32>
    %cst_5 = arith.constant 0.000000e+00 : f32
    %6 = vector.broadcast %cst_5 : f32 to vector<256x256xf32>
    %7 = arith.maximumf %5, %6 : vector<256x256xf32>
    %8 = arith.truncf %7 : vector<256x256xf32> to vector<256x256xbf16>
    %c0_6 = arith.constant 0 : index
    %c0_7 = arith.constant 0 : index
    %9 = vector.load %arg4[%c0_6, %c0_7] : memref<256x128xbf16, #tpu.memory_space<vmem>>, vector<256x128xbf16>
    %cst_8 = arith.constant dense<0.000000e+00> : vector<256x128xf32>
    %10 = tpu.matmul %8, %9, %cst_8 {dimension_numbers = #tpu.dot_dimension_numbers<[1], [0], [0], [1], [0, 0, 1, 1], [], []>} : vector<256x256xbf16>, vector<256x128xbf16>, vector<256x128xf32> -> vector<256x128xf32>
    %c0_9 = arith.constant 0 : index
    %c0_10 = arith.constant 0 : index
    %11 = vector.load %arg5[%c0_9, %c0_10] : memref<1x128xf32, #tpu.memory_space<vmem>>, vector<1x128xf32>
    %12 = vector.broadcast %11 : vector<1x128xf32> to vector<256x128xf32>
    %13 = arith.addf %10, %12 : vector<256x128xf32>
    %cst_11 = arith.constant 0.000000e+00 : f32
    %14 = vector.broadcast %cst_11 : f32 to vector<256x128xf32>
    %15 = arith.maximumf %13, %14 : vector<256x128xf32>
    %16 = arith.truncf %15 : vector<256x128xf32> to vector<256x128xbf16>
    %c0_12 = arith.constant 0 : index
    %c0_13 = arith.constant 0 : index
    %17 = vector.load %arg6[%c0_12, %c0_13] : memref<128x128xbf16, #tpu.memory_space<vmem>>, vector<128x128xbf16>
    %cst_14 = arith.constant dense<0.000000e+00> : vector<256x128xf32>
    %18 = tpu.matmul %16, %17, %cst_14 {dimension_numbers = #tpu.dot_dimension_numbers<[1], [0], [0], [1], [0, 0, 1, 1], [], []>} : vector<256x128xbf16>, vector<128x128xbf16>, vector<256x128xf32> -> vector<256x128xf32>
    %c0_15 = arith.constant 0 : index
    %c0_16 = arith.constant 0 : index
    %19 = vector.load %arg7[%c0_15, %c0_16] : memref<1x128xf32, #tpu.memory_space<vmem>>, vector<1x128xf32>
    %20 = vector.broadcast %19 : vector<1x128xf32> to vector<256x128xf32>
    %21 = arith.addf %18, %20 : vector<256x128xf32>
    %cst_17 = arith.constant 0.000000e+00 : f32
    %22 = vector.broadcast %cst_17 : f32 to vector<256x128xf32>
    %23 = arith.maximumf %21, %22 : vector<256x128xf32>
    %24 = arith.truncf %23 : vector<256x128xf32> to vector<256x128xbf16>
    %c0_18 = arith.constant 0 : index
    %c0_19 = arith.constant 0 : index
    %25 = vector.load %arg8[%c0_18, %c0_19] : memref<128x128xbf16, #tpu.memory_space<vmem>>, vector<128x128xbf16>
    %cst_20 = arith.constant dense<0.000000e+00> : vector<256x128xf32>
    %26 = tpu.matmul %24, %25, %cst_20 {dimension_numbers = #tpu.dot_dimension_numbers<[1], [0], [0], [1], [0, 0, 1, 1], [], []>} : vector<256x128xbf16>, vector<128x128xbf16>, vector<256x128xf32> -> vector<256x128xf32>
    %c0_21 = arith.constant 0 : index
    %c0_22 = arith.constant 0 : index
    %27 = vector.load %arg9[%c0_21, %c0_22] : memref<1x128xf32, #tpu.memory_space<vmem>>, vector<1x128xf32>
    %28 = vector.broadcast %27 : vector<1x128xf32> to vector<256x128xf32>
    %29 = arith.addf %26, %28 : vector<256x128xf32>
    %c0_23 = arith.constant 0 : index
    %c0_24 = arith.constant 0 : index
    %30 = vector.load %arg10[%c0_23, %c0_24] : memref<256x128xf32, #tpu.memory_space<vmem>>, vector<256x128xf32>
    tpu.vector_store %arg10[%c0_23, %c0_24], %29 {strides = array<i32>} : memref<256x128xf32, #tpu.memory_space<vmem>>, vector<256x128xf32>,
    return
  }
  func.func @transform_0(%arg0: i32) -> (i32, i32) {
    %c0_i32 = arith.constant 0 : i32
    %c0_i32_0 = arith.constant 0 : i32
    return %arg0, %c0_i32 : i32, i32
  }
  func.func @transform_1(%arg0: i32) -> (i32, i32) {
    %c0_i32 = arith.constant 0 : i32
    %c0_i32_0 = arith.constant 0 : i32
    %c0_i32_1 = arith.constant 0 : i32
    return %c0_i32, %c0_i32_0 : i32, i32
  }
  func.func @transform_2(%arg0: i32) -> (i32, i32) {
    %c0_i32 = arith.constant 0 : i32
    %c0_i32_0 = arith.constant 0 : i32
    %c0_i32_1 = arith.constant 0 : i32
    return %c0_i32, %c0_i32_0 : i32, i32
  }
  func.func @transform_3(%arg0: i32) -> (i32, i32) {
    %c0_i32 = arith.constant 0 : i32
    %c0_i32_0 = arith.constant 0 : i32
    %c0_i32_1 = arith.constant 0 : i32
    return %c0_i32, %c0_i32_0 : i32, i32
  }
  func.func @transform_4(%arg0: i32) -> (i32, i32) {
    %c0_i32 = arith.constant 0 : i32
    %c0_i32_0 = arith.constant 0 : i32
    %c0_i32_1 = arith.constant 0 : i32
    return %c0_i32, %c0_i32_0 : i32, i32
  }
  func.func @transform_5(%arg0: i32) -> (i32, i32) {
    %c0_i32 = arith.constant 0 : i32
    %c0_i32_0 = arith.constant 0 : i32
    %c0_i32_1 = arith.constant 0 : i32
    return %c0_i32, %c0_i32_0 : i32, i32
  }
  func.func @transform_6(%arg0: i32) -> (i32, i32) {
    %c0_i32 = arith.constant 0 : i32
    %c0_i32_0 = arith.constant 0 : i32
    %c0_i32_1 = arith.constant 0 : i32
    return %c0_i32, %c0_i32_0 : i32, i32
  }
  func.func @transform_7(%arg0: i32) -> (i32, i32) {
    %c0_i32 = arith.constant 0 : i32
    %c0_i32_0 = arith.constant 0 : i32
    %c0_i32_1 = arith.constant 0 : i32
    return %c0_i32, %c0_i32_0 : i32, i32
  }
  func.func @transform_8(%arg0: i32) -> (i32, i32) {
    %c0_i32 = arith.constant 0 : i32
    %c0_i32_0 = arith.constant 0 : i32
    %c0_i32_1 = arith.constant 0 : i32
    return %c0_i32, %c0_i32_0 : i32, i32
  }
  func.func @transform_9(%arg0: i32) -> (i32, i32) {
    %c0_i32 = arith.constant 0 : i32
    %c0_i32_0 = arith.constant 0 : i32
    return %arg0, %c0_i32 : i32, i32
  }
}

</mosaic_0001>

<llo_original>
// kernel: tpu_custom_call.1
$region0: #{tpu_custom_call.1}
  #allocation0 [shape = 'u32[]', space=smem, size = 0x4, offset = 0x4, fixed_abs, tag = 'smem constant byte address 0x4 - core index']
  #allocation1 [shape = 'u32[72,128]{1,0:T(1,128)}', space=vmem, size = 0x9000, scoped, tag = 'internal scratch']
  %s0 = inlined_call_operand.hbm [shape: bf16[256,896], index: 0, kind: input, shape index: {}]
  %s1 = inlined_call_operand.hbm [shape: bf16[896,256], index: 1, kind: input, shape index: {}]
  %s2 = inlined_call_operand.hbm [shape: f32[1,256], index: 2, kind: input, shape index: {}]
  %s3 = inlined_call_operand.hbm [shape: bf16[256,128], index: 3, kind: input, shape index: {}]
  %s4 = inlined_call_operand.vmem [shape: f32[1,128], index: 4, kind: input, shape index: {}]
  %s5 = inlined_call_operand.hbm [shape: bf16[128,128], index: 5, kind: input, shape index: {}]
  %s6 = inlined_call_operand.vmem [shape: f32[1,128], index: 6, kind: input, shape index: {}]
  %s7 = inlined_call_operand.hbm [shape: bf16[128,128], index: 7, kind: input, shape index: {}]
  %s8 = inlined_call_operand.vmem [shape: f32[1,128], index: 8, kind: input, shape index: {}]
  %s9 = inlined_call_operand.hbm [shape: f32[256,128], index: 9, kind: output, shape index: {}]
  %s10 = sld [smem:[#allocation0]]
  $region70: #{tpu_custom_call.1} parent=0
    _
  %s12 = ssub.s32 1, %s10
  %s13 = scalar_select 0, %s12, %s10
  $region1: #{tpu_custom_call.1} parent=0
    #allocation2 [shape = 'u8[458752]{0}', space=vmem, size = 0x70000, scoped, tag = 'input window, operand 0, single buffered']
    #allocation3 [shape = 's32[1]{0}', space=sflag, size = 0x4, scoped, tag = 'scoped memory for tpu_custom_call.1']
    #allocation4 [shape = 's32[1]{0}', space=sflag, size = 0x4, scoped, tag = 'scoped memory for tpu_custom_call.1']
    #allocation5 [shape = 'u8[458752]{0}', space=vmem, size = 0x70000, scoped, tag = 'input window, operand 1, single buffered']
    #allocation6 [shape = 's32[1]{0}', space=sflag, size = 0x4, scoped, tag = 'scoped memory for tpu_custom_call.1']
    #allocation7 [shape = 'u8[1024]{0}', space=vmem, size = 0x400, scoped, tag = 'input window, operand 2, single buffered']
    #allocation8 [shape = 'u8[65536]{0}', space=vmem, size = 0x10000, scoped, tag = 'input window, operand 3, single buffered']
    #allocation9 [shape = 's32[1]{0}', space=sflag, size = 0x4, scoped, tag = 'scoped memory for tpu_custom_call.1']
    #allocation10 [shape = 'u8[32768]{0}', space=vmem, size = 0x8000, scoped, tag = 'input window, operand 5, single buffered']
    #allocation11 [shape = 'u8[32768]{0}', space=vmem, size = 0x8000, scoped, tag = 'input window, operand 7, single buffered']
    #allocation12 [shape = 's32[1]{0}', space=sflag, size = 0x4, scoped, tag = 'scoped memory for tpu_custom_call.1']
    #allocation13 [shape = 'u8[131072]{0}', space=vmem, size = 0x20000, scoped, tag = 'output window, operand 0, single buffered']
    %14 = vsyncpa [#allocation3], 0
    %15 = vsyncpa [#allocation6], 0
    %16 = vsyncpa [#allocation9], 0
    %17 = vsyncpa [#allocation12], 0
    %18 = vsyncpa [#allocation4], 0
    // Predicated region
    $region2: #{tpu_custom_call.1} parent=1 // pred_check
      _
    $region3: #{tpu_custom_call.1} parent=1 // pred_check_branch
      %20 = sbr.rel (0) target = $region5
    $region4: #{tpu_custom_call.1} parent=1 // pred_region
      %22 = vsyncadd [#allocation3], 0
      %s23 = sshll.u32 %s0, 4
      %s24 = int_to_ptr.hbm [resolvable:$true] %s23
      %s25 = sshll.u32 [#allocation2], 4
      %s26 = int_to_ptr.vmem [resolvable:$true] %s25
      %31 = dma.hbm_to_vmem [thread:$0]  %s24, 14336, %s26, [#allocation3], 448, 448, 28
    $region5: #{tpu_custom_call.1} parent=1 // pred_fallthru
      _
    // Predicated region
    $region6: #{tpu_custom_call.1} parent=1 // pred_check
      _
    $region7: #{tpu_custom_call.1} parent=1 // pred_check_branch
      %33 = sbr.rel (0) target = $region9
    $region8: #{tpu_custom_call.1} parent=1 // pred_region
      %35 = vsyncadd [#allocation6], 0
      %s36 = sshll.u32 %s1, 4
      %s37 = int_to_ptr.hbm [resolvable:$true] %s36
      %s38 = sshll.u32 [#allocation5], 4
      %s39 = int_to_ptr.vmem [resolvable:$true] %s38
      %44 = dma.hbm_to_vmem [thread:$0]  %s37, 14336, %s39, [#allocation6], 128, 128, 8
    $region9: #{tpu_custom_call.1} parent=1 // pred_fallthru
      _
    // Predicated region
    $region10: #{tpu_custom_call.1} parent=1 // pred_check
      _
    $region11: #{tpu_custom_call.1} parent=1 // pred_check_branch
      %46 = sbr.rel (0) target = $region13
    $region12: #{tpu_custom_call.1} parent=1 // pred_region
      %48 = vsyncadd [#allocation6], 0
      %s50 = sshll.u32 %s2, 4
      %s51 = int_to_ptr.hbm [resolvable:$true] %s50
      %s52 = sshll.u32 [#allocation7], 4
      %s53 = int_to_ptr.vmem [resolvable:$true] %s52
      %55 = dma.hbm_to_vmem [thread:$0]  %s51, 32, %s53, [#allocation6]
    $region13: #{tpu_custom_call.1} parent=1 // pred_fallthru
      _
    // Predicated region
    $region14: #{tpu_custom_call.1} parent=1 // pred_check
      _
    $region15: #{tpu_custom_call.1} parent=1 // pred_check_branch
      %57 = sbr.rel (0) target = $region17
    $region16: #{tpu_custom_call.1} parent=1 // pred_region
      %59 = vsyncadd [#allocation9], 0
      %s60 = sshll.u32 %s3, 4
      %s61 = int_to_ptr.hbm [resolvable:$true] %s60
      %s62 = sshll.u32 [#allocation8], 4
      %s63 = int_to_ptr.vmem [resolvable:$true] %s62
      %68 = dma.hbm_to_vmem [thread:$0]  %s61, 2048, %s63, [#allocation9], 64, 64, 4
    $region17: #{tpu_custom_call.1} parent=1 // pred_fallthru
      _
    // Predicated region
    $region18: #{tpu_custom_call.1} parent=1 // pred_check
      _
    $region19: #{tpu_custom_call.1} parent=1 // pred_check_branch
      %70 = sbr.rel (0) target = $region21
    $region20: #{tpu_custom_call.1} parent=1 // pred_region
      _
    $region21: #{tpu_custom_call.1} parent=1 // pred_fallthru
      _
    // Predicated region
    $region22: #{tpu_custom_call.1} parent=1 // pred_check
      _
    $region23: #{tpu_custom_call.1} parent=1 // pred_check_branch
      %72 = sbr.rel (0) target = $region25
    $region24: #{tpu_custom_call.1} parent=1 // pred_region
      %74 = vsyncadd [#allocation9], 0
      %s75 = sshll.u32 %s5, 4
      %s76 = int_to_ptr.hbm [resolvable:$true] %s75
      %s77 = sshll.u32 [#allocation10], 4
      %s78 = int_to_ptr.vmem [resolvable:$true] %s77
      %83 = dma.hbm_to_vmem [thread:$0]  %s76, 1024, %s78, [#allocation9], 64, 64, 4
    $region25: #{tpu_custom_call.1} parent=1 // pred_fallthru
      _
    // Predicated region
    $region26: #{tpu_custom_call.1} parent=1 // pred_check
      _
    $region27: #{tpu_custom_call.1} parent=1 // pred_check_branch
      %85 = sbr.rel (0) target = $region29
    $region28: #{tpu_custom_call.1} parent=1 // pred_region
      _
    $region29: #{tpu_custom_call.1} parent=1 // pred_fallthru
      _
    // Predicated region
    $region30: #{tpu_custom_call.1} parent=1 // pred_check
      _
    $region31: #{tpu_custom_call.1} parent=1 // pred_check_branch
      %87 = sbr.rel (0) target = $region33
    $region32: #{tpu_custom_call.1} parent=1 // pred_region
      %89 = vsyncadd [#allocation12], 0
      %s90 = sshll.u32 %s7, 4
      %s91 = int_to_ptr.hbm [resolvable:$true] %s90
      %s92 = sshll.u32 [#allocation11], 4
      %s93 = int_to_ptr.vmem [resolvable:$true] %s92
      %98 = dma.hbm_to_vmem [thread:$0]  %s91, 1024, %s93, [#allocation12], 64, 64, 4
    $region33: #{tpu_custom_call.1} parent=1 // pred_fallthru
      _
    // Predicated region
    $region34: #{tpu_custom_call.1} parent=1 // pred_check
      _
    $region35: #{tpu_custom_call.1} parent=1 // pred_check_branch
      %100 = sbr.rel (0) target = $region37
    $region36: #{tpu_custom_call.1} parent=1 // pred_region
      _
    $region37: #{tpu_custom_call.1} parent=1 // pred_fallthru
      _
    // Predicated region
    $region38: #{tpu_custom_call.1} parent=1 // pred_check
      _
    $region39: #{tpu_custom_call.1} parent=1 // pred_check_branch
      %102 = sbr.rel (0) target = $region41
    $region40: #{tpu_custom_call.1} parent=1 // pred_region
      %104 = dma.done [#allocation3], 14336
    $region41: #{tpu_custom_call.1} parent=1 // pred_fallthru
      _
    // Predicated region
    $region42: #{tpu_custom_call.1} parent=1 // pred_check
      _
    $region43: #{tpu_custom_call.1} parent=1 // pred_check_branch
      %106 = sbr.rel (0) target = $region45
    $region44: #{tpu_custom_call.1} parent=1 // pred_region
      %108 = dma.done [#allocation6], 14336
    $region45: #{tpu_custom_call.1} parent=1 // pred_fallthru
      _
    // Predicated region
    $region46: #{tpu_custom_call.1} parent=1 // pred_check
      _
    $region47: #{tpu_custom_call.1} parent=1 // pred_check_branch
      %110 = sbr.rel (0) target = $region49
    $region48: #{tpu_custom_call.1} parent=1 // pred_region
      %112 = dma.done [#allocation6], 32
    $region49: #{tpu_custom_call.1} parent=1 // pred_fallthru
      _
    // Predicated region
    $region50: #{tpu_custom_call.1} parent=1 // pred_check
      _
    $region51: #{tpu_custom_call.1} parent=1 // pred_check_branch
      %114 = sbr.rel (0) target = $region53
    $region52: #{tpu_custom_call.1} parent=1 // pred_region
      %116 = dma.done [#allocation9], 2048
    $region53: #{tpu_custom_call.1} parent=1 // pred_fallthru
      _
    // Predicated region
    $region54: #{tpu_custom_call.1} parent=1 // pred_check
      _
    $region55: #{tpu_custom_call.1} parent=1 // pred_check_branch
      %118 = sbr.rel (0) target = $region57
    $region56: #{tpu_custom_call.1} parent=1 // pred_region
      %120 = dma.done [#allocation9], 1024
    $region57: #{tpu_custom_call.1} parent=1 // pred_fallthru
      _
    // Predicated region
    $region58: #{tpu_custom_call.1} parent=1 // pred_check
      _
    $region59: #{tpu_custom_call.1} parent=1 // pred_check_branch
      %122 = sbr.rel (0) target = $region61
    $region60: #{tpu_custom_call.1} parent=1 // pred_region
      %124 = dma.done [#allocation12], 1024
    $region61: #{tpu_custom_call.1} parent=1 // pred_fallthru
      _
    %v125 = vld [vmem:[#allocation2] sm:$0xff]
    %v126 = vld [vmem:[#allocation2 + $0x8] sm:$0xff]
    %v127 = vld [vmem:[#allocation2 + $0x10] sm:$0xff]
    %v128 = vld [vmem:[#allocation2 + $0x18] sm:$0xf]
    %v129 = vld [vmem:[#allocation2 + $0x1c] sm:$0xff]
    %v130 = vld [vmem:[#allocation2 + $0x24] sm:$0xff]
    %v131 = vld [vmem:[#allocation2 + $0x2c] sm:$0xff]
    %v132 = vld [vmem:[#allocation2 + $0x34] sm:$0xf]
    %v133 = vld [vmem:[#allocation2 + $0x38] sm:$0xff]
    %v134 = vld [vmem:[#allocation2 + $0x40] sm:$0xff]
    %v135 = vld [vmem:[#allocation2 + $0x48] sm:$0xff]
    %v136 = vld [vmem:[#allocation2 + $0x50] sm:$0xf]
    %v137 = vld [vmem:[#allocation2 + $0x54] sm:$0xff]
    %v138 = vld [vmem:[#allocation2 + $0x5c] sm:$0xff]
    %v139 = vld [vmem:[#allocation2 + $0x64] sm:$0xff]
    %v140 = vld [vmem:[#allocation2 + $0x6c] sm:$0xf]
    %v141 = vld [vmem:[#allocation2 + $0x70] sm:$0xff]
    %v142 = vld [vmem:[#allocation2 + $0x78] sm:$0xff]
    %v143 = vld [vmem:[#allocation2 + $0x80] sm:$0xff]
    %v144 = vld [vmem:[#allocation2 + $0x88] sm:$0xf]
    %v145 = vld [vmem:[#allocation2 + $0x8c] sm:$0xff]
    %v146 = vld [vmem:[#allocation2 + $0x94] sm:$0xff]
    %v147 = vld [vmem:[#allocation2 + $0x9c] sm:$0xff]
    %v148 = vld [vmem:[#allocation2 + $0xa4] sm:$0xf]
    %v149 = vld [vmem:[#allocation2 + $0xa8] sm:$0xff]
    %v150 = vld [vmem:[#allocation2 + $0xb0] sm:$0xff]
    %v151 = vld [vmem:[#allocation2 + $0xb8] sm:$0xff]
    %v152 = vld [vmem:[#allocation2 + $0xc0] sm:$0xf]
    %v153 = vld [vmem:[#allocation2 + $0xc4] sm:$0xff]
    %v154 = vld [vmem:[#allocation2 + $0xcc] sm:$0xff]
    %v155 = vld [vmem:[#allocation2 + $0xd4] sm:$0xff]
    %v156 = vld [vmem:[#allocation2 + $0xdc] sm:$0xf]
    %v157 = vld [vmem:[#allocation2 + $0xe0] sm:$0xff]
    %v158 = vld [vmem:[#allocation2 + $0xe8] sm:$0xff]
    %v159 = vld [vmem:[#allocation2 + $0xf0] sm:$0xff]
    %v160 = vld [vmem:[#allocation2 + $0xf8] sm:$0xf]
    %v161 = vld [vmem:[#allocation2 + $0xfc] sm:$0xff]
    %v162 = vld [vmem:[#allocation2 + $0x104] sm:$0xff]
    %v163 = vld [vmem:[#allocation2 + $0x10c] sm:$0xff]
    %v164 = vld [vmem:[#allocation2 + $0x114] sm:$0xf]
    %v165 = vld [vmem:[#allocation2 + $0x118] sm:$0xff]
    %v166 = vld [vmem:[#allocation2 + $0x120] sm:$0xff]
    %v167 = vld [vmem:[#allocation2 + $0x128] sm:$0xff]
    %v168 = vld [vmem:[#allocation2 + $0x130] sm:$0xf]
    %v169 = vld [vmem:[#allocation2 + $0x134] sm:$0xff]
    %v170 = vld [vmem:[#allocation2 + $0x13c] sm:$0xff]
    %v171 = vld [vmem:[#allocation2 + $0x144] sm:$0xff]
    %v172 = vld [vmem:[#allocation2 + $0x14c] sm:$0xf]
    %v173 = vld [vmem:[#allocation2 + $0x150] sm:$0xff]
    %v174 = vld [vmem:[#allocation2 + $0x158] sm:$0xff]
    %v175 = vld [vmem:[#allocation2 + $0x160] sm:$0xff]
    %v176 = vld [vmem:[#allocation2 + $0x168] sm:$0xf]
    %v177 = vld [vmem:[#allocation2 + $0x16c] sm:$0xff]
    %v178 = vld [vmem:[#allocation2 + $0x174] sm:$0xff]
    %v179 = vld [vmem:[#allocation2 + $0x17c] sm:$0xff]
    %v180 = vld [vmem:[#allocation2 + $0x184] sm:$0xf]
    %v181 = vld [vmem:[#allocation2 + $0x188] sm:$0xff]
    %v182 = vld [vmem:[#allocation2 + $0x190] sm:$0xff]
    %v183 = vld [vmem:[#allocation2 + $0x198] sm:$0xff]
    %v184 = vld [vmem:[#allocation2 + $0x1a0] sm:$0xf]
    %v185 = vld [vmem:[#allocation2 + $0x1a4] sm:$0xff]
    %v186 = vld [vmem:[#allocation2 + $0x1ac] sm:$0xff]
    %v187 = vld [vmem:[#allocation2 + $0x1b4] sm:$0xff]
    %v188 = vld [vmem:[#allocation2 + $0x1bc] sm:$0xf]
    %v189 = vld [vmem:[#allocation2 + $0x1c0] sm:$0xff]
    %v190 = vld [vmem:[#allocation2 + $0x1c8] sm:$0xff]
    %v191 = vld [vmem:[#allocation2 + $0x1d0] sm:$0xff]
    %v192 = vld [vmem:[#allocation2 + $0x1d8] sm:$0xf]
    %v193 = vld [vmem:[#allocation2 + $0x1dc] sm:$0xff]
    %v194 = vld [vmem:[#allocation2 + $0x1e4] sm:$0xff]
    %v195 = vld [vmem:[#allocation2 + $0x1ec] sm:$0xff]
    %v196 = vld [vmem:[#allocation2 + $0x1f4] sm:$0xf]
    %v197 = vld [vmem:[#allocation2 + $0x1f8] sm:$0xff]
    %v198 = vld [vmem:[#allocation2 + $0x200] sm:$0xff]
    %v199 = vld [vmem:[#allocation2 + $0x208] sm:$0xff]
    %v200 = vld [vmem:[#allocation2 + $0x210] sm:$0xf]
    %v201 = vld [vmem:[#allocation2 + $0x214] sm:$0xff]
    %v202 = vld [vmem:[#allocation2 + $0x21c] sm:$0xff]
    %v203 = vld [vmem:[#allocation2 + $0x224] sm:$0xff]
    %v204 = vld [vmem:[#allocation2 + $0x22c] sm:$0xf]
    %v205 = vld [vmem:[#allocation2 + $0x230] sm:$0xff]
    %v206 = vld [vmem:[#allocation2 + $0x238] sm:$0xff]
    %v207 = vld [vmem:[#allocation2 + $0x240] sm:$0xff]
    %v208 = vld [vmem:[#allocation2 + $0x248] sm:$0xf]
    %v209 = vld [vmem:[#allocation2 + $0x24c] sm:$0xff]
    %v210 = vld [vmem:[#allocation2 + $0x254] sm:$0xff]
    %v211 = vld [vmem:[#allocation2 + $0x25c] sm:$0xff]
    %v212 = vld [vmem:[#allocation2 + $0x264] sm:$0xf]
    %v213 = vld [vmem:[#allocation2 + $0x268] sm:$0xff]
    %v214 = vld [vmem:[#allocation2 + $0x270] sm:$0xff]
    %v215 = vld [vmem:[#allocation2 + $0x278] sm:$0xff]
    %v216 = vld [vmem:[#allocation2 + $0x280] sm:$0xf]
    %v217 = vld [vmem:[#allocation2 + $0x284] sm:$0xff]
    %v218 = vld [vmem:[#allocation2 + $0x28c] sm:$0xff]
    %v219 = vld [vmem:[#allocation2 + $0x294] sm:$0xff]
    %v220 = vld [vmem:[#allocation2 + $0x29c] sm:$0xf]
    %v221 = vld [vmem:[#allocation2 + $0x2a0] sm:$0xff]
    %v222 = vld [vmem:[#allocation2 + $0x2a8] sm:$0xff]
    %v223 = vld [vmem:[#allocation2 + $0x2b0] sm:$0xff]
    %v224 = vld [vmem:[#allocation2 + $0x2b8] sm:$0xf]
    %v225 = vld [vmem:[#allocation2 + $0x2bc] sm:$0xff]
    %v226 = vld [vmem:[#allocation2 + $0x2c4] sm:$0xff]
    %v227 = vld [vmem:[#allocation2 + $0x2cc] sm:$0xff]
    %v228 = vld [vmem:[#allocation2 + $0x2d4] sm:$0xf]
    %v229 = vld [vmem:[#allocation2 + $0x2d8] sm:$0xff]
    %v230 = vld [vmem:[#allocation2 + $0x2e0] sm:$0xff]
    %v231 = vld [vmem:[#allocation2 + $0x2e8] sm:$0xff]
    %v232 = vld [vmem:[#allocation2 + $0x2f0] sm:$0xf]
    %v233 = vld [vmem:[#allocation2 + $0x2f4] sm:$0xff]
    %v234 = vld [vmem:[#allocation2 + $0x2fc] sm:$0xff]
    %v235 = vld [vmem:[#allocation2 + $0x304] sm:$0xff]
    %v236 = vld [vmem:[#allocation2 + $0x30c] sm:$0xf]
    %v237 = vld [vmem:[#allocation2 + $0x310] sm:$0xff]
    %v238 = vld [vmem:[#allocation2 + $0x318] sm:$0xff]
    %v239 = vld [vmem:[#allocation2 + $0x320] sm:$0xff]
    %v240 = vld [vmem:[#allocation2 + $0x328] sm:$0xf]
    %v241 = vld [vmem:[#allocation2 + $0x32c] sm:$0xff]
    %v242 = vld [vmem:[#allocation2 + $0x334] sm:$0xff]
    %v243 = vld [vmem:[#allocation2 + $0x33c] sm:$0xff]
    %v244 = vld [vmem:[#allocation2 + $0x344] sm:$0xf]
    %v245 = vld [vmem:[#allocation2 + $0x348] sm:$0xff]
    %v246 = vld [vmem:[#allocation2 + $0x350] sm:$0xff]
    %v247 = vld [vmem:[#allocation2 + $0x358] sm:$0xff]
    %v248 = vld [vmem:[#allocation2 + $0x360] sm:$0xf]
    %v249 = vld [vmem:[#allocation2 + $0x364] sm:$0xff]
    %v250 = vld [vmem:[#allocation2 + $0x36c] sm:$0xff]
    %v251 = vld [vmem:[#allocation2 + $0x374] sm:$0xff]
    %v252 = vld [vmem:[#allocation2 + $0x37c] sm:$0xf]
    %v253 = vld [vmem:[#allocation5] sm:$0xff]
    %v254 = vld [vmem:[#allocation5 + $0x8] sm:$0xff]
    %v255 = vld [vmem:[#allocation5 + $0x10] sm:$0xff]
    %v256 = vld [vmem:[#allocation5 + $0x18] sm:$0xff]
    %v257 = vld [vmem:[#allocation5 + $0x20] sm:$0xff]
    %v258 = vld [vmem:[#allocation5 + $0x28] sm:$0xff]
    %v259 = vld [vmem:[#allocation5 + $0x30] sm:$0xff]
    %v260 = vld [vmem:[#allocation5 + $0x38] sm:$0xff]
    %v261 = vld [vmem:[#allocation5 + $0x40] sm:$0xff]
    %v262 = vld [vmem:[#allocation5 + $0x48] sm:$0xff]
    %v263 = vld [vmem:[#allocation5 + $0x50] sm:$0xff]
    %v264 = vld [vmem:[#allocation5 + $0x58] sm:$0xff]
    %v265 = vld [vmem:[#allocation5 + $0x60] sm:$0xff]
    %v266 = vld [vmem:[#allocation5 + $0x68] sm:$0xff]
    %v267 = vld [vmem:[#allocation5 + $0x70] sm:$0xff]
    %v268 = vld [vmem:[#allocation5 + $0x78] sm:$0xff]
    %v269 = vld [vmem:[#allocation5 + $0x80] sm:$0xff]
    %v270 = vld [vmem:[#allocation5 + $0x88] sm:$0xff]
    %v271 = vld [vmem:[#allocation5 + $0x90] sm:$0xff]
    %v272 = vld [vmem:[#allocation5 + $0x98] sm:$0xff]
    %v273 = vld [vmem:[#allocation5 + $0xa0] sm:$0xff]
    %v274 = vld [vmem:[#allocation5 + $0xa8] sm:$0xff]
    %v275 = vld [vmem:[#allocation5 + $0xb0] sm:$0xff]
    %v276 = vld [vmem:[#allocation5 + $0xb8] sm:$0xff]
    %v277 = vld [vmem:[#allocation5 + $0xc0] sm:$0xff]
    %v278 = vld [vmem:[#allocation5 + $0xc8] sm:$0xff]
    %v279 = vld [vmem:[#allocation5 + $0xd0] sm:$0xff]
    %v280 = vld [vmem:[#allocation5 + $0xd8] sm:$0xff]
    %v281 = vld [vmem:[#allocation5 + $0xe0] sm:$0xff]
    %v282 = vld [vmem:[#allocation5 + $0xe8] sm:$0xff]
    %v283 = vld [vmem:[#allocation5 + $0xf0] sm:$0xff]
    %v284 = vld [vmem:[#allocation5 + $0xf8] sm:$0xff]
    %v285 = vld [vmem:[#allocation5 + $0x100] sm:$0xff]
    %v286 = vld [vmem:[#allocation5 + $0x108] sm:$0xff]
    %v287 = vld [vmem:[#allocation5 + $0x110] sm:$0xff]
    %v288 = vld [vmem:[#allocation5 + $0x118] sm:$0xff]
    %v289 = vld [vmem:[#allocation5 + $0x120] sm:$0xff]
    %v290 = vld [vmem:[#allocation5 + $0x128] sm:$0xff]
    %v291 = vld [vmem:[#allocation5 + $0x130] sm:$0xff]
    %v292 = vld [vmem:[#allocation5 + $0x138] sm:$0xff]
    %v293 = vld [vmem:[#allocation5 + $0x140] sm:$0xff]
    %v294 = vld [vmem:[#allocation5 + $0x148] sm:$0xff]
    %v295 = vld [vmem:[#allocation5 + $0x150] sm:$0xff]
    %v296 = vld [vmem:[#allocation5 + $0x158] sm:$0xff]
    %v297 = vld [vmem:[#allocation5 + $0x160] sm:$0xff]
    %v298 = vld [vmem:[#allocation5 + $0x168] sm:$0xff]
    %v299 = vld [vmem:[#allocation5 + $0x170] sm:$0xff]
    %v300 = vld [vmem:[#allocation5 + $0x178] sm:$0xff]
    %v301 = vld [vmem:[#allocation5 + $0x180] sm:$0xff]
    %v302 = vld [vmem:[#allocation5 + $0x188] sm:$0xff]
    %v303 = vld [vmem:[#allocation5 + $0x190] sm:$0xff]
    %v304 = vld [vmem:[#allocation5 + $0x198] sm:$0xff]
    %v305 = vld [vmem:[#allocation5 + $0x1a0] sm:$0xff]
    %v306 = vld [vmem:[#allocation5 + $0x1a8] sm:$0xff]
    %v307 = vld [vmem:[#allocation5 + $0x1b0] sm:$0xff]
    %v308 = vld [vmem:[#allocation5 + $0x1b8] sm:$0xff]
    %v309 = vld [vmem:[#allocation5 + $0x1c0] sm:$0xff]
    %v310 = vld [vmem:[#allocation5 + $0x1c8] sm:$0xff]
    %v311 = vld [vmem:[#allocation5 + $0x1d0] sm:$0xff]
    %v312 = vld [vmem:[#allocation5 + $0x1d8] sm:$0xff]
    %v313 = vld [vmem:[#allocation5 + $0x1e0] sm:$0xff]
    %v314 = vld [vmem:[#allocation5 + $0x1e8] sm:$0xff]
    %v315 = vld [vmem:[#allocation5 + $0x1f0] sm:$0xff]
    %v316 = vld [vmem:[#allocation5 + $0x1f8] sm:$0xff]
    %v317 = vld [vmem:[#allocation5 + $0x200] sm:$0xff]
    %v318 = vld [vmem:[#allocation5 + $0x208] sm:$0xff]
    %v319 = vld [vmem:[#allocation5 + $0x210] sm:$0xff]
    %v320 = vld [vmem:[#allocation5 + $0x218] sm:$0xff]
    %v321 = vld [vmem:[#allocation5 + $0x220] sm:$0xff]
    %v322 = vld [vmem:[#allocation5 + $0x228] sm:$0xff]
    %v323 = vld [vmem:[#allocation5 + $0x230] sm:$0xff]
    %v324 = vld [vmem:[#allocation5 + $0x238] sm:$0xff]
    %v325 = vld [vmem:[#allocation5 + $0x240] sm:$0xff]
    %v326 = vld [vmem:[#allocation5 + $0x248] sm:$0xff]
    %v327 = vld [vmem:[#allocation5 + $0x250] sm:$0xff]
    %v328 = vld [vmem:[#allocation5 + $0x258] sm:$0xff]
    %v329 = vld [vmem:[#allocation5 + $0x260] sm:$0xff]
    %v330 = vld [vmem:[#allocation5 + $0x268] sm:$0xff]
    %v331 = vld [vmem:[#allocation5 + $0x270] sm:$0xff]
    %v332 = vld [vmem:[#allocation5 + $0x278] sm:$0xff]
    %v333 = vld [vmem:[#allocation5 + $0x280] sm:$0xff]
    %v334 = vld [vmem:[#allocation5 + $0x288] sm:$0xff]
    %v335 = vld [vmem:[#allocation5 + $0x290] sm:$0xff]
    %v336 = vld [vmem:[#allocation5 + $0x298] sm:$0xff]
    %v337 = vld [vmem:[#allocation5 + $0x2a0] sm:$0xff]
    %v338 = vld [vmem:[#allocation5 + $0x2a8] sm:$0xff]
    %v339 = vld [vmem:[#allocation5 + $0x2b0] sm:$0xff]
    %v340 = vld [vmem:[#allocation5 + $0x2b8] sm:$0xff]
    %v341 = vld [vmem:[#allocation5 + $0x2c0] sm:$0xff]
    %v342 = vld [vmem:[#allocation5 + $0x2c8] sm:$0xff]
    %v343 = vld [vmem:[#allocation5 + $0x2d0] sm:$0xff]
    %v344 = vld [vmem:[#allocation5 + $0x2d8] sm:$0xff]
    %v345 = vld [vmem:[#allocation5 + $0x2e0] sm:$0xff]
    %v346 = vld [vmem:[#allocation5 + $0x2e8] sm:$0xff]
    %v347 = vld [vmem:[#allocation5 + $0x2f0] sm:$0xff]
    %v348 = vld [vmem:[#allocation5 + $0x2f8] sm:$0xff]
    %v349 = vld [vmem:[#allocation5 + $0x300] sm:$0xff]
    %v350 = vld [vmem:[#allocation5 + $0x308] sm:$0xff]
    %v351 = vld [vmem:[#allocation5 + $0x310] sm:$0xff]
    %v352 = vld [vmem:[#allocation5 + $0x318] sm:$0xff]
    %v353 = vld [vmem:[#allocation5 + $0x320] sm:$0xff]
    %v354 = vld [vmem:[#allocation5 + $0x328] sm:$0xff]
    %v355 = vld [vmem:[#allocation5 + $0x330] sm:$0xff]
    %v356 = vld [vmem:[#allocation5 + $0x338] sm:$0xff]
    %v357 = vld [vmem:[#allocation5 + $0x340] sm:$0xff]
    %v358 = vld [vmem:[#allocation5 + $0x348] sm:$0xff]
    %v359 = vld [vmem:[#allocation5 + $0x350] sm:$0xff]
    %v360 = vld [vmem:[#allocation5 + $0x358] sm:$0xff]
    %v361 = vld [vmem:[#allocation5 + $0x360] sm:$0xff]
    %v362 = vld [vmem:[#allocation5 + $0x368] sm:$0xff]
    %v363 = vld [vmem:[#allocation5 + $0x370] sm:$0xff]
    %v364 = vld [vmem:[#allocation5 + $0x378] sm:$0xff]
    %v365 = vld [vmem:[#allocation7] sm:$0x3]
    %v367 = vperm.slane %v365, 0
    %v368 = vperm.slane %v365, 1
    %v499 = vunpack.c.l.b16 %v125
    %v500 = vunpack.c.h.b16 %v125
    %v501 = vunpack.c.l.b16 %v126
    %v502 = vunpack.c.h.b16 %v126
    %v503 = vunpack.c.l.b16 %v127
    %v504 = vunpack.c.h.b16 %v127
    %v505 = vunpack.c.l.b16 %v128
    %v506 = vunpack.c.l.b16 %v129
    %v507 = vunpack.c.h.b16 %v129
    %v508 = vunpack.c.l.b16 %v130
    %v509 = vunpack.c.h.b16 %v130
    %v510 = vunpack.c.l.b16 %v131
    %v511 = vunpack.c.h.b16 %v131
    %v512 = vunpack.c.l.b16 %v132
    %v513 = vunpack.c.l.b16 %v133
    %v514 = vunpack.c.h.b16 %v133
    %v515 = vunpack.c.l.b16 %v134
    %v516 = vunpack.c.h.b16 %v134
    %v517 = vunpack.c.l.b16 %v135
    %v518 = vunpack.c.h.b16 %v135
    %v519 = vunpack.c.l.b16 %v136
    %v520 = vunpack.c.l.b16 %v137
    %v521 = vunpack.c.h.b16 %v137
    %v522 = vunpack.c.l.b16 %v138
    %v523 = vunpack.c.h.b16 %v138
    %v524 = vunpack.c.l.b16 %v139
    %v525 = vunpack.c.h.b16 %v139
    %v526 = vunpack.c.l.b16 %v140
    %v527 = vunpack.c.l.b16 %v141
    %v528 = vunpack.c.h.b16 %v141
    %v529 = vunpack.c.l.b16 %v142
    %v530 = vunpack.c.h.b16 %v142
    %v531 = vunpack.c.l.b16 %v143
    %v532 = vunpack.c.h.b16 %v143
    %v533 = vunpack.c.l.b16 %v144
    %v534 = vunpack.c.l.b16 %v145
    %v535 = vunpack.c.h.b16 %v145
    %v536 = vunpack.c.l.b16 %v146
    %v537 = vunpack.c.h.b16 %v146
    %v538 = vunpack.c.l.b16 %v147
    %v539 = vunpack.c.h.b16 %v147
    %v540 = vunpack.c.l.b16 %v148
    %v541 = vunpack.c.l.b16 %v149
    %v542 = vunpack.c.h.b16 %v149
    %v543 = vunpack.c.l.b16 %v150
    %v544 = vunpack.c.h.b16 %v150
    %v545 = vunpack.c.l.b16 %v151
    %v546 = vunpack.c.h.b16 %v151
    %v547 = vunpack.c.l.b16 %v152
    %v548 = vunpack.c.l.b16 %v153
    %v549 = vunpack.c.h.b16 %v153
    %v550 = vunpack.c.l.b16 %v154
    %v551 = vunpack.c.h.b16 %v154
    %v552 = vunpack.c.l.b16 %v155
    %v553 = vunpack.c.h.b16 %v155
    %v554 = vunpack.c.l.b16 %v156
    %v555 = vunpack.c.l.b16 %v157
    %v556 = vunpack.c.h.b16 %v157
    %v557 = vunpack.c.l.b16 %v158
    %v558 = vunpack.c.h.b16 %v158
    %v559 = vunpack.c.l.b16 %v159
    %v560 = vunpack.c.h.b16 %v159
    %v561 = vunpack.c.l.b16 %v160
    %v562 = vunpack.c.l.b16 %v161
    %v563 = vunpack.c.h.b16 %v161
    %v564 = vunpack.c.l.b16 %v162
    %v565 = vunpack.c.h.b16 %v162
    %v566 = vunpack.c.l.b16 %v163
    %v567 = vunpack.c.h.b16 %v163
    %v568 = vunpack.c.l.b16 %v164
    %v569 = vunpack.c.l.b16 %v165
    %v570 = vunpack.c.h.b16 %v165
    %v571 = vunpack.c.l.b16 %v166
    %v572 = vunpack.c.h.b16 %v166
    %v573 = vunpack.c.l.b16 %v167
    %v574 = vunpack.c.h.b16 %v167
    %v575 = vunpack.c.l.b16 %v168
    %v576 = vunpack.c.l.b16 %v169
    %v577 = vunpack.c.h.b16 %v169
    %v578 = vunpack.c.l.b16 %v170
    %v579 = vunpack.c.h.b16 %v170
    %v580 = vunpack.c.l.b16 %v171
    %v581 = vunpack.c.h.b16 %v171
    %v582 = vunpack.c.l.b16 %v172
    %v583 = vunpack.c.l.b16 %v173
    %v584 = vunpack.c.h.b16 %v173
    %v585 = vunpack.c.l.b16 %v174
    %v586 = vunpack.c.h.b16 %v174
    %v587 = vunpack.c.l.b16 %v175
    %v588 = vunpack.c.h.b16 %v175
    %v589 = vunpack.c.l.b16 %v176
    %v590 = vunpack.c.l.b16 %v177
    %v591 = vunpack.c.h.b16 %v177
    %v592 = vunpack.c.l.b16 %v178
    %v593 = vunpack.c.h.b16 %v178
    %v594 = vunpack.c.l.b16 %v179
    %v595 = vunpack.c.h.b16 %v179
    %v596 = vunpack.c.l.b16 %v180
    %v597 = vunpack.c.l.b16 %v181
    %v598 = vunpack.c.h.b16 %v181
    %v599 = vunpack.c.l.b16 %v182
    %v600 = vunpack.c.h.b16 %v182
    %v601 = vunpack.c.l.b16 %v183
    %v602 = vunpack.c.h.b16 %v183
    %v603 = vunpack.c.l.b16 %v184
    %v604 = vunpack.c.l.b16 %v185
    %v605 = vunpack.c.h.b16 %v185
    %v606 = vunpack.c.l.b16 %v186
    %v607 = vunpack.c.h.b16 %v186
    %v608 = vunpack.c.l.b16 %v187
    %v609 = vunpack.c.h.b16 %v187
    %v610 = vunpack.c.l.b16 %v188
    %v611 = vunpack.c.l.b16 %v189
    %v612 = vunpack.c.h.b16 %v189
    %v613 = vunpack.c.l.b16 %v190
    %v614 = vunpack.c.h.b16 %v190
    %v615 = vunpack.c.l.b16 %v191
    %v616 = vunpack.c.h.b16 %v191
    %v617 = vunpack.c.l.b16 %v192
    %v618 = vunpack.c.l.b16 %v193
    %v619 = vunpack.c.h.b16 %v193
    %v620 = vunpack.c.l.b16 %v194
    %v621 = vunpack.c.h.b16 %v194
    %v622 = vunpack.c.l.b16 %v195
    %v623 = vunpack.c.h.b16 %v195
    %v624 = vunpack.c.l.b16 %v196
    %v625 = vunpack.c.l.b16 %v197
    %v626 = vunpack.c.h.b16 %v197
    %v627 = vunpack.c.l.b16 %v198
    %v628 = vunpack.c.h.b16 %v198
    %v629 = vunpack.c.l.b16 %v199
    %v630 = vunpack.c.h.b16 %v199
    %v631 = vunpack.c.l.b16 %v200
    %v632 = vunpack.c.l.b16 %v201
    %v633 = vunpack.c.h.b16 %v201
    %v634 = vunpack.c.l.b16 %v202
    %v635 = vunpack.c.h.b16 %v202
    %v636 = vunpack.c.l.b16 %v203
    %v637 = vunpack.c.h.b16 %v203
    %v638 = vunpack.c.l.b16 %v204
    %v639 = vunpack.c.l.b16 %v205
    %v640 = vunpack.c.h.b16 %v205
    %v641 = vunpack.c.l.b16 %v206
    %v642 = vunpack.c.h.b16 %v206
    %v643 = vunpack.c.l.b16 %v207
    %v644 = vunpack.c.h.b16 %v207
    %v645 = vunpack.c.l.b16 %v208
    %v646 = vunpack.c.l.b16 %v209
    %v647 = vunpack.c.h.b16 %v209
    %v648 = vunpack.c.l.b16 %v210
    %v649 = vunpack.c.h.b16 %v210
    %v650 = vunpack.c.l.b16 %v211
    %v651 = vunpack.c.h.b16 %v211
    %v652 = vunpack.c.l.b16 %v212
    %v653 = vunpack.c.l.b16 %v213
    %v654 = vunpack.c.h.b16 %v213
    %v655 = vunpack.c.l.b16 %v214
    %v656 = vunpack.c.h.b16 %v214
    %v657 = vunpack.c.l.b16 %v215
    %v658 = vunpack.c.h.b16 %v215
    %v659 = vunpack.c.l.b16 %v216
    %v660 = vunpack.c.l.b16 %v217
    %v661 = vunpack.c.h.b16 %v217
    %v662 = vunpack.c.l.b16 %v218
    %v663 = vunpack.c.h.b16 %v218
    %v664 = vunpack.c.l.b16 %v219
    %v665 = vunpack.c.h.b16 %v219
    %v666 = vunpack.c.l.b16 %v220
    %v667 = vunpack.c.l.b16 %v221
    %v668 = vunpack.c.h.b16 %v221
    %v669 = vunpack.c.l.b16 %v222
    %v670 = vunpack.c.h.b16 %v222
    %v671 = vunpack.c.l.b16 %v223
    %v672 = vunpack.c.h.b16 %v223
    %v673 = vunpack.c.l.b16 %v224
    %v674 = vunpack.c.l.b16 %v225
    %v675 = vunpack.c.h.b16 %v225
    %v676 = vunpack.c.l.b16 %v226
    %v677 = vunpack.c.h.b16 %v226
    %v678 = vunpack.c.l.b16 %v227
    %v679 = vunpack.c.h.b16 %v227
    %v680 = vunpack.c.l.b16 %v228
    %v681 = vunpack.c.l.b16 %v229
    %v682 = vunpack.c.h.b16 %v229
    %v683 = vunpack.c.l.b16 %v230
    %v684 = vunpack.c.h.b16 %v230
    %v685 = vunpack.c.l.b16 %v231
    %v686 = vunpack.c.h.b16 %v231
    %v687 = vunpack.c.l.b16 %v232
    %v688 = vunpack.c.l.b16 %v233
    %v689 = vunpack.c.h.b16 %v233
    %v690 = vunpack.c.l.b16 %v234
    %v691 = vunpack.c.h.b16 %v234
    %v692 = vunpack.c.l.b16 %v235
    %v693 = vunpack.c.h.b16 %v235
    %v694 = vunpack.c.l.b16 %v236
    %v695 = vunpack.c.l.b16 %v237
    %v696 = vunpack.c.h.b16 %v237
    %v697 = vunpack.c.l.b16 %v238
    %v698 = vunpack.c.h.b16 %v238
    %v699 = vunpack.c.l.b16 %v239
    %v700 = vunpack.c.h.b16 %v239
    %v701 = vunpack.c.l.b16 %v240
    %v702 = vunpack.c.l.b16 %v241
    %v703 = vunpack.c.h.b16 %v241
    %v704 = vunpack.c.l.b16 %v242
    %v705 = vunpack.c.h.b16 %v242
    %v706 = vunpack.c.l.b16 %v243
    %v707 = vunpack.c.h.b16 %v243
    %v708 = vunpack.c.l.b16 %v244
    %v709 = vunpack.c.l.b16 %v245
    %v710 = vunpack.c.h.b16 %v245
    %v711 = vunpack.c.l.b16 %v246
    %v712 = vunpack.c.h.b16 %v246
    %v713 = vunpack.c.l.b16 %v247
    %v714 = vunpack.c.h.b16 %v247
    %v715 = vunpack.c.l.b16 %v248
    %v716 = vunpack.c.l.b16 %v249
    %v717 = vunpack.c.h.b16 %v249
    %v718 = vunpack.c.l.b16 %v250
    %v719 = vunpack.c.h.b16 %v250
    %v720 = vunpack.c.l.b16 %v251
    %v721 = vunpack.c.h.b16 %v251
    %v722 = vunpack.c.l.b16 %v252
    %v723 = vpack.c.b16 %v506, %v499
    %v724 = vpack.c.b16 %v507, %v500
    %v725 = vpack.c.b16 %v508, %v501
    %v726 = vpack.c.b16 %v509, %v502
    %v727 = vpack.c.b16 %v510, %v503
    %v728 = vpack.c.b16 %v511, %v504
    %v729 = vpack.c.b16 %v512, %v505
    %v730 = vpack.c.b16 %v520, %v513
    %v731 = vpack.c.b16 %v521, %v514
    %v732 = vpack.c.b16 %v522, %v515
    %v733 = vpack.c.b16 %v523, %v516
    %v734 = vpack.c.b16 %v524, %v517
    %v735 = vpack.c.b16 %v525, %v518
    %v736 = vpack.c.b16 %v526, %v519
    %v737 = vpack.c.b16 %v534, %v527
    %v738 = vpack.c.b16 %v535, %v528
    %v739 = vpack.c.b16 %v536, %v529
    %v740 = vpack.c.b16 %v537, %v530
    %v741 = vpack.c.b16 %v538, %v531
    %v742 = vpack.c.b16 %v539, %v532
    %v743 = vpack.c.b16 %v540, %v533
    %v744 = vpack.c.b16 %v548, %v541
    %v745 = vpack.c.b16 %v549, %v542
    %v746 = vpack.c.b16 %v550, %v543
    %v747 = vpack.c.b16 %v551, %v544
    %v748 = vpack.c.b16 %v552, %v545
    %v749 = vpack.c.b16 %v553, %v546
    %v750 = vpack.c.b16 %v554, %v547
    %v751 = vpack.c.b16 %v562, %v555
    %v752 = vpack.c.b16 %v563, %v556
    %v753 = vpack.c.b16 %v564, %v557
    %v754 = vpack.c.b16 %v565, %v558
    %v755 = vpack.c.b16 %v566, %v559
    %v756 = vpack.c.b16 %v567, %v560
    %v757 = vpack.c.b16 %v568, %v561
    %v758 = vpack.c.b16 %v576, %v569
    %v759 = vpack.c.b16 %v577, %v570
    %v760 = vpack.c.b16 %v578, %v571
    %v761 = vpack.c.b16 %v579, %v572
    %v762 = vpack.c.b16 %v580, %v573
    %v763 = vpack.c.b16 %v581, %v574
    %v764 = vpack.c.b16 %v582, %v575
    %v765 = vpack.c.b16 %v590, %v583
    %v766 = vpack.c.b16 %v591, %v584
    %v767 = vpack.c.b16 %v592, %v585
    %v768 = vpack.c.b16 %v593, %v586
    %v769 = vpack.c.b16 %v594, %v587
    %v770 = vpack.c.b16 %v595, %v588
    %v771 = vpack.c.b16 %v596, %v589
    %v772 = vpack.c.b16 %v604, %v597
    %v773 = vpack.c.b16 %v605, %v598
    %v774 = vpack.c.b16 %v606, %v599
    %v775 = vpack.c.b16 %v607, %v600
    %v776 = vpack.c.b16 %v608, %v601
    %v777 = vpack.c.b16 %v609, %v602
    %v778 = vpack.c.b16 %v610, %v603
    %v779 = vpack.c.b16 %v618, %v611
    %v780 = vpack.c.b16 %v619, %v612
    %v781 = vpack.c.b16 %v620, %v613
    %v782 = vpack.c.b16 %v621, %v614
    %v783 = vpack.c.b16 %v622, %v615
    %v784 = vpack.c.b16 %v623, %v616
    %v785 = vpack.c.b16 %v624, %v617
    %v786 = vpack.c.b16 %v632, %v625
    %v787 = vpack.c.b16 %v633, %v626
    %v788 = vpack.c.b16 %v634, %v627
    %v789 = vpack.c.b16 %v635, %v628
    %v790 = vpack.c.b16 %v636, %v629
    %v791 = vpack.c.b16 %v637, %v630
    %v792 = vpack.c.b16 %v638, %v631
    %v793 = vpack.c.b16 %v646, %v639
    %v794 = vpack.c.b16 %v647, %v640
    %v795 = vpack.c.b16 %v648, %v641
    %v796 = vpack.c.b16 %v649, %v642
    %v797 = vpack.c.b16 %v650, %v643
    %v798 = vpack.c.b16 %v651, %v644
    %v799 = vpack.c.b16 %v652, %v645
    %v800 = vpack.c.b16 %v660, %v653
    %v801 = vpack.c.b16 %v661, %v654
    %v802 = vpack.c.b16 %v662, %v655
    %v803 = vpack.c.b16 %v663, %v656
    %v804 = vpack.c.b16 %v664, %v657
    %v805 = vpack.c.b16 %v665, %v658
    %v806 = vpack.c.b16 %v666, %v659
    %v807 = vpack.c.b16 %v674, %v667
    %v808 = vpack.c.b16 %v675, %v668
    %v809 = vpack.c.b16 %v676, %v669
    %v810 = vpack.c.b16 %v677, %v670
    %v811 = vpack.c.b16 %v678, %v671
    %v812 = vpack.c.b16 %v679, %v672
    %v813 = vpack.c.b16 %v680, %v673
    %v814 = vpack.c.b16 %v688, %v681
    %v815 = vpack.c.b16 %v689, %v682
    %v816 = vpack.c.b16 %v690, %v683
    %v817 = vpack.c.b16 %v691, %v684
    %v818 = vpack.c.b16 %v692, %v685
    %v819 = vpack.c.b16 %v693, %v686
    %v820 = vpack.c.b16 %v694, %v687
    %v821 = vpack.c.b16 %v702, %v695
    %v822 = vpack.c.b16 %v703, %v696
    %v823 = vpack.c.b16 %v704, %v697
    %v824 = vpack.c.b16 %v705, %v698
    %v825 = vpack.c.b16 %v706, %v699
    %v826 = vpack.c.b16 %v707, %v700
    %v827 = vpack.c.b16 %v708, %v701
    %v828 = vpack.c.b16 %v716, %v709
    %v829 = vpack.c.b16 %v717, %v710
    %v830 = vpack.c.b16 %v718, %v711
    %v831 = vpack.c.b16 %v719, %v712
    %v832 = vpack.c.b16 %v720, %v713
    %v833 = vpack.c.b16 %v721, %v714
    %v834 = vpack.c.b16 %v722, %v715
    %v1059 = vunpack.c.l.b16 %v253
    %v1060 = vunpack.c.h.b16 %v253
    %v1061 = vunpack.c.l.b16 %v254
    %v1062 = vunpack.c.h.b16 %v254
    %v1063 = vunpack.c.l.b16 %v255
    %v1064 = vunpack.c.h.b16 %v255
    %v1065 = vunpack.c.l.b16 %v256
    %v1066 = vunpack.c.h.b16 %v256
    %v1067 = vunpack.c.l.b16 %v257
    %v1068 = vunpack.c.h.b16 %v257
    %v1069 = vunpack.c.l.b16 %v258
    %v1070 = vunpack.c.h.b16 %v258
    %v1071 = vunpack.c.l.b16 %v259
    %v1072 = vunpack.c.h.b16 %v259
    %v1073 = vunpack.c.l.b16 %v260
    %v1074 = vunpack.c.h.b16 %v260
    %v1075 = vunpack.c.l.b16 %v261
    %v1076 = vunpack.c.h.b16 %v261
    %v1077 = vunpack.c.l.b16 %v262
    %v1078 = vunpack.c.h.b16 %v262
    %v1079 = vunpack.c.l.b16 %v263
    %v1080 = vunpack.c.h.b16 %v263
    %v1081 = vunpack.c.l.b16 %v264
    %v1082 = vunpack.c.h.b16 %v264
    %v1083 = vunpack.c.l.b16 %v265
    %v1084 = vunpack.c.h.b16 %v265
    %v1085 = vunpack.c.l.b16 %v266
    %v1086 = vunpack.c.h.b16 %v266
    %v1087 = vunpack.c.l.b16 %v267
    %v1088 = vunpack.c.h.b16 %v267
    %v1089 = vunpack.c.l.b16 %v268
    %v1090 = vunpack.c.h.b16 %v268
    %v1091 = vunpack.c.l.b16 %v269
    %v1092 = vunpack.c.h.b16 %v269
    %v1093 = vunpack.c.l.b16 %v270
    %v1094 = vunpack.c.h.b16 %v270
    %v1095 = vunpack.c.l.b16 %v271
    %v1096 = vunpack.c.h.b16 %v271
    %v1097 = vunpack.c.l.b16 %v272
    %v1098 = vunpack.c.h.b16 %v272
    %v1099 = vunpack.c.l.b16 %v273
    %v1100 = vunpack.c.h.b16 %v273
    %v1101 = vunpack.c.l.b16 %v274
    %v1102 = vunpack.c.h.b16 %v274
    %v1103 = vunpack.c.l.b16 %v275
    %v1104 = vunpack.c.h.b16 %v275
    %v1105 = vunpack.c.l.b16 %v276
    %v1106 = vunpack.c.h.b16 %v276
    %v1107 = vunpack.c.l.b16 %v277
    %v1108 = vunpack.c.h.b16 %v277
    %v1109 = vunpack.c.l.b16 %v278
    %v1110 = vunpack.c.h.b16 %v278
    %v1111 = vunpack.c.l.b16 %v279
    %v1112 = vunpack.c.h.b16 %v279
    %v1113 = vunpack.c.l.b16 %v280
    %v1114 = vunpack.c.h.b16 %v280
    %v1115 = vunpack.c.l.b16 %v281
    %v1116 = vunpack.c.h.b16 %v281
    %v1117 = vunpack.c.l.b16 %v282
    %v1118 = vunpack.c.h.b16 %v282
    %v1119 = vunpack.c.l.b16 %v283
    %v1120 = vunpack.c.h.b16 %v283
    %v1121 = vunpack.c.l.b16 %v284
    %v1122 = vunpack.c.h.b16 %v284
    %v1123 = vunpack.c.l.b16 %v285
    %v1124 = vunpack.c.h.b16 %v285
    %v1125 = vunpack.c.l.b16 %v286
    %v1126 = vunpack.c.h.b16 %v286
    %v1127 = vunpack.c.l.b16 %v287
    %v1128 = vunpack.c.h.b16 %v287
    %v1129 = vunpack.c.l.b16 %v288
    %v1130 = vunpack.c.h.b16 %v288
    %v1131 = vunpack.c.l.b16 %v289
    %v1132 = vunpack.c.h.b16 %v289
    %v1133 = vunpack.c.l.b16 %v290
    %v1134 = vunpack.c.h.b16 %v290
    %v1135 = vunpack.c.l.b16 %v291
    %v1136 = vunpack.c.h.b16 %v291
    %v1137 = vunpack.c.l.b16 %v292
    %v1138 = vunpack.c.h.b16 %v292
    %v1139 = vunpack.c.l.b16 %v293
    %v1140 = vunpack.c.h.b16 %v293
    %v1141 = vunpack.c.l.b16 %v294
    %v1142 = vunpack.c.h.b16 %v294
    %v1143 = vunpack.c.l.b16 %v295
    %v1144 = vunpack.c.h.b16 %v295
    %v1145 = vunpack.c.l.b16 %v296
    %v1146 = vunpack.c.h.b16 %v296
    %v1147 = vunpack.c.l.b16 %v297
    %v1148 = vunpack.c.h.b16 %v297
    %v1149 = vunpack.c.l.b16 %v298
    %v1150 = vunpack.c.h.b16 %v298
    %v1151 = vunpack.c.l.b16 %v299
    %v1152 = vunpack.c.h.b16 %v299
    %v1153 = vunpack.c.l.b16 %v300
    %v1154 = vunpack.c.h.b16 %v300
    %v1155 = vunpack.c.l.b16 %v301
    %v1156 = vunpack.c.h.b16 %v301
    %v1157 = vunpack.c.l.b16 %v302
    %v1158 = vunpack.c.h.b16 %v302
    %v1159 = vunpack.c.l.b16 %v303
    %v1160 = vunpack.c.h.b16 %v303
    %v1161 = vunpack.c.l.b16 %v304
    %v1162 = vunpack.c.h.b16 %v304
    %v1163 = vunpack.c.l.b16 %v305
    %v1164 = vunpack.c.h.b16 %v305
    %v1165 = vunpack.c.l.b16 %v306
    %v1166 = vunpack.c.h.b16 %v306
    %v1167 = vunpack.c.l.b16 %v307
    %v1168 = vunpack.c.h.b16 %v307
    %v1169 = vunpack.c.l.b16 %v308
    %v1170 = vunpack.c.h.b16 %v308
    %v1171 = vunpack.c.l.b16 %v309
    %v1172 = vunpack.c.h.b16 %v309
    %v1173 = vunpack.c.l.b16 %v310
    %v1174 = vunpack.c.h.b16 %v310
    %v1175 = vunpack.c.l.b16 %v311
    %v1176 = vunpack.c.h.b16 %v311
    %v1177 = vunpack.c.l.b16 %v312
    %v1178 = vunpack.c.h.b16 %v312
    %v1179 = vunpack.c.l.b16 %v313
    %v1180 = vunpack.c.h.b16 %v313
    %v1181 = vunpack.c.l.b16 %v314
    %v1182 = vunpack.c.h.b16 %v314
    %v1183 = vunpack.c.l.b16 %v315
    %v1184 = vunpack.c.h.b16 %v315
    %v1185 = vunpack.c.l.b16 %v316
    %v1186 = vunpack.c.h.b16 %v316
    %v1187 = vunpack.c.l.b16 %v317
    %v1188 = vunpack.c.h.b16 %v317
    %v1189 = vunpack.c.l.b16 %v318
    %v1190 = vunpack.c.h.b16 %v318
    %v1191 = vunpack.c.l.b16 %v319
    %v1192 = vunpack.c.h.b16 %v319
    %v1193 = vunpack.c.l.b16 %v320
    %v1194 = vunpack.c.h.b16 %v320
    %v1195 = vunpack.c.l.b16 %v321
    %v1196 = vunpack.c.h.b16 %v321
    %v1197 = vunpack.c.l.b16 %v322
    %v1198 = vunpack.c.h.b16 %v322
    %v1199 = vunpack.c.l.b16 %v323
    %v1200 = vunpack.c.h.b16 %v323
    %v1201 = vunpack.c.l.b16 %v324
    %v1202 = vunpack.c.h.b16 %v324
    %v1203 = vunpack.c.l.b16 %v325
    %v1204 = vunpack.c.h.b16 %v325
    %v1205 = vunpack.c.l.b16 %v326
    %v1206 = vunpack.c.h.b16 %v326
    %v1207 = vunpack.c.l.b16 %v327
    %v1208 = vunpack.c.h.b16 %v327
    %v1209 = vunpack.c.l.b16 %v328
    %v1210 = vunpack.c.h.b16 %v328
    %v1211 = vunpack.c.l.b16 %v329
    %v1212 = vunpack.c.h.b16 %v329
    %v1213 = vunpack.c.l.b16 %v330
    %v1214 = vunpack.c.h.b16 %v330
    %v1215 = vunpack.c.l.b16 %v331
    %v1216 = vunpack.c.h.b16 %v331
    %v1217 = vunpack.c.l.b16 %v332
    %v1218 = vunpack.c.h.b16 %v332
    %v1219 = vunpack.c.l.b16 %v333
    %v1220 = vunpack.c.h.b16 %v333
    %v1221 = vunpack.c.l.b16 %v334
    %v1222 = vunpack.c.h.b16 %v334
    %v1223 = vunpack.c.l.b16 %v335
    %v1224 = vunpack.c.h.b16 %v335
    %v1225 = vunpack.c.l.b16 %v336
    %v1226 = vunpack.c.h.b16 %v336
    %v1227 = vunpack.c.l.b16 %v337
    %v1228 = vunpack.c.h.b16 %v337
    %v1229 = vunpack.c.l.b16 %v338
    %v1230 = vunpack.c.h.b16 %v338
    %v1231 = vunpack.c.l.b16 %v339
    %v1232 = vunpack.c.h.b16 %v339
    %v1233 = vunpack.c.l.b16 %v340
    %v1234 = vunpack.c.h.b16 %v340
    %v1235 = vunpack.c.l.b16 %v341
    %v1236 = vunpack.c.h.b16 %v341
    %v1237 = vunpack.c.l.b16 %v342
    %v1238 = vunpack.c.h.b16 %v342
    %v1239 = vunpack.c.l.b16 %v343
    %v1240 = vunpack.c.h.b16 %v343
    %v1241 = vunpack.c.l.b16 %v344
    %v1242 = vunpack.c.h.b16 %v344
    %v1243 = vunpack.c.l.b16 %v345
    %v1244 = vunpack.c.h.b16 %v345
    %v1245 = vunpack.c.l.b16 %v346
    %v1246 = vunpack.c.h.b16 %v346
    %v1247 = vunpack.c.l.b16 %v347
    %v1248 = vunpack.c.h.b16 %v347
    %v1249 = vunpack.c.l.b16 %v348
    %v1250 = vunpack.c.h.b16 %v348
    %v1251 = vunpack.c.l.b16 %v349
    %v1252 = vunpack.c.h.b16 %v349
    %v1253 = vunpack.c.l.b16 %v350
    %v1254 = vunpack.c.h.b16 %v350
    %v1255 = vunpack.c.l.b16 %v351
    %v1256 = vunpack.c.h.b16 %v351
    %v1257 = vunpack.c.l.b16 %v352
    %v1258 = vunpack.c.h.b16 %v352
    %v1259 = vunpack.c.l.b16 %v353
    %v1260 = vunpack.c.h.b16 %v353
    %v1261 = vunpack.c.l.b16 %v354
    %v1262 = vunpack.c.h.b16 %v354
    %v1263 = vunpack.c.l.b16 %v355
    %v1264 = vunpack.c.h.b16 %v355
    %v1265 = vunpack.c.l.b16 %v356
    %v1266 = vunpack.c.h.b16 %v356
    %v1267 = vunpack.c.l.b16 %v357
    %v1268 = vunpack.c.h.b16 %v357
    %v1269 = vunpack.c.l.b16 %v358
    %v1270 = vunpack.c.h.b16 %v358
    %v1271 = vunpack.c.l.b16 %v359
    %v1272 = vunpack.c.h.b16 %v359
    %v1273 = vunpack.c.l.b16 %v360
    %v1274 = vunpack.c.h.b16 %v360
    %v1275 = vunpack.c.l.b16 %v361
    %v1276 = vunpack.c.h.b16 %v361
    %v1277 = vunpack.c.l.b16 %v362
    %v1278 = vunpack.c.h.b16 %v362
    %v1279 = vunpack.c.l.b16 %v363
    %v1280 = vunpack.c.h.b16 %v363
    %v1281 = vunpack.c.l.b16 %v364
    %v1282 = vunpack.c.h.b16 %v364
    %v1283 = vpack.c.b16 %v1061, %v1059
    %v1284 = vpack.c.b16 %v1062, %v1060
    %v1285 = vpack.c.b16 %v1065, %v1063
    %v1286 = vpack.c.b16 %v1066, %v1064
    %v1287 = vpack.c.b16 %v1069, %v1067
    %v1288 = vpack.c.b16 %v1070, %v1068
    %v1289 = vpack.c.b16 %v1073, %v1071
    %v1290 = vpack.c.b16 %v1074, %v1072
    %v1291 = vpack.c.b16 %v1077, %v1075
    %v1292 = vpack.c.b16 %v1078, %v1076
    %v1293 = vpack.c.b16 %v1081, %v1079
    %v1294 = vpack.c.b16 %v1082, %v1080
    %v1295 = vpack.c.b16 %v1085, %v1083
    %v1296 = vpack.c.b16 %v1086, %v1084
    %v1297 = vpack.c.b16 %v1089, %v1087
    %v1298 = vpack.c.b16 %v1090, %v1088
    %v1299 = vpack.c.b16 %v1093, %v1091
    %v1300 = vpack.c.b16 %v1094, %v1092
    %v1301 = vpack.c.b16 %v1097, %v1095
    %v1302 = vpack.c.b16 %v1098, %v1096
    %v1303 = vpack.c.b16 %v1101, %v1099
    %v1304 = vpack.c.b16 %v1102, %v1100
    %v1305 = vpack.c.b16 %v1105, %v1103
    %v1306 = vpack.c.b16 %v1106, %v1104
    %v1307 = vpack.c.b16 %v1109, %v1107
    %v1308 = vpack.c.b16 %v1110, %v1108
    %v1309 = vpack.c.b16 %v1113, %v1111
    %v1310 = vpack.c.b16 %v1114, %v1112
    %v1311 = vpack.c.b16 %v1117, %v1115
    %v1312 = vpack.c.b16 %v1118, %v1116
    %v1313 = vpack.c.b16 %v1121, %v1119
    %v1314 = vpack.c.b16 %v1122, %v1120
    %v1315 = vpack.c.b16 %v1125, %v1123
    %v1316 = vpack.c.b16 %v1126, %v1124
    %v1317 = vpack.c.b16 %v1129, %v1127
    %v1318 = vpack.c.b16 %v1130, %v1128
    %v1319 = vpack.c.b16 %v1133, %v1131
    %v1320 = vpack.c.b16 %v1134, %v1132
    %v1321 = vpack.c.b16 %v1137, %v1135
    %v1322 = vpack.c.b16 %v1138, %v1136
    %v1323 = vpack.c.b16 %v1141, %v1139
    %v1324 = vpack.c.b16 %v1142, %v1140
    %v1325 = vpack.c.b16 %v1145, %v1143
    %v1326 = vpack.c.b16 %v1146, %v1144
    %v1327 = vpack.c.b16 %v1149, %v1147
    %v1328 = vpack.c.b16 %v1150, %v1148
    %v1329 = vpack.c.b16 %v1153, %v1151
    %v1330 = vpack.c.b16 %v1154, %v1152
    %v1331 = vpack.c.b16 %v1157, %v1155
    %v1332 = vpack.c.b16 %v1158, %v1156
    %v1333 = vpack.c.b16 %v1161, %v1159
    %v1334 = vpack.c.b16 %v1162, %v1160
    %v1335 = vpack.c.b16 %v1165, %v1163
    %v1336 = vpack.c.b16 %v1166, %v1164
    %v1337 = vpack.c.b16 %v1169, %v1167
    %v1338 = vpack.c.b16 %v1170, %v1168
    %v1339 = vpack.c.b16 %v1173, %v1171
    %v1340 = vpack.c.b16 %v1174, %v1172
    %v1341 = vpack.c.b16 %v1177, %v1175
    %v1342 = vpack.c.b16 %v1178, %v1176
    %v1343 = vpack.c.b16 %v1181, %v1179
    %v1344 = vpack.c.b16 %v1182, %v1180
    %v1345 = vpack.c.b16 %v1185, %v1183
    %v1346 = vpack.c.b16 %v1186, %v1184
    %v1347 = vpack.c.b16 %v1189, %v1187
    %v1348 = vpack.c.b16 %v1190, %v1188
    %v1349 = vpack.c.b16 %v1193, %v1191
    %v1350 = vpack.c.b16 %v1194, %v1192
    %v1351 = vpack.c.b16 %v1197, %v1195
    %v1352 = vpack.c.b16 %v1198, %v1196
    %v1353 = vpack.c.b16 %v1201, %v1199
    %v1354 = vpack.c.b16 %v1202, %v1200
    %v1355 = vpack.c.b16 %v1205, %v1203
    %v1356 = vpack.c.b16 %v1206, %v1204
    %v1357 = vpack.c.b16 %v1209, %v1207
    %v1358 = vpack.c.b16 %v1210, %v1208
    %v1359 = vpack.c.b16 %v1213, %v1211
    %v1360 = vpack.c.b16 %v1214, %v1212
    %v1361 = vpack.c.b16 %v1217, %v1215
    %v1362 = vpack.c.b16 %v1218, %v1216
    %v1363 = vpack.c.b16 %v1221, %v1219
    %v1364 = vpack.c.b16 %v1222, %v1220
    %v1365 = vpack.c.b16 %v1225, %v1223
    %v1366 = vpack.c.b16 %v1226, %v1224
    %v1367 = vpack.c.b16 %v1229, %v1227
    %v1368 = vpack.c.b16 %v1230, %v1228
    %v1369 = vpack.c.b16 %v1233, %v1231
    %v1370 = vpack.c.b16 %v1234, %v1232
    %v1371 = vpack.c.b16 %v1237, %v1235
    %v1372 = vpack.c.b16 %v1238, %v1236
    %v1373 = vpack.c.b16 %v1241, %v1239
    %v1374 = vpack.c.b16 %v1242, %v1240
    %v1375 = vpack.c.b16 %v1245, %v1243
    %v1376 = vpack.c.b16 %v1246, %v1244
    %v1377 = vpack.c.b16 %v1249, %v1247
    %v1378 = vpack.c.b16 %v1250, %v1248
    %v1379 = vpack.c.b16 %v1253, %v1251
    %v1380 = vpack.c.b16 %v1254, %v1252
    %v1381 = vpack.c.b16 %v1257, %v1255
    %v1382 = vpack.c.b16 %v1258, %v1256
    %v1383 = vpack.c.b16 %v1261, %v1259
    %v1384 = vpack.c.b16 %v1262, %v1260
    %v1385 = vpack.c.b16 %v1265, %v1263
    %v1386 = vpack.c.b16 %v1266, %v1264
    %v1387 = vpack.c.b16 %v1269, %v1267
    %v1388 = vpack.c.b16 %v1270, %v1268
    %v1389 = vpack.c.b16 %v1273, %v1271
    %v1390 = vpack.c.b16 %v1274, %v1272
    %v1391 = vpack.c.b16 %v1277, %v1275
    %v1392 = vpack.c.b16 %v1278, %v1276
    %v1393 = vpack.c.b16 %v1281, %v1279
    %v1394 = vpack.c.b16 %v1282, %v1280
    %1507 = vmatpush.bf16.msra.mxu0 %v1297
    %1508 = vmatpush.bf16.msra.mxu0 %v1295
    %1509 = vmatpush.bf16.msra.mxu0 %v1293
    %1510 = vmatpush.bf16.msra.mxu0 %v1291
    %1511 = vmatpush.bf16.msra.mxu0 %v1289
    %1512 = vmatpush.bf16.msra.mxu0 %v1287
    %1513 = vmatpush.bf16.msra.mxu0 %v1285
    %1514 = vmatpush.bf16.msra.mxu0 %v1283
    %1515 = vmatmul.bf16.gmra.mxu0 %v723
    %v1516 = vpop.f32.mrf.mxu0
    %v1517 = vadd.f32 %v367, %v1516
    %v1518 = vpop.f32.mrf.mxu0
    %v1519 = vadd.f32 %v367, %v1518
    %1520 = vmatmul.bf16.gmra.mxu0 %v730
    %v1521 = vpop.f32.mrf.mxu0
    %v1522 = vadd.f32 %v367, %v1521
    %v1523 = vpop.f32.mrf.mxu0
    %v1524 = vadd.f32 %v367, %v1523
    %1525 = vmatmul.bf16.gmra.mxu0 %v737
    %v1526 = vpop.f32.mrf.mxu0
    %v1527 = vadd.f32 %v367, %v1526
    %v1528 = vpop.f32.mrf.mxu0
    %v1529 = vadd.f32 %v367, %v1528
    %1530 = vmatmul.bf16.gmra.mxu0 %v744
    %v1531 = vpop.f32.mrf.mxu0
    %v1532 = vadd.f32 %v367, %v1531
    %v1533 = vpop.f32.mrf.mxu0
    %v1534 = vadd.f32 %v367, %v1533
    %1535 = vmatmul.bf16.gmra.mxu0 %v751
    %v1536 = vpop.f32.mrf.mxu0
    %v1537 = vadd.f32 %v367, %v1536
    %v1538 = vpop.f32.mrf.mxu0
    %v1539 = vadd.f32 %v367, %v1538
    %1540 = vmatmul.bf16.gmra.mxu0 %v758
    %v1541 = vpop.f32.mrf.mxu0
    %v1542 = vadd.f32 %v367, %v1541
    %v1543 = vpop.f32.mrf.mxu0
    %v1544 = vadd.f32 %v367, %v1543
    %1545 = vmatmul.bf16.gmra.mxu0 %v765
    %v1546 = vpop.f32.mrf.mxu0
    %v1547 = vadd.f32 %v367, %v1546
    %v1548 = vpop.f32.mrf.mxu0
    %v1549 = vadd.f32 %v367, %v1548
    %1550 = vmatmul.bf16.gmra.mxu0 %v772
    %v1551 = vpop.f32.mrf.mxu0
    %v1552 = vadd.f32 %v367, %v1551
    %v1553 = vpop.f32.mrf.mxu0
    %v1554 = vadd.f32 %v367, %v1553
    %1555 = vmatmul.bf16.gmra.mxu0 %v779
    %v1556 = vpop.f32.mrf.mxu0
    %v1557 = vadd.f32 %v367, %v1556
    %v1558 = vpop.f32.mrf.mxu0
    %v1559 = vadd.f32 %v367, %v1558
    %1560 = vmatmul.bf16.gmra.mxu0 %v786
    %v1561 = vpop.f32.mrf.mxu0
    %v1562 = vadd.f32 %v367, %v1561
    %v1563 = vpop.f32.mrf.mxu0
    %v1564 = vadd.f32 %v367, %v1563
    %1565 = vmatmul.bf16.gmra.mxu0 %v793
    %v1566 = vpop.f32.mrf.mxu0
    %v1567 = vadd.f32 %v367, %v1566
    %v1568 = vpop.f32.mrf.mxu0
    %v1569 = vadd.f32 %v367, %v1568
    %1570 = vmatmul.bf16.gmra.mxu0 %v800
    %v1571 = vpop.f32.mrf.mxu0
    %v1572 = vadd.f32 %v367, %v1571
    %v1573 = vpop.f32.mrf.mxu0
    %v1574 = vadd.f32 %v367, %v1573
    %1575 = vmatmul.bf16.gmra.mxu0 %v807
    %v1576 = vpop.f32.mrf.mxu0
    %v1577 = vadd.f32 %v367, %v1576
    %v1578 = vpop.f32.mrf.mxu0
    %v1579 = vadd.f32 %v367, %v1578
    %1580 = vmatmul.bf16.gmra.mxu0 %v814
    %v1581 = vpop.f32.mrf.mxu0
    %v1582 = vadd.f32 %v367, %v1581
    %v1583 = vpop.f32.mrf.mxu0
    %v1584 = vadd.f32 %v367, %v1583
    %1585 = vmatmul.bf16.gmra.mxu0 %v821
    %v1586 = vpop.f32.mrf.mxu0
    %v1587 = vadd.f32 %v367, %v1586
    %v1588 = vpop.f32.mrf.mxu0
    %v1589 = vadd.f32 %v367, %v1588
    %1590 = vmatmul.bf16.gmra.mxu0 %v828
    %v1591 = vpop.f32.mrf.mxu0
    %v1592 = vadd.f32 %v367, %v1591
    %v1593 = vpop.f32.mrf.mxu0
    %v1594 = vadd.f32 %v367, %v1593
    %1595 = vdwg.mxu0
    %1596 = vmatpush.bf16.msra.mxu0 %v1313
    %1597 = vmatpush.bf16.msra.mxu0 %v1311
    %1598 = vmatpush.bf16.msra.mxu0 %v1309
    %1599 = vmatpush.bf16.msra.mxu0 %v1307
    %1600 = vmatpush.bf16.msra.mxu0 %v1305
    %1601 = vmatpush.bf16.msra.mxu0 %v1303
    %1602 = vmatpush.bf16.msra.mxu0 %v1301
    %1603 = vmatpush.bf16.msra.mxu0 %v1299
    %1604 = vmatmul.bf16.gmra.mxu0 %v724
    %v1605 = vpop.f32.mrf.mxu0
    %v1606 = vadd.f32 %v1517, %v1605
    %v1607 = vpop.f32.mrf.mxu0
    %v1608 = vadd.f32 %v1519, %v1607
    %1609 = vmatmul.bf16.gmra.mxu0 %v731
    %v1610 = vpop.f32.mrf.mxu0
    %v1611 = vadd.f32 %v1522, %v1610
    %v1612 = vpop.f32.mrf.mxu0
    %v1613 = vadd.f32 %v1524, %v1612
    %1614 = vmatmul.bf16.gmra.mxu0 %v738
    %v1615 = vpop.f32.mrf.mxu0
    %v1616 = vadd.f32 %v1527, %v1615
    %v1617 = vpop.f32.mrf.mxu0
    %v1618 = vadd.f32 %v1529, %v1617
    %1619 = vmatmul.bf16.gmra.mxu0 %v745
    %v1620 = vpop.f32.mrf.mxu0
    %v1621 = vadd.f32 %v1532, %v1620
    %v1622 = vpop.f32.mrf.mxu0
    %v1623 = vadd.f32 %v1534, %v1622
    %1624 = vmatmul.bf16.gmra.mxu0 %v752
    %v1625 = vpop.f32.mrf.mxu0
    %v1626 = vadd.f32 %v1537, %v1625
    %v1627 = vpop.f32.mrf.mxu0
    %v1628 = vadd.f32 %v1539, %v1627
    %1629 = vmatmul.bf16.gmra.mxu0 %v759
    %v1630 = vpop.f32.mrf.mxu0
    %v1631 = vadd.f32 %v1542, %v1630
    %v1632 = vpop.f32.mrf.mxu0
    %v1633 = vadd.f32 %v1544, %v1632
    %1634 = vmatmul.bf16.gmra.mxu0 %v766
    %v1635 = vpop.f32.mrf.mxu0
    %v1636 = vadd.f32 %v1547, %v1635
    %v1637 = vpop.f32.mrf.mxu0
    %v1638 = vadd.f32 %v1549, %v1637
    %1639 = vmatmul.bf16.gmra.mxu0 %v773
    %v1640 = vpop.f32.mrf.mxu0
    %v1641 = vadd.f32 %v1552, %v1640
    %v1642 = vpop.f32.mrf.mxu0
    %v1643 = vadd.f32 %v1554, %v1642
    %1644 = vmatmul.bf16.gmra.mxu0 %v780
    %v1645 = vpop.f32.mrf.mxu0
    %v1646 = vadd.f32 %v1557, %v1645
    %v1647 = vpop.f32.mrf.mxu0
    %v1648 = vadd.f32 %v1559, %v1647
    %1649 = vmatmul.bf16.gmra.mxu0 %v787
    %v1650 = vpop.f32.mrf.mxu0
    %v1651 = vadd.f32 %v1562, %v1650
    %v1652 = vpop.f32.mrf.mxu0
    %v1653 = vadd.f32 %v1564, %v1652
    %1654 = vmatmul.bf16.gmra.mxu0 %v794
    %v1655 = vpop.f32.mrf.mxu0
    %v1656 = vadd.f32 %v1567, %v1655
    %v1657 = vpop.f32.mrf.mxu0
    %v1658 = vadd.f32 %v1569, %v1657
    %1659 = vmatmul.bf16.gmra.mxu0 %v801
    %v1660 = vpop.f32.mrf.mxu0
    %v1661 = vadd.f32 %v1572, %v1660
    %v1662 = vpop.f32.mrf.mxu0
    %v1663 = vadd.f32 %v1574, %v1662
    %1664 = vmatmul.bf16.gmra.mxu0 %v808
    %v1665 = vpop.f32.mrf.mxu0
    %v1666 = vadd.f32 %v1577, %v1665
    %v1667 = vpop.f32.mrf.mxu0
    %v1668 = vadd.f32 %v1579, %v1667
    %1669 = vmatmul.bf16.gmra.mxu0 %v815
    %v1670 = vpop.f32.mrf.mxu0
    %v1671 = vadd.f32 %v1582, %v1670
    %v1672 = vpop.f32.mrf.mxu0
    %v1673 = vadd.f32 %v1584, %v1672
    %1674 = vmatmul.bf16.gmra.mxu0 %v822
    %v1675 = vpop.f32.mrf.mxu0
    %v1676 = vadd.f32 %v1587, %v1675
    %v1677 = vpop.f32.mrf.mxu0
    %v1678 = vadd.f32 %v1589, %v1677
    %1679 = vmatmul.bf16.gmra.mxu0 %v829
    %v1680 = vpop.f32.mrf.mxu0
    %v1681 = vadd.f32 %v1592, %v1680
    %v1682 = vpop.f32.mrf.mxu0
    %v1683 = vadd.f32 %v1594, %v1682
    %1684 = vdwg.mxu0
    %1685 = vmatpush.bf16.msra.mxu0 %v1329
    %1686 = vmatpush.bf16.msra.mxu0 %v1327
    %1687 = vmatpush.bf16.msra.mxu0 %v1325
    %1688 = vmatpush.bf16.msra.mxu0 %v1323
    %1689 = vmatpush.bf16.msra.mxu0 %v1321
    %1690 = vmatpush.bf16.msra.mxu0 %v1319
    %1691 = vmatpush.bf16.msra.mxu0 %v1317
    %1692 = vmatpush.bf16.msra.mxu0 %v1315
    %1693 = vmatmul.bf16.gmra.mxu0 %v725
    %v1694 = vpop.f32.mrf.mxu0
    %v1695 = vadd.f32 %v1606, %v1694
    %v1696 = vpop.f32.mrf.mxu0
    %v1697 = vadd.f32 %v1608, %v1696
    %1698 = vmatmul.bf16.gmra.mxu0 %v732
    %v1699 = vpop.f32.mrf.mxu0
    %v1700 = vadd.f32 %v1611, %v1699
    %v1701 = vpop.f32.mrf.mxu0
    %v1702 = vadd.f32 %v1613, %v1701
    %1703 = vmatmul.bf16.gmra.mxu0 %v739
    %v1704 = vpop.f32.mrf.mxu0
    %v1705 = vadd.f32 %v1616, %v1704
    %v1706 = vpop.f32.mrf.mxu0
    %v1707 = vadd.f32 %v1618, %v1706
    %1708 = vmatmul.bf16.gmra.mxu0 %v746
    %v1709 = vpop.f32.mrf.mxu0
    %v1710 = vadd.f32 %v1621, %v1709
    %v1711 = vpop.f32.mrf.mxu0
    %v1712 = vadd.f32 %v1623, %v1711
    %1713 = vmatmul.bf16.gmra.mxu0 %v753
    %v1714 = vpop.f32.mrf.mxu0
    %v1715 = vadd.f32 %v1626, %v1714
    %v1716 = vpop.f32.mrf.mxu0
    %v1717 = vadd.f32 %v1628, %v1716
    %1718 = vmatmul.bf16.gmra.mxu0 %v760
    %v1719 = vpop.f32.mrf.mxu0
    %v1720 = vadd.f32 %v1631, %v1719
    %v1721 = vpop.f32.mrf.mxu0
    %v1722 = vadd.f32 %v1633, %v1721
    %1723 = vmatmul.bf16.gmra.mxu0 %v767
    %v1724 = vpop.f32.mrf.mxu0
    %v1725 = vadd.f32 %v1636, %v1724
    %v1726 = vpop.f32.mrf.mxu0
    %v1727 = vadd.f32 %v1638, %v1726
    %1728 = vmatmul.bf16.gmra.mxu0 %v774
    %v1729 = vpop.f32.mrf.mxu0
    %v1730 = vadd.f32 %v1641, %v1729
    %v1731 = vpop.f32.mrf.mxu0
    %v1732 = vadd.f32 %v1643, %v1731
    %1733 = vmatmul.bf16.gmra.mxu0 %v781
    %v1734 = vpop.f32.mrf.mxu0
    %v1735 = vadd.f32 %v1646, %v1734
    %v1736 = vpop.f32.mrf.mxu0
    %v1737 = vadd.f32 %v1648, %v1736
    %1738 = vmatmul.bf16.gmra.mxu0 %v788
    %v1739 = vpop.f32.mrf.mxu0
    %v1740 = vadd.f32 %v1651, %v1739
    %v1741 = vpop.f32.mrf.mxu0
    %v1742 = vadd.f32 %v1653, %v1741
    %1743 = vmatmul.bf16.gmra.mxu0 %v795
    %v1744 = vpop.f32.mrf.mxu0
    %v1745 = vadd.f32 %v1656, %v1744
    %v1746 = vpop.f32.mrf.mxu0
    %v1747 = vadd.f32 %v1658, %v1746
    %1748 = vmatmul.bf16.gmra.mxu0 %v802
    %v1749 = vpop.f32.mrf.mxu0
    %v1750 = vadd.f32 %v1661, %v1749
    %v1751 = vpop.f32.mrf.mxu0
    %v1752 = vadd.f32 %v1663, %v1751
    %1753 = vmatmul.bf16.gmra.mxu0 %v809
    %v1754 = vpop.f32.mrf.mxu0
    %v1755 = vadd.f32 %v1666, %v1754
    %v1756 = vpop.f32.mrf.mxu0
    %v1757 = vadd.f32 %v1668, %v1756
    %1758 = vmatmul.bf16.gmra.mxu0 %v816
    %v1759 = vpop.f32.mrf.mxu0
    %v1760 = vadd.f32 %v1671, %v1759
    %v1761 = vpop.f32.mrf.mxu0
    %v1762 = vadd.f32 %v1673, %v1761
    %1763 = vmatmul.bf16.gmra.mxu0 %v823
    %v1764 = vpop.f32.mrf.mxu0
    %v1765 = vadd.f32 %v1676, %v1764
    %v1766 = vpop.f32.mrf.mxu0
    %v1767 = vadd.f32 %v1678, %v1766
    %1768 = vmatmul.bf16.gmra.mxu0 %v830
    %v1769 = vpop.f32.mrf.mxu0
    %v1770 = vadd.f32 %v1681, %v1769
    %v1771 = vpop.f32.mrf.mxu0
    %v1772 = vadd.f32 %v1683, %v1771
    %1773 = vdwg.mxu0
    %1774 = vmatpush.bf16.msra.mxu0 %v1345
    %1775 = vmatpush.bf16.msra.mxu0 %v1343
    %1776 = vmatpush.bf16.msra.mxu0 %v1341
    %1777 = vmatpush.bf16.msra.mxu0 %v1339
    %1778 = vmatpush.bf16.msra.mxu0 %v1337
    %1779 = vmatpush.bf16.msra.mxu0 %v1335
    %1780 = vmatpush.bf16.msra.mxu0 %v1333
    %1781 = vmatpush.bf16.msra.mxu0 %v1331
    %1782 = vmatmul.bf16.gmra.mxu0 %v726
    %v1783 = vpop.f32.mrf.mxu0
    %v1784 = vadd.f32 %v1695, %v1783
    %v1785 = vpop.f32.mrf.mxu0
    %v1786 = vadd.f32 %v1697, %v1785
    %1787 = vmatmul.bf16.gmra.mxu0 %v733
    %v1788 = vpop.f32.mrf.mxu0
    %v1789 = vadd.f32 %v1700, %v1788
    %v1790 = vpop.f32.mrf.mxu0
    %v1791 = vadd.f32 %v1702, %v1790
    %1792 = vmatmul.bf16.gmra.mxu0 %v740
    %v1793 = vpop.f32.mrf.mxu0
    %v1794 = vadd.f32 %v1705, %v1793
    %v1795 = vpop.f32.mrf.mxu0
    %v1796 = vadd.f32 %v1707, %v1795
    %1797 = vmatmul.bf16.gmra.mxu0 %v747
    %v1798 = vpop.f32.mrf.mxu0
    %v1799 = vadd.f32 %v1710, %v1798
    %v1800 = vpop.f32.mrf.mxu0
    %v1801 = vadd.f32 %v1712, %v1800
    %1802 = vmatmul.bf16.gmra.mxu0 %v754
    %v1803 = vpop.f32.mrf.mxu0
    %v1804 = vadd.f32 %v1715, %v1803
    %v1805 = vpop.f32.mrf.mxu0
    %v1806 = vadd.f32 %v1717, %v1805
    %1807 = vmatmul.bf16.gmra.mxu0 %v761
    %v1808 = vpop.f32.mrf.mxu0
    %v1809 = vadd.f32 %v1720, %v1808
    %v1810 = vpop.f32.mrf.mxu0
    %v1811 = vadd.f32 %v1722, %v1810
    %1812 = vmatmul.bf16.gmra.mxu0 %v768
    %v1813 = vpop.f32.mrf.mxu0
    %v1814 = vadd.f32 %v1725, %v1813
    %v1815 = vpop.f32.mrf.mxu0
    %v1816 = vadd.f32 %v1727, %v1815
    %1817 = vmatmul.bf16.gmra.mxu0 %v775
    %v1818 = vpop.f32.mrf.mxu0
    %v1819 = vadd.f32 %v1730, %v1818
    %v1820 = vpop.f32.mrf.mxu0
    %v1821 = vadd.f32 %v1732, %v1820
    %1822 = vmatmul.bf16.gmra.mxu0 %v782
    %v1823 = vpop.f32.mrf.mxu0
    %v1824 = vadd.f32 %v1735, %v1823
    %v1825 = vpop.f32.mrf.mxu0
    %v1826 = vadd.f32 %v1737, %v1825
    %1827 = vmatmul.bf16.gmra.mxu0 %v789
    %v1828 = vpop.f32.mrf.mxu0
    %v1829 = vadd.f32 %v1740, %v1828
    %v1830 = vpop.f32.mrf.mxu0
    %v1831 = vadd.f32 %v1742, %v1830
    %1832 = vmatmul.bf16.gmra.mxu0 %v796
    %v1833 = vpop.f32.mrf.mxu0
    %v1834 = vadd.f32 %v1745, %v1833
    %v1835 = vpop.f32.mrf.mxu0
    %v1836 = vadd.f32 %v1747, %v1835
    %1837 = vmatmul.bf16.gmra.mxu0 %v803
    %v1838 = vpop.f32.mrf.mxu0
    %v1839 = vadd.f32 %v1750, %v1838
    %v1840 = vpop.f32.mrf.mxu0
    %v1841 = vadd.f32 %v1752, %v1840
    %1842 = vmatmul.bf16.gmra.mxu0 %v810
    %v1843 = vpop.f32.mrf.mxu0
    %v1844 = vadd.f32 %v1755, %v1843
    %v1845 = vpop.f32.mrf.mxu0
    %v1846 = vadd.f32 %v1757, %v1845
    %1847 = vmatmul.bf16.gmra.mxu0 %v817
    %v1848 = vpop.f32.mrf.mxu0
    %v1849 = vadd.f32 %v1760, %v1848
    %v1850 = vpop.f32.mrf.mxu0
    %v1851 = vadd.f32 %v1762, %v1850
    %1852 = vmatmul.bf16.gmra.mxu0 %v824
    %v1853 = vpop.f32.mrf.mxu0
    %v1854 = vadd.f32 %v1765, %v1853
    %v1855 = vpop.f32.mrf.mxu0
    %v1856 = vadd.f32 %v1767, %v1855
    %1857 = vmatmul.bf16.gmra.mxu0 %v831
    %v1858 = vpop.f32.mrf.mxu0
    %v1859 = vadd.f32 %v1770, %v1858
    %v1860 = vpop.f32.mrf.mxu0
    %v1861 = vadd.f32 %v1772, %v1860
    %1862 = vdwg.mxu0
    %1863 = vmatpush.bf16.msra.mxu0 %v1361
    %1864 = vmatpush.bf16.msra.mxu0 %v1359
    %1865 = vmatpush.bf16.msra.mxu0 %v1357
    %1866 = vmatpush.bf16.msra.mxu0 %v1355
    %1867 = vmatpush.bf16.msra.mxu0 %v1353
    %1868 = vmatpush.bf16.msra.mxu0 %v1351
    %1869 = vmatpush.bf16.msra.mxu0 %v1349
    %1870 = vmatpush.bf16.msra.mxu0 %v1347
    %1871 = vmatmul.bf16.gmra.mxu0 %v727
    %v1872 = vpop.f32.mrf.mxu0
    %v1873 = vadd.f32 %v1784, %v1872
    %v1874 = vpop.f32.mrf.mxu0
    %v1875 = vadd.f32 %v1786, %v1874
    %1876 = vmatmul.bf16.gmra.mxu0 %v734
    %v1877 = vpop.f32.mrf.mxu0
    %v1878 = vadd.f32 %v1789, %v1877
    %v1879 = vpop.f32.mrf.mxu0
    %v1880 = vadd.f32 %v1791, %v1879
    %1881 = vmatmul.bf16.gmra.mxu0 %v741
    %v1882 = vpop.f32.mrf.mxu0
    %v1883 = vadd.f32 %v1794, %v1882
    %v1884 = vpop.f32.mrf.mxu0
    %v1885 = vadd.f32 %v1796, %v1884
    %1886 = vmatmul.bf16.gmra.mxu0 %v748
    %v1887 = vpop.f32.mrf.mxu0
    %v1888 = vadd.f32 %v1799, %v1887
    %v1889 = vpop.f32.mrf.mxu0
    %v1890 = vadd.f32 %v1801, %v1889
    %1891 = vmatmul.bf16.gmra.mxu0 %v755
    %v1892 = vpop.f32.mrf.mxu0
    %v1893 = vadd.f32 %v1804, %v1892
    %v1894 = vpop.f32.mrf.mxu0
    %v1895 = vadd.f32 %v1806, %v1894
    %1896 = vmatmul.bf16.gmra.mxu0 %v762
    %v1897 = vpop.f32.mrf.mxu0
    %v1898 = vadd.f32 %v1809, %v1897
    %v1899 = vpop.f32.mrf.mxu0
    %v1900 = vadd.f32 %v1811, %v1899
    %1901 = vmatmul.bf16.gmra.mxu0 %v769
    %v1902 = vpop.f32.mrf.mxu0
    %v1903 = vadd.f32 %v1814, %v1902
    %v1904 = vpop.f32.mrf.mxu0
    %v1905 = vadd.f32 %v1816, %v1904
    %1906 = vmatmul.bf16.gmra.mxu0 %v776
    %v1907 = vpop.f32.mrf.mxu0
    %v1908 = vadd.f32 %v1819, %v1907
    %v1909 = vpop.f32.mrf.mxu0
    %v1910 = vadd.f32 %v1821, %v1909
    %1911 = vmatmul.bf16.gmra.mxu0 %v783
    %v1912 = vpop.f32.mrf.mxu0
    %v1913 = vadd.f32 %v1824, %v1912
    %v1914 = vpop.f32.mrf.mxu0
    %v1915 = vadd.f32 %v1826, %v1914
    %1916 = vmatmul.bf16.gmra.mxu0 %v790
    %v1917 = vpop.f32.mrf.mxu0
    %v1918 = vadd.f32 %v1829, %v1917
    %v1919 = vpop.f32.mrf.mxu0
    %v1920 = vadd.f32 %v1831, %v1919
    %1921 = vmatmul.bf16.gmra.mxu0 %v797
    %v1922 = vpop.f32.mrf.mxu0
    %v1923 = vadd.f32 %v1834, %v1922
    %v1924 = vpop.f32.mrf.mxu0
    %v1925 = vadd.f32 %v1836, %v1924
    %1926 = vmatmul.bf16.gmra.mxu0 %v804
    %v1927 = vpop.f32.mrf.mxu0
    %v1928 = vadd.f32 %v1839, %v1927
    %v1929 = vpop.f32.mrf.mxu0
    %v1930 = vadd.f32 %v1841, %v1929
    %1931 = vmatmul.bf16.gmra.mxu0 %v811
    %v1932 = vpop.f32.mrf.mxu0
    %v1933 = vadd.f32 %v1844, %v1932
    %v1934 = vpop.f32.mrf.mxu0
    %v1935 = vadd.f32 %v1846, %v1934
    %1936 = vmatmul.bf16.gmra.mxu0 %v818
    %v1937 = vpop.f32.mrf.mxu0
    %v1938 = vadd.f32 %v1849, %v1937
    %v1939 = vpop.f32.mrf.mxu0
    %v1940 = vadd.f32 %v1851, %v1939
    %1941 = vmatmul.bf16.gmra.mxu0 %v825
    %v1942 = vpop.f32.mrf.mxu0
    %v1943 = vadd.f32 %v1854, %v1942
    %v1944 = vpop.f32.mrf.mxu0
    %v1945 = vadd.f32 %v1856, %v1944
    %1946 = vmatmul.bf16.gmra.mxu0 %v832
    %v1947 = vpop.f32.mrf.mxu0
    %v1948 = vadd.f32 %v1859, %v1947
    %v1949 = vpop.f32.mrf.mxu0
    %v1950 = vadd.f32 %v1861, %v1949
    %1951 = vdwg.mxu0
    %1952 = vmatpush.bf16.msra.mxu0 %v1377
    %1953 = vmatpush.bf16.msra.mxu0 %v1375
    %1954 = vmatpush.bf16.msra.mxu0 %v1373
    %1955 = vmatpush.bf16.msra.mxu0 %v1371
    %1956 = vmatpush.bf16.msra.mxu0 %v1369
    %1957 = vmatpush.bf16.msra.mxu0 %v1367
    %1958 = vmatpush.bf16.msra.mxu0 %v1365
    %1959 = vmatpush.bf16.msra.mxu0 %v1363
    %1960 = vmatmul.bf16.gmra.mxu0 %v728
    %v1961 = vpop.f32.mrf.mxu0
    %v1962 = vadd.f32 %v1873, %v1961
    %v1963 = vpop.f32.mrf.mxu0
    %v1964 = vadd.f32 %v1875, %v1963
    %1965 = vmatmul.bf16.gmra.mxu0 %v735
    %v1966 = vpop.f32.mrf.mxu0
    %v1967 = vadd.f32 %v1878, %v1966
    %v1968 = vpop.f32.mrf.mxu0
    %v1969 = vadd.f32 %v1880, %v1968
    %1970 = vmatmul.bf16.gmra.mxu0 %v742
    %v1971 = vpop.f32.mrf.mxu0
    %v1972 = vadd.f32 %v1883, %v1971
    %v1973 = vpop.f32.mrf.mxu0
    %v1974 = vadd.f32 %v1885, %v1973
    %1975 = vmatmul.bf16.gmra.mxu0 %v749
    %v1976 = vpop.f32.mrf.mxu0
    %v1977 = vadd.f32 %v1888, %v1976
    %v1978 = vpop.f32.mrf.mxu0
    %v1979 = vadd.f32 %v1890, %v1978
    %1980 = vmatmul.bf16.gmra.mxu0 %v756
    %v1981 = vpop.f32.mrf.mxu0
    %v1982 = vadd.f32 %v1893, %v1981
    %v1983 = vpop.f32.mrf.mxu0
    %v1984 = vadd.f32 %v1895, %v1983
    %1985 = vmatmul.bf16.gmra.mxu0 %v763
    %v1986 = vpop.f32.mrf.mxu0
    %v1987 = vadd.f32 %v1898, %v1986
    %v1988 = vpop.f32.mrf.mxu0
    %v1989 = vadd.f32 %v1900, %v1988
    %1990 = vmatmul.bf16.gmra.mxu0 %v770
    %v1991 = vpop.f32.mrf.mxu0
    %v1992 = vadd.f32 %v1903, %v1991
    %v1993 = vpop.f32.mrf.mxu0
    %v1994 = vadd.f32 %v1905, %v1993
    %1995 = vmatmul.bf16.gmra.mxu0 %v777
    %v1996 = vpop.f32.mrf.mxu0
    %v1997 = vadd.f32 %v1908, %v1996
    %v1998 = vpop.f32.mrf.mxu0
    %v1999 = vadd.f32 %v1910, %v1998
    %2000 = vmatmul.bf16.gmra.mxu0 %v784
    %v2001 = vpop.f32.mrf.mxu0
    %v2002 = vadd.f32 %v1913, %v2001
    %v2003 = vpop.f32.mrf.mxu0
    %v2004 = vadd.f32 %v1915, %v2003
    %2005 = vmatmul.bf16.gmra.mxu0 %v791
    %v2006 = vpop.f32.mrf.mxu0
    %v2007 = vadd.f32 %v1918, %v2006
    %v2008 = vpop.f32.mrf.mxu0
    %v2009 = vadd.f32 %v1920, %v2008
    %2010 = vmatmul.bf16.gmra.mxu0 %v798
    %v2011 = vpop.f32.mrf.mxu0
    %v2012 = vadd.f32 %v1923, %v2011
    %v2013 = vpop.f32.mrf.mxu0
    %v2014 = vadd.f32 %v1925, %v2013
    %2015 = vmatmul.bf16.gmra.mxu0 %v805
    %v2016 = vpop.f32.mrf.mxu0
    %v2017 = vadd.f32 %v1928, %v2016
    %v2018 = vpop.f32.mrf.mxu0
    %v2019 = vadd.f32 %v1930, %v2018
    %2020 = vmatmul.bf16.gmra.mxu0 %v812
    %v2021 = vpop.f32.mrf.mxu0
    %v2022 = vadd.f32 %v1933, %v2021
    %v2023 = vpop.f32.mrf.mxu0
    %v2024 = vadd.f32 %v1935, %v2023
    %2025 = vmatmul.bf16.gmra.mxu0 %v819
    %v2026 = vpop.f32.mrf.mxu0
    %v2027 = vadd.f32 %v1938, %v2026
    %v2028 = vpop.f32.mrf.mxu0
    %v2029 = vadd.f32 %v1940, %v2028
    %2030 = vmatmul.bf16.gmra.mxu0 %v826
    %v2031 = vpop.f32.mrf.mxu0
    %v2032 = vadd.f32 %v1943, %v2031
    %v2033 = vpop.f32.mrf.mxu0
    %v2034 = vadd.f32 %v1945, %v2033
    %2035 = vmatmul.bf16.gmra.mxu0 %v833
    %v2036 = vpop.f32.mrf.mxu0
    %v2037 = vadd.f32 %v1948, %v2036
    %v2038 = vpop.f32.mrf.mxu0
    %v2039 = vadd.f32 %v1950, %v2038
    %2040 = vdwg.mxu0
    %2041 = vmatpush.bf16.msra.mxu0 %v1393
    %2042 = vmatpush.bf16.msra.mxu0 %v1391
    %2043 = vmatpush.bf16.msra.mxu0 %v1389
    %2044 = vmatpush.bf16.msra.mxu0 %v1387
    %2045 = vmatpush.bf16.msra.mxu0 %v1385
    %2046 = vmatpush.bf16.msra.mxu0 %v1383
    %2047 = vmatpush.bf16.msra.mxu0 %v1381
    %2048 = vmatpush.bf16.msra.mxu0 %v1379
    %2049 = vmatmul.bf16.gmra.mxu0 %v729
    %v2050 = vpop.f32.mrf.mxu0
    %v2051 = vadd.f32 %v1962, %v2050
    %v2052 = vpop.f32.mrf.mxu0
    %v2053 = vadd.f32 %v1964, %v2052
    %2054 = vmatmul.bf16.gmra.mxu0 %v736
    %v2055 = vpop.f32.mrf.mxu0
    %v2056 = vadd.f32 %v1967, %v2055
    %v2057 = vpop.f32.mrf.mxu0
    %v2058 = vadd.f32 %v1969, %v2057
    %2059 = vmatmul.bf16.gmra.mxu0 %v743
    %v2060 = vpop.f32.mrf.mxu0
    %v2061 = vadd.f32 %v1972, %v2060
    %v2062 = vpop.f32.mrf.mxu0
    %v2063 = vadd.f32 %v1974, %v2062
    %2064 = vmatmul.bf16.gmra.mxu0 %v750
    %v2065 = vpop.f32.mrf.mxu0
    %v2066 = vadd.f32 %v1977, %v2065
    %v2067 = vpop.f32.mrf.mxu0
    %v2068 = vadd.f32 %v1979, %v2067
    %2069 = vmatmul.bf16.gmra.mxu0 %v757
    %v2070 = vpop.f32.mrf.mxu0
    %v2071 = vadd.f32 %v1982, %v2070
    %v2072 = vpop.f32.mrf.mxu0
    %v2073 = vadd.f32 %v1984, %v2072
    %2074 = vmatmul.bf16.gmra.mxu0 %v764
    %v2075 = vpop.f32.mrf.mxu0
    %v2076 = vadd.f32 %v1987, %v2075
    %v2077 = vpop.f32.mrf.mxu0
    %v2078 = vadd.f32 %v1989, %v2077
    %2079 = vmatmul.bf16.gmra.mxu0 %v771
    %v2080 = vpop.f32.mrf.mxu0
    %v2081 = vadd.f32 %v1992, %v2080
    %v2082 = vpop.f32.mrf.mxu0
    %v2083 = vadd.f32 %v1994, %v2082
    %2084 = vmatmul.bf16.gmra.mxu0 %v778
    %v2085 = vpop.f32.mrf.mxu0
    %v2086 = vadd.f32 %v1997, %v2085
    %v2087 = vpop.f32.mrf.mxu0
    %v2088 = vadd.f32 %v1999, %v2087
    %2089 = vmatmul.bf16.gmra.mxu0 %v785
    %v2090 = vpop.f32.mrf.mxu0
    %v2091 = vadd.f32 %v2002, %v2090
    %v2092 = vpop.f32.mrf.mxu0
    %v2093 = vadd.f32 %v2004, %v2092
    %2094 = vmatmul.bf16.gmra.mxu0 %v792
    %v2095 = vpop.f32.mrf.mxu0
    %v2096 = vadd.f32 %v2007, %v2095
    %v2097 = vpop.f32.mrf.mxu0
    %v2098 = vadd.f32 %v2009, %v2097
    %2099 = vmatmul.bf16.gmra.mxu0 %v799
    %v2100 = vpop.f32.mrf.mxu0
    %v2101 = vadd.f32 %v2012, %v2100
    %v2102 = vpop.f32.mrf.mxu0
    %v2103 = vadd.f32 %v2014, %v2102
    %2104 = vmatmul.bf16.gmra.mxu0 %v806
    %v2105 = vpop.f32.mrf.mxu0
    %v2106 = vadd.f32 %v2017, %v2105
    %v2107 = vpop.f32.mrf.mxu0
    %v2108 = vadd.f32 %v2019, %v2107
    %2109 = vmatmul.bf16.gmra.mxu0 %v813
    %v2110 = vpop.f32.mrf.mxu0
    %v2111 = vadd.f32 %v2022, %v2110
    %v2112 = vpop.f32.mrf.mxu0
    %v2113 = vadd.f32 %v2024, %v2112
    %2114 = vmatmul.bf16.gmra.mxu0 %v820
    %v2115 = vpop.f32.mrf.mxu0
    %v2116 = vadd.f32 %v2027, %v2115
    %v2117 = vpop.f32.mrf.mxu0
    %v2118 = vadd.f32 %v2029, %v2117
    %2119 = vmatmul.bf16.gmra.mxu0 %v827
    %v2120 = vpop.f32.mrf.mxu0
    %v2121 = vadd.f32 %v2032, %v2120
    %v2122 = vpop.f32.mrf.mxu0
    %v2123 = vadd.f32 %v2034, %v2122
    %2124 = vmatmul.bf16.gmra.mxu0 %v834
    %v2125 = vpop.f32.mrf.mxu0
    %v2126 = vadd.f32 %v2037, %v2125
    %v2127 = vpop.f32.mrf.mxu0
    %v2128 = vadd.f32 %v2039, %v2127
    %2129 = vdwg.mxu0
    %2130 = vmatpush.bf16.msra.mxu0 %v1298
    %2131 = vmatpush.bf16.msra.mxu0 %v1296
    %2132 = vmatpush.bf16.msra.mxu0 %v1294
    %2133 = vmatpush.bf16.msra.mxu0 %v1292
    %2134 = vmatpush.bf16.msra.mxu0 %v1290
    %2135 = vmatpush.bf16.msra.mxu0 %v1288
    %2136 = vmatpush.bf16.msra.mxu0 %v1286
    %2137 = vmatpush.bf16.msra.mxu0 %v1284
    %2138 = vmatmul.bf16.gmra.mxu0 %v723
    %v2139 = vpop.f32.mrf.mxu0
    %v2140 = vadd.f32 %v368, %v2139
    %v2141 = vpop.f32.mrf.mxu0
    %v2142 = vadd.f32 %v368, %v2141
    %2143 = vmatmul.bf16.gmra.mxu0 %v730
    %v2144 = vpop.f32.mrf.mxu0
    %v2145 = vadd.f32 %v368, %v2144
    %v2146 = vpop.f32.mrf.mxu0
    %v2147 = vadd.f32 %v368, %v2146
    %2148 = vmatmul.bf16.gmra.mxu0 %v737
    %v2149 = vpop.f32.mrf.mxu0
    %v2150 = vadd.f32 %v368, %v2149
    %v2151 = vpop.f32.mrf.mxu0
    %v2152 = vadd.f32 %v368, %v2151
    %2153 = vmatmul.bf16.gmra.mxu0 %v744
    %v2154 = vpop.f32.mrf.mxu0
    %v2155 = vadd.f32 %v368, %v2154
    %v2156 = vpop.f32.mrf.mxu0
    %v2157 = vadd.f32 %v368, %v2156
    %2158 = vmatmul.bf16.gmra.mxu0 %v751
    %v2159 = vpop.f32.mrf.mxu0
    %v2160 = vadd.f32 %v368, %v2159
    %v2161 = vpop.f32.mrf.mxu0
    %v2162 = vadd.f32 %v368, %v2161
    %2163 = vmatmul.bf16.gmra.mxu0 %v758
    %v2164 = vpop.f32.mrf.mxu0
    %v2165 = vadd.f32 %v368, %v2164
    %v2166 = vpop.f32.mrf.mxu0
    %v2167 = vadd.f32 %v368, %v2166
    %2168 = vmatmul.bf16.gmra.mxu0 %v765
    %v2169 = vpop.f32.mrf.mxu0
    %v2170 = vadd.f32 %v368, %v2169
    %v2171 = vpop.f32.mrf.mxu0
    %v2172 = vadd.f32 %v368, %v2171
    %2173 = vmatmul.bf16.gmra.mxu0 %v772
    %v2174 = vpop.f32.mrf.mxu0
    %v2175 = vadd.f32 %v368, %v2174
    %v2176 = vpop.f32.mrf.mxu0
    %v2177 = vadd.f32 %v368, %v2176
    %2178 = vmatmul.bf16.gmra.mxu0 %v779
    %v2179 = vpop.f32.mrf.mxu0
    %v2180 = vadd.f32 %v368, %v2179
    %v2181 = vpop.f32.mrf.mxu0
    %v2182 = vadd.f32 %v368, %v2181
    %2183 = vmatmul.bf16.gmra.mxu0 %v786
    %v2184 = vpop.f32.mrf.mxu0
    %v2185 = vadd.f32 %v368, %v2184
    %v2186 = vpop.f32.mrf.mxu0
    %v2187 = vadd.f32 %v368, %v2186
    %2188 = vmatmul.bf16.gmra.mxu0 %v793
    %v2189 = vpop.f32.mrf.mxu0
    %v2190 = vadd.f32 %v368, %v2189
    %v2191 = vpop.f32.mrf.mxu0
    %v2192 = vadd.f32 %v368, %v2191
    %2193 = vmatmul.bf16.gmra.mxu0 %v800
    %v2194 = vpop.f32.mrf.mxu0
    %v2195 = vadd.f32 %v368, %v2194
    %v2196 = vpop.f32.mrf.mxu0
    %v2197 = vadd.f32 %v368, %v2196
    %2198 = vmatmul.bf16.gmra.mxu0 %v807
    %v2199 = vpop.f32.mrf.mxu0
    %v2200 = vadd.f32 %v368, %v2199
    %v2201 = vpop.f32.mrf.mxu0
    %v2202 = vadd.f32 %v368, %v2201
    %2203 = vmatmul.bf16.gmra.mxu0 %v814
    %v2204 = vpop.f32.mrf.mxu0
    %v2205 = vadd.f32 %v368, %v2204
    %v2206 = vpop.f32.mrf.mxu0
    %v2207 = vadd.f32 %v368, %v2206
    %2208 = vmatmul.bf16.gmra.mxu0 %v821
    %v2209 = vpop.f32.mrf.mxu0
    %v2210 = vadd.f32 %v368, %v2209
    %v2211 = vpop.f32.mrf.mxu0
    %v2212 = vadd.f32 %v368, %v2211
    %2213 = vmatmul.bf16.gmra.mxu0 %v828
    %v2214 = vpop.f32.mrf.mxu0
    %v2215 = vadd.f32 %v368, %v2214
    %v2216 = vpop.f32.mrf.mxu0
    %v2217 = vadd.f32 %v368, %v2216
    %2218 = vdwg.mxu0
    %2219 = vmatpush.bf16.msra.mxu0 %v1314
    %2220 = vmatpush.bf16.msra.mxu0 %v1312
    %2221 = vmatpush.bf16.msra.mxu0 %v1310
    %2222 = vmatpush.bf16.msra.mxu0 %v1308
    %2223 = vmatpush.bf16.msra.mxu0 %v1306
    %2224 = vmatpush.bf16.msra.mxu0 %v1304
    %2225 = vmatpush.bf16.msra.mxu0 %v1302
    %2226 = vmatpush.bf16.msra.mxu0 %v1300
    %2227 = vmatmul.bf16.gmra.mxu0 %v724
    %v2228 = vpop.f32.mrf.mxu0
    %v2229 = vadd.f32 %v2140, %v2228
    %v2230 = vpop.f32.mrf.mxu0
    %v2231 = vadd.f32 %v2142, %v2230
    %2232 = vmatmul.bf16.gmra.mxu0 %v731
    %v2233 = vpop.f32.mrf.mxu0
    %v2234 = vadd.f32 %v2145, %v2233
    %v2235 = vpop.f32.mrf.mxu0
    %v2236 = vadd.f32 %v2147, %v2235
    %2237 = vmatmul.bf16.gmra.mxu0 %v738
    %v2238 = vpop.f32.mrf.mxu0
    %v2239 = vadd.f32 %v2150, %v2238
    %v2240 = vpop.f32.mrf.mxu0
    %v2241 = vadd.f32 %v2152, %v2240
    %2242 = vmatmul.bf16.gmra.mxu0 %v745
    %v2243 = vpop.f32.mrf.mxu0
    %v2244 = vadd.f32 %v2155, %v2243
    %v2245 = vpop.f32.mrf.mxu0
    %v2246 = vadd.f32 %v2157, %v2245
    %2247 = vmatmul.bf16.gmra.mxu0 %v752
    %v2248 = vpop.f32.mrf.mxu0
    %v2249 = vadd.f32 %v2160, %v2248
    %v2250 = vpop.f32.mrf.mxu0
    %v2251 = vadd.f32 %v2162, %v2250
    %2252 = vmatmul.bf16.gmra.mxu0 %v759
    %v2253 = vpop.f32.mrf.mxu0
    %v2254 = vadd.f32 %v2165, %v2253
    %v2255 = vpop.f32.mrf.mxu0
    %v2256 = vadd.f32 %v2167, %v2255
    %2257 = vmatmul.bf16.gmra.mxu0 %v766
    %v2258 = vpop.f32.mrf.mxu0
    %v2259 = vadd.f32 %v2170, %v2258
    %v2260 = vpop.f32.mrf.mxu0
    %v2261 = vadd.f32 %v2172, %v2260
    %2262 = vmatmul.bf16.gmra.mxu0 %v773
    %v2263 = vpop.f32.mrf.mxu0
    %v2264 = vadd.f32 %v2175, %v2263
    %v2265 = vpop.f32.mrf.mxu0
    %v2266 = vadd.f32 %v2177, %v2265
    %2267 = vmatmul.bf16.gmra.mxu0 %v780
    %v2268 = vpop.f32.mrf.mxu0
    %v2269 = vadd.f32 %v2180, %v2268
    %v2270 = vpop.f32.mrf.mxu0
    %v2271 = vadd.f32 %v2182, %v2270
    %2272 = vmatmul.bf16.gmra.mxu0 %v787
    %v2273 = vpop.f32.mrf.mxu0
    %v2274 = vadd.f32 %v2185, %v2273
    %v2275 = vpop.f32.mrf.mxu0
    %v2276 = vadd.f32 %v2187, %v2275
    %2277 = vmatmul.bf16.gmra.mxu0 %v794
    %v2278 = vpop.f32.mrf.mxu0
    %v2279 = vadd.f32 %v2190, %v2278
    %v2280 = vpop.f32.mrf.mxu0
    %v2281 = vadd.f32 %v2192, %v2280
    %2282 = vmatmul.bf16.gmra.mxu0 %v801
    %v2283 = vpop.f32.mrf.mxu0
    %v2284 = vadd.f32 %v2195, %v2283
    %v2285 = vpop.f32.mrf.mxu0
    %v2286 = vadd.f32 %v2197, %v2285
    %2287 = vmatmul.bf16.gmra.mxu0 %v808
    %v2288 = vpop.f32.mrf.mxu0
    %v2289 = vadd.f32 %v2200, %v2288
    %v2290 = vpop.f32.mrf.mxu0
    %v2291 = vadd.f32 %v2202, %v2290
    %2292 = vmatmul.bf16.gmra.mxu0 %v815
    %v2293 = vpop.f32.mrf.mxu0
    %v2294 = vadd.f32 %v2205, %v2293
    %v2295 = vpop.f32.mrf.mxu0
    %v2296 = vadd.f32 %v2207, %v2295
    %2297 = vmatmul.bf16.gmra.mxu0 %v822
    %v2298 = vpop.f32.mrf.mxu0
    %v2299 = vadd.f32 %v2210, %v2298
    %v2300 = vpop.f32.mrf.mxu0
    %v2301 = vadd.f32 %v2212, %v2300
    %2302 = vmatmul.bf16.gmra.mxu0 %v829
    %v2303 = vpop.f32.mrf.mxu0
    %v2304 = vadd.f32 %v2215, %v2303
    %v2305 = vpop.f32.mrf.mxu0
    %v2306 = vadd.f32 %v2217, %v2305
    %2307 = vdwg.mxu0
    %2308 = vmatpush.bf16.msra.mxu0 %v1330
    %2309 = vmatpush.bf16.msra.mxu0 %v1328
    %2310 = vmatpush.bf16.msra.mxu0 %v1326
    %2311 = vmatpush.bf16.msra.mxu0 %v1324
    %2312 = vmatpush.bf16.msra.mxu0 %v1322
    %2313 = vmatpush.bf16.msra.mxu0 %v1320
    %2314 = vmatpush.bf16.msra.mxu0 %v1318
    %2315 = vmatpush.bf16.msra.mxu0 %v1316
    %2316 = vmatmul.bf16.gmra.mxu0 %v725
    %v2317 = vpop.f32.mrf.mxu0
    %v2318 = vadd.f32 %v2229, %v2317
    %v2319 = vpop.f32.mrf.mxu0
    %v2320 = vadd.f32 %v2231, %v2319
    %2321 = vmatmul.bf16.gmra.mxu0 %v732
    %v2322 = vpop.f32.mrf.mxu0
    %v2323 = vadd.f32 %v2234, %v2322
    %v2324 = vpop.f32.mrf.mxu0
    %v2325 = vadd.f32 %v2236, %v2324
    %2326 = vmatmul.bf16.gmra.mxu0 %v739
    %v2327 = vpop.f32.mrf.mxu0
    %v2328 = vadd.f32 %v2239, %v2327
    %v2329 = vpop.f32.mrf.mxu0
    %v2330 = vadd.f32 %v2241, %v2329
    %2331 = vmatmul.bf16.gmra.mxu0 %v746
    %v2332 = vpop.f32.mrf.mxu0
    %v2333 = vadd.f32 %v2244, %v2332
    %v2334 = vpop.f32.mrf.mxu0
    %v2335 = vadd.f32 %v2246, %v2334
    %2336 = vmatmul.bf16.gmra.mxu0 %v753
    %v2337 = vpop.f32.mrf.mxu0
    %v2338 = vadd.f32 %v2249, %v2337
    %v2339 = vpop.f32.mrf.mxu0
    %v2340 = vadd.f32 %v2251, %v2339
    %2341 = vmatmul.bf16.gmra.mxu0 %v760
    %v2342 = vpop.f32.mrf.mxu0
    %v2343 = vadd.f32 %v2254, %v2342
    %v2344 = vpop.f32.mrf.mxu0
    %v2345 = vadd.f32 %v2256, %v2344
    %2346 = vmatmul.bf16.gmra.mxu0 %v767
    %v2347 = vpop.f32.mrf.mxu0
    %v2348 = vadd.f32 %v2259, %v2347
    %v2349 = vpop.f32.mrf.mxu0
    %v2350 = vadd.f32 %v2261, %v2349
    %2351 = vmatmul.bf16.gmra.mxu0 %v774
    %v2352 = vpop.f32.mrf.mxu0
    %v2353 = vadd.f32 %v2264, %v2352
    %v2354 = vpop.f32.mrf.mxu0
    %v2355 = vadd.f32 %v2266, %v2354
    %2356 = vmatmul.bf16.gmra.mxu0 %v781
    %v2357 = vpop.f32.mrf.mxu0
    %v2358 = vadd.f32 %v2269, %v2357
    %v2359 = vpop.f32.mrf.mxu0
    %v2360 = vadd.f32 %v2271, %v2359
    %2361 = vmatmul.bf16.gmra.mxu0 %v788
    %v2362 = vpop.f32.mrf.mxu0
    %v2363 = vadd.f32 %v2274, %v2362
    %v2364 = vpop.f32.mrf.mxu0
    %v2365 = vadd.f32 %v2276, %v2364
    %2366 = vmatmul.bf16.gmra.mxu0 %v795
    %v2367 = vpop.f32.mrf.mxu0
    %v2368 = vadd.f32 %v2279, %v2367
    %v2369 = vpop.f32.mrf.mxu0
    %v2370 = vadd.f32 %v2281, %v2369
    %2371 = vmatmul.bf16.gmra.mxu0 %v802
    %v2372 = vpop.f32.mrf.mxu0
    %v2373 = vadd.f32 %v2284, %v2372
    %v2374 = vpop.f32.mrf.mxu0
    %v2375 = vadd.f32 %v2286, %v2374
    %2376 = vmatmul.bf16.gmra.mxu0 %v809
    %v2377 = vpop.f32.mrf.mxu0
    %v2378 = vadd.f32 %v2289, %v2377
    %v2379 = vpop.f32.mrf.mxu0
    %v2380 = vadd.f32 %v2291, %v2379
    %2381 = vmatmul.bf16.gmra.mxu0 %v816
    %v2382 = vpop.f32.mrf.mxu0
    %v2383 = vadd.f32 %v2294, %v2382
    %v2384 = vpop.f32.mrf.mxu0
    %v2385 = vadd.f32 %v2296, %v2384
    %2386 = vmatmul.bf16.gmra.mxu0 %v823
    %v2387 = vpop.f32.mrf.mxu0
    %v2388 = vadd.f32 %v2299, %v2387
    %v2389 = vpop.f32.mrf.mxu0
    %v2390 = vadd.f32 %v2301, %v2389
    %2391 = vmatmul.bf16.gmra.mxu0 %v830
    %v2392 = vpop.f32.mrf.mxu0
    %v2393 = vadd.f32 %v2304, %v2392
    %v2394 = vpop.f32.mrf.mxu0
    %v2395 = vadd.f32 %v2306, %v2394
    %2396 = vdwg.mxu0
    %2397 = vmatpush.bf16.msra.mxu0 %v1346
    %2398 = vmatpush.bf16.msra.mxu0 %v1344
    %2399 = vmatpush.bf16.msra.mxu0 %v1342
    %2400 = vmatpush.bf16.msra.mxu0 %v1340
    %2401 = vmatpush.bf16.msra.mxu0 %v1338
    %2402 = vmatpush.bf16.msra.mxu0 %v1336
    %2403 = vmatpush.bf16.msra.mxu0 %v1334
    %2404 = vmatpush.bf16.msra.mxu0 %v1332
    %2405 = vmatmul.bf16.gmra.mxu0 %v726
    %v2406 = vpop.f32.mrf.mxu0
    %v2407 = vadd.f32 %v2318, %v2406
    %v2408 = vpop.f32.mrf.mxu0
    %v2409 = vadd.f32 %v2320, %v2408
    %2410 = vmatmul.bf16.gmra.mxu0 %v733
    %v2411 = vpop.f32.mrf.mxu0
    %v2412 = vadd.f32 %v2323, %v2411
    %v2413 = vpop.f32.mrf.mxu0
    %v2414 = vadd.f32 %v2325, %v2413
    %2415 = vmatmul.bf16.gmra.mxu0 %v740
    %v2416 = vpop.f32.mrf.mxu0
    %v2417 = vadd.f32 %v2328, %v2416
    %v2418 = vpop.f32.mrf.mxu0
    %v2419 = vadd.f32 %v2330, %v2418
    %2420 = vmatmul.bf16.gmra.mxu0 %v747
    %v2421 = vpop.f32.mrf.mxu0
    %v2422 = vadd.f32 %v2333, %v2421
    %v2423 = vpop.f32.mrf.mxu0
    %v2424 = vadd.f32 %v2335, %v2423
    %2425 = vmatmul.bf16.gmra.mxu0 %v754
    %v2426 = vpop.f32.mrf.mxu0
    %v2427 = vadd.f32 %v2338, %v2426
    %v2428 = vpop.f32.mrf.mxu0
    %v2429 = vadd.f32 %v2340, %v2428
    %2430 = vmatmul.bf16.gmra.mxu0 %v761
    %v2431 = vpop.f32.mrf.mxu0
    %v2432 = vadd.f32 %v2343, %v2431
    %v2433 = vpop.f32.mrf.mxu0
    %v2434 = vadd.f32 %v2345, %v2433
    %2435 = vmatmul.bf16.gmra.mxu0 %v768
    %v2436 = vpop.f32.mrf.mxu0
    %v2437 = vadd.f32 %v2348, %v2436
    %v2438 = vpop.f32.mrf.mxu0
    %v2439 = vadd.f32 %v2350, %v2438
    %2440 = vmatmul.bf16.gmra.mxu0 %v775
    %v2441 = vpop.f32.mrf.mxu0
    %v2442 = vadd.f32 %v2353, %v2441
    %v2443 = vpop.f32.mrf.mxu0
    %v2444 = vadd.f32 %v2355, %v2443
    %2445 = vmatmul.bf16.gmra.mxu0 %v782
    %v2446 = vpop.f32.mrf.mxu0
    %v2447 = vadd.f32 %v2358, %v2446
    %v2448 = vpop.f32.mrf.mxu0
    %v2449 = vadd.f32 %v2360, %v2448
    %2450 = vmatmul.bf16.gmra.mxu0 %v789
    %v2451 = vpop.f32.mrf.mxu0
    %v2452 = vadd.f32 %v2363, %v2451
    %v2453 = vpop.f32.mrf.mxu0
    %v2454 = vadd.f32 %v2365, %v2453
    %2455 = vmatmul.bf16.gmra.mxu0 %v796
    %v2456 = vpop.f32.mrf.mxu0
    %v2457 = vadd.f32 %v2368, %v2456
    %v2458 = vpop.f32.mrf.mxu0
    %v2459 = vadd.f32 %v2370, %v2458
    %2460 = vmatmul.bf16.gmra.mxu0 %v803
    %v2461 = vpop.f32.mrf.mxu0
    %v2462 = vadd.f32 %v2373, %v2461
    %v2463 = vpop.f32.mrf.mxu0
    %v2464 = vadd.f32 %v2375, %v2463
    %2465 = vmatmul.bf16.gmra.mxu0 %v810
    %v2466 = vpop.f32.mrf.mxu0
    %v2467 = vadd.f32 %v2378, %v2466
    %v2468 = vpop.f32.mrf.mxu0
    %v2469 = vadd.f32 %v2380, %v2468
    %2470 = vmatmul.bf16.gmra.mxu0 %v817
    %v2471 = vpop.f32.mrf.mxu0
    %v2472 = vadd.f32 %v2383, %v2471
    %v2473 = vpop.f32.mrf.mxu0
    %v2474 = vadd.f32 %v2385, %v2473
    %2475 = vmatmul.bf16.gmra.mxu0 %v824
    %v2476 = vpop.f32.mrf.mxu0
    %v2477 = vadd.f32 %v2388, %v2476
    %v2478 = vpop.f32.mrf.mxu0
    %v2479 = vadd.f32 %v2390, %v2478
    %2480 = vmatmul.bf16.gmra.mxu0 %v831
    %v2481 = vpop.f32.mrf.mxu0
    %v2482 = vadd.f32 %v2393, %v2481
    %v2483 = vpop.f32.mrf.mxu0
    %v2484 = vadd.f32 %v2395, %v2483
    %2485 = vdwg.mxu0
    %2486 = vmatpush.bf16.msra.mxu0 %v1362
    %2487 = vmatpush.bf16.msra.mxu0 %v1360
    %2488 = vmatpush.bf16.msra.mxu0 %v1358
    %2489 = vmatpush.bf16.msra.mxu0 %v1356
    %2490 = vmatpush.bf16.msra.mxu0 %v1354
    %2491 = vmatpush.bf16.msra.mxu0 %v1352
    %2492 = vmatpush.bf16.msra.mxu0 %v1350
    %2493 = vmatpush.bf16.msra.mxu0 %v1348
    %2494 = vmatmul.bf16.gmra.mxu0 %v727
    %v2495 = vpop.f32.mrf.mxu0
    %v2496 = vadd.f32 %v2407, %v2495
    %v2497 = vpop.f32.mrf.mxu0
    %v2498 = vadd.f32 %v2409, %v2497
    %2499 = vmatmul.bf16.gmra.mxu0 %v734
    %v2500 = vpop.f32.mrf.mxu0
    %v2501 = vadd.f32 %v2412, %v2500
    %v2502 = vpop.f32.mrf.mxu0
    %v2503 = vadd.f32 %v2414, %v2502
    %2504 = vmatmul.bf16.gmra.mxu0 %v741
    %v2505 = vpop.f32.mrf.mxu0
    %v2506 = vadd.f32 %v2417, %v2505
    %v2507 = vpop.f32.mrf.mxu0
    %v2508 = vadd.f32 %v2419, %v2507
    %2509 = vmatmul.bf16.gmra.mxu0 %v748
    %v2510 = vpop.f32.mrf.mxu0
    %v2511 = vadd.f32 %v2422, %v2510
    %v2512 = vpop.f32.mrf.mxu0
    %v2513 = vadd.f32 %v2424, %v2512
    %2514 = vmatmul.bf16.gmra.mxu0 %v755
    %v2515 = vpop.f32.mrf.mxu0
    %v2516 = vadd.f32 %v2427, %v2515
    %v2517 = vpop.f32.mrf.mxu0
    %v2518 = vadd.f32 %v2429, %v2517
    %2519 = vmatmul.bf16.gmra.mxu0 %v762
    %v2520 = vpop.f32.mrf.mxu0
    %v2521 = vadd.f32 %v2432, %v2520
    %v2522 = vpop.f32.mrf.mxu0
    %v2523 = vadd.f32 %v2434, %v2522
    %2524 = vmatmul.bf16.gmra.mxu0 %v769
    %v2525 = vpop.f32.mrf.mxu0
    %v2526 = vadd.f32 %v2437, %v2525
    %v2527 = vpop.f32.mrf.mxu0
    %v2528 = vadd.f32 %v2439, %v2527
    %2529 = vmatmul.bf16.gmra.mxu0 %v776
    %v2530 = vpop.f32.mrf.mxu0
    %v2531 = vadd.f32 %v2442, %v2530
    %v2532 = vpop.f32.mrf.mxu0
    %v2533 = vadd.f32 %v2444, %v2532
    %2534 = vmatmul.bf16.gmra.mxu0 %v783
    %v2535 = vpop.f32.mrf.mxu0
    %v2536 = vadd.f32 %v2447, %v2535
    %v2537 = vpop.f32.mrf.mxu0
    %v2538 = vadd.f32 %v2449, %v2537
    %2539 = vmatmul.bf16.gmra.mxu0 %v790
    %v2540 = vpop.f32.mrf.mxu0
    %v2541 = vadd.f32 %v2452, %v2540
    %v2542 = vpop.f32.mrf.mxu0
    %v2543 = vadd.f32 %v2454, %v2542
    %2544 = vmatmul.bf16.gmra.mxu0 %v797
    %v2545 = vpop.f32.mrf.mxu0
    %v2546 = vadd.f32 %v2457, %v2545
    %v2547 = vpop.f32.mrf.mxu0
    %v2548 = vadd.f32 %v2459, %v2547
    %2549 = vmatmul.bf16.gmra.mxu0 %v804
    %v2550 = vpop.f32.mrf.mxu0
    %v2551 = vadd.f32 %v2462, %v2550
    %v2552 = vpop.f32.mrf.mxu0
    %v2553 = vadd.f32 %v2464, %v2552
    %2554 = vmatmul.bf16.gmra.mxu0 %v811
    %v2555 = vpop.f32.mrf.mxu0
    %v2556 = vadd.f32 %v2467, %v2555
    %v2557 = vpop.f32.mrf.mxu0
    %v2558 = vadd.f32 %v2469, %v2557
    %2559 = vmatmul.bf16.gmra.mxu0 %v818
    %v2560 = vpop.f32.mrf.mxu0
    %v2561 = vadd.f32 %v2472, %v2560
    %v2562 = vpop.f32.mrf.mxu0
    %v2563 = vadd.f32 %v2474, %v2562
    %2564 = vmatmul.bf16.gmra.mxu0 %v825
    %v2565 = vpop.f32.mrf.mxu0
    %v2566 = vadd.f32 %v2477, %v2565
    %v2567 = vpop.f32.mrf.mxu0
    %v2568 = vadd.f32 %v2479, %v2567
    %2569 = vmatmul.bf16.gmra.mxu0 %v832
    %v2570 = vpop.f32.mrf.mxu0
    %v2571 = vadd.f32 %v2482, %v2570
    %v2572 = vpop.f32.mrf.mxu0
    %v2573 = vadd.f32 %v2484, %v2572
    %2574 = vdwg.mxu0
    %2575 = vmatpush.bf16.msra.mxu0 %v1378
    %2576 = vmatpush.bf16.msra.mxu0 %v1376
    %2577 = vmatpush.bf16.msra.mxu0 %v1374
    %2578 = vmatpush.bf16.msra.mxu0 %v1372
    %2579 = vmatpush.bf16.msra.mxu0 %v1370
    %2580 = vmatpush.bf16.msra.mxu0 %v1368
    %2581 = vmatpush.bf16.msra.mxu0 %v1366
    %2582 = vmatpush.bf16.msra.mxu0 %v1364
    %2583 = vmatmul.bf16.gmra.mxu0 %v728
    %v2584 = vpop.f32.mrf.mxu0
    %v2585 = vadd.f32 %v2496, %v2584
    %v2586 = vpop.f32.mrf.mxu0
    %v2587 = vadd.f32 %v2498, %v2586
    %2588 = vmatmul.bf16.gmra.mxu0 %v735
    %v2589 = vpop.f32.mrf.mxu0
    %v2590 = vadd.f32 %v2501, %v2589
    %v2591 = vpop.f32.mrf.mxu0
    %v2592 = vadd.f32 %v2503, %v2591
    %2593 = vmatmul.bf16.gmra.mxu0 %v742
    %v2594 = vpop.f32.mrf.mxu0
    %v2595 = vadd.f32 %v2506, %v2594
    %v2596 = vpop.f32.mrf.mxu0
    %v2597 = vadd.f32 %v2508, %v2596
    %2598 = vmatmul.bf16.gmra.mxu0 %v749
    %v2599 = vpop.f32.mrf.mxu0
    %v2600 = vadd.f32 %v2511, %v2599
    %v2601 = vpop.f32.mrf.mxu0
    %v2602 = vadd.f32 %v2513, %v2601
    %2603 = vmatmul.bf16.gmra.mxu0 %v756
    %v2604 = vpop.f32.mrf.mxu0
    %v2605 = vadd.f32 %v2516, %v2604
    %v2606 = vpop.f32.mrf.mxu0
    %v2607 = vadd.f32 %v2518, %v2606
    %2608 = vmatmul.bf16.gmra.mxu0 %v763
    %v2609 = vpop.f32.mrf.mxu0
    %v2610 = vadd.f32 %v2521, %v2609
    %v2611 = vpop.f32.mrf.mxu0
    %v2612 = vadd.f32 %v2523, %v2611
    %2613 = vmatmul.bf16.gmra.mxu0 %v770
    %v2614 = vpop.f32.mrf.mxu0
    %v2615 = vadd.f32 %v2526, %v2614
    %v2616 = vpop.f32.mrf.mxu0
    %v2617 = vadd.f32 %v2528, %v2616
    %2618 = vmatmul.bf16.gmra.mxu0 %v777
    %v2619 = vpop.f32.mrf.mxu0
    %v2620 = vadd.f32 %v2531, %v2619
    %v2621 = vpop.f32.mrf.mxu0
    %v2622 = vadd.f32 %v2533, %v2621
    %2623 = vmatmul.bf16.gmra.mxu0 %v784
    %v2624 = vpop.f32.mrf.mxu0
    %v2625 = vadd.f32 %v2536, %v2624
    %v2626 = vpop.f32.mrf.mxu0
    %v2627 = vadd.f32 %v2538, %v2626
    %2628 = vmatmul.bf16.gmra.mxu0 %v791
    %v2629 = vpop.f32.mrf.mxu0
    %v2630 = vadd.f32 %v2541, %v2629
    %v2631 = vpop.f32.mrf.mxu0
    %v2632 = vadd.f32 %v2543, %v2631
    %2633 = vmatmul.bf16.gmra.mxu0 %v798
    %v2634 = vpop.f32.mrf.mxu0
    %v2635 = vadd.f32 %v2546, %v2634
    %v2636 = vpop.f32.mrf.mxu0
    %v2637 = vadd.f32 %v2548, %v2636
    %2638 = vmatmul.bf16.gmra.mxu0 %v805
    %v2639 = vpop.f32.mrf.mxu0
    %v2640 = vadd.f32 %v2551, %v2639
    %v2641 = vpop.f32.mrf.mxu0
    %v2642 = vadd.f32 %v2553, %v2641
    %2643 = vmatmul.bf16.gmra.mxu0 %v812
    %v2644 = vpop.f32.mrf.mxu0
    %v2645 = vadd.f32 %v2556, %v2644
    %v2646 = vpop.f32.mrf.mxu0
    %v2647 = vadd.f32 %v2558, %v2646
    %2648 = vmatmul.bf16.gmra.mxu0 %v819
    %v2649 = vpop.f32.mrf.mxu0
    %v2650 = vadd.f32 %v2561, %v2649
    %v2651 = vpop.f32.mrf.mxu0
    %v2652 = vadd.f32 %v2563, %v2651
    %2653 = vmatmul.bf16.gmra.mxu0 %v826
    %v2654 = vpop.f32.mrf.mxu0
    %v2655 = vadd.f32 %v2566, %v2654
    %v2656 = vpop.f32.mrf.mxu0
    %v2657 = vadd.f32 %v2568, %v2656
    %2658 = vmatmul.bf16.gmra.mxu0 %v833
    %v2659 = vpop.f32.mrf.mxu0
    %v2660 = vadd.f32 %v2571, %v2659
    %v2661 = vpop.f32.mrf.mxu0
    %v2662 = vadd.f32 %v2573, %v2661
    %2663 = vdwg.mxu0
    %2664 = vmatpush.bf16.msra.mxu0 %v1394
    %2665 = vmatpush.bf16.msra.mxu0 %v1392
    %2666 = vmatpush.bf16.msra.mxu0 %v1390
    %2667 = vmatpush.bf16.msra.mxu0 %v1388
    %2668 = vmatpush.bf16.msra.mxu0 %v1386
    %2669 = vmatpush.bf16.msra.mxu0 %v1384
    %2670 = vmatpush.bf16.msra.mxu0 %v1382
    %2671 = vmatpush.bf16.msra.mxu0 %v1380
    %2672 = vmatmul.bf16.gmra.mxu0 %v729
    %v2673 = vpop.f32.mrf.mxu0
    %v2674 = vadd.f32 %v2585, %v2673
    %v2675 = vpop.f32.mrf.mxu0
    %v2676 = vadd.f32 %v2587, %v2675
    %2677 = vmatmul.bf16.gmra.mxu0 %v736
    %v2678 = vpop.f32.mrf.mxu0
    %v2679 = vadd.f32 %v2590, %v2678
    %v2680 = vpop.f32.mrf.mxu0
    %v2681 = vadd.f32 %v2592, %v2680
    %2682 = vmatmul.bf16.gmra.mxu0 %v743
    %v2683 = vpop.f32.mrf.mxu0
    %v2684 = vadd.f32 %v2595, %v2683
    %v2685 = vpop.f32.mrf.mxu0
    %v2686 = vadd.f32 %v2597, %v2685
    %2687 = vmatmul.bf16.gmra.mxu0 %v750
    %v2688 = vpop.f32.mrf.mxu0
    %v2689 = vadd.f32 %v2600, %v2688
    %v2690 = vpop.f32.mrf.mxu0
    %v2691 = vadd.f32 %v2602, %v2690
    %2692 = vmatmul.bf16.gmra.mxu0 %v757
    %v2693 = vpop.f32.mrf.mxu0
    %v2694 = vadd.f32 %v2605, %v2693
    %v2695 = vpop.f32.mrf.mxu0
    %v2696 = vadd.f32 %v2607, %v2695
    %2697 = vmatmul.bf16.gmra.mxu0 %v764
    %v2698 = vpop.f32.mrf.mxu0
    %v2699 = vadd.f32 %v2610, %v2698
    %v2700 = vpop.f32.mrf.mxu0
    %v2701 = vadd.f32 %v2612, %v2700
    %2702 = vmatmul.bf16.gmra.mxu0 %v771
    %v2703 = vpop.f32.mrf.mxu0
    %v2704 = vadd.f32 %v2615, %v2703
    %v2705 = vpop.f32.mrf.mxu0
    %v2706 = vadd.f32 %v2617, %v2705
    %2707 = vmatmul.bf16.gmra.mxu0 %v778
    %v2708 = vpop.f32.mrf.mxu0
    %v2709 = vadd.f32 %v2620, %v2708
    %v2710 = vpop.f32.mrf.mxu0
    %v2711 = vadd.f32 %v2622, %v2710
    %2712 = vmatmul.bf16.gmra.mxu0 %v785
    %v2713 = vpop.f32.mrf.mxu0
    %v2714 = vadd.f32 %v2625, %v2713
    %v2715 = vpop.f32.mrf.mxu0
    %v2716 = vadd.f32 %v2627, %v2715
    %2717 = vmatmul.bf16.gmra.mxu0 %v792
    %v2718 = vpop.f32.mrf.mxu0
    %v2719 = vadd.f32 %v2630, %v2718
    %v2720 = vpop.f32.mrf.mxu0
    %v2721 = vadd.f32 %v2632, %v2720
    %2722 = vmatmul.bf16.gmra.mxu0 %v799
    %v2723 = vpop.f32.mrf.mxu0
    %v2724 = vadd.f32 %v2635, %v2723
    %v2725 = vpop.f32.mrf.mxu0
    %v2726 = vadd.f32 %v2637, %v2725
    %2727 = vmatmul.bf16.gmra.mxu0 %v806
    %v2728 = vpop.f32.mrf.mxu0
    %v2729 = vadd.f32 %v2640, %v2728
    %v2730 = vpop.f32.mrf.mxu0
    %v2731 = vadd.f32 %v2642, %v2730
    %2732 = vmatmul.bf16.gmra.mxu0 %v813
    %v2733 = vpop.f32.mrf.mxu0
    %v2734 = vadd.f32 %v2645, %v2733
    %v2735 = vpop.f32.mrf.mxu0
    %v2736 = vadd.f32 %v2647, %v2735
    %2737 = vmatmul.bf16.gmra.mxu0 %v820
    %v2738 = vpop.f32.mrf.mxu0
    %v2739 = vadd.f32 %v2650, %v2738
    %v2740 = vpop.f32.mrf.mxu0
    %v2741 = vadd.f32 %v2652, %v2740
    %2742 = vmatmul.bf16.gmra.mxu0 %v827
    %v2743 = vpop.f32.mrf.mxu0
    %v2744 = vadd.f32 %v2655, %v2743
    %v2745 = vpop.f32.mrf.mxu0
    %v2746 = vadd.f32 %v2657, %v2745
    %2747 = vmatmul.bf16.gmra.mxu0 %v834
    %v2748 = vpop.f32.mrf.mxu0
    %v2749 = vadd.f32 %v2660, %v2748
    %v2750 = vpop.f32.mrf.mxu0
    %v2751 = vadd.f32 %v2662, %v2750
    %2752 = vdwg.mxu0
    %v2753 = vmax.f32 %v2051, 0.0
    %v2754 = vmax.f32 %v2674, 0.0
    %v2755 = vmax.f32 %v2053, 0.0
    %v2756 = vmax.f32 %v2676, 0.0
    %v2757 = vmax.f32 %v2056, 0.0
    %v2758 = vmax.f32 %v2679, 0.0
    %v2759 = vmax.f32 %v2058, 0.0
    %v2760 = vmax.f32 %v2681, 0.0
    %v2761 = vmax.f32 %v2061, 0.0
    %v2762 = vmax.f32 %v2684, 0.0
    %v2763 = vmax.f32 %v2063, 0.0
    %v2764 = vmax.f32 %v2686, 0.0
    %v2765 = vmax.f32 %v2066, 0.0
    %v2766 = vmax.f32 %v2689, 0.0
    %v2767 = vmax.f32 %v2068, 0.0
    %v2768 = vmax.f32 %v2691, 0.0
    %v2769 = vmax.f32 %v2071, 0.0
    %v2770 = vmax.f32 %v2694, 0.0
    %v2771 = vmax.f32 %v2073, 0.0
    %v2772 = vmax.f32 %v2696, 0.0
    %v2773 = vmax.f32 %v2076, 0.0
    %v2774 = vmax.f32 %v2699, 0.0
    %v2775 = vmax.f32 %v2078, 0.0
    %v2776 = vmax.f32 %v2701, 0.0
    %v2777 = vmax.f32 %v2081, 0.0
    %v2778 = vmax.f32 %v2704, 0.0
    %v2779 = vmax.f32 %v2083, 0.0
    %v2780 = vmax.f32 %v2706, 0.0
    %v2781 = vmax.f32 %v2086, 0.0
    %v2782 = vmax.f32 %v2709, 0.0
    %v2783 = vmax.f32 %v2088, 0.0
    %v2784 = vmax.f32 %v2711, 0.0
    %v2785 = vmax.f32 %v2091, 0.0
    %v2786 = vmax.f32 %v2714, 0.0
    %v2787 = vmax.f32 %v2093, 0.0
    %v2788 = vmax.f32 %v2716, 0.0
    %v2789 = vmax.f32 %v2096, 0.0
    %v2790 = vmax.f32 %v2719, 0.0
    %v2791 = vmax.f32 %v2098, 0.0
    %v2792 = vmax.f32 %v2721, 0.0
    %v2793 = vmax.f32 %v2101, 0.0
    %v2794 = vmax.f32 %v2724, 0.0
    %v2795 = vmax.f32 %v2103, 0.0
    %v2796 = vmax.f32 %v2726, 0.0
    %v2797 = vmax.f32 %v2106, 0.0
    %v2798 = vmax.f32 %v2729, 0.0
    %v2799 = vmax.f32 %v2108, 0.0
    %v2800 = vmax.f32 %v2731, 0.0
    %v2801 = vmax.f32 %v2111, 0.0
    %v2802 = vmax.f32 %v2734, 0.0
    %v2803 = vmax.f32 %v2113, 0.0
    %v2804 = vmax.f32 %v2736, 0.0
    %v2805 = vmax.f32 %v2116, 0.0
    %v2806 = vmax.f32 %v2739, 0.0
    %v2807 = vmax.f32 %v2118, 0.0
    %v2808 = vmax.f32 %v2741, 0.0
    %v2809 = vmax.f32 %v2121, 0.0
    %v2810 = vmax.f32 %v2744, 0.0
    %v2811 = vmax.f32 %v2123, 0.0
    %v2812 = vmax.f32 %v2746, 0.0
    %v2813 = vmax.f32 %v2126, 0.0
    %v2814 = vmax.f32 %v2749, 0.0
    %v2815 = vmax.f32 %v2128, 0.0
    %v2816 = vmax.f32 %v2751, 0.0
    %v2817 = vpack.c.bf16 %v2755, %v2753
    %v2818 = vpack.c.bf16 %v2756, %v2754
    %v2819 = vpack.c.bf16 %v2759, %v2757
    %v2820 = vpack.c.bf16 %v2760, %v2758
    %v2821 = vpack.c.bf16 %v2763, %v2761
    %v2822 = vpack.c.bf16 %v2764, %v2762
    %v2823 = vpack.c.bf16 %v2767, %v2765
    %v2824 = vpack.c.bf16 %v2768, %v2766
    %v2825 = vpack.c.bf16 %v2771, %v2769
    %v2826 = vpack.c.bf16 %v2772, %v2770
    %v2827 = vpack.c.bf16 %v2775, %v2773
    %v2828 = vpack.c.bf16 %v2776, %v2774
    %v2829 = vpack.c.bf16 %v2779, %v2777
    %v2830 = vpack.c.bf16 %v2780, %v2778
    %v2831 = vpack.c.bf16 %v2783, %v2781
    %v2832 = vpack.c.bf16 %v2784, %v2782
    %v2833 = vpack.c.bf16 %v2787, %v2785
    %v2834 = vpack.c.bf16 %v2788, %v2786
    %v2835 = vpack.c.bf16 %v2791, %v2789
    %v2836 = vpack.c.bf16 %v2792, %v2790
    %v2837 = vpack.c.bf16 %v2795, %v2793
    %v2838 = vpack.c.bf16 %v2796, %v2794
    %v2839 = vpack.c.bf16 %v2799, %v2797
    %v2840 = vpack.c.bf16 %v2800, %v2798
    %v2841 = vpack.c.bf16 %v2803, %v2801
    %v2842 = vpack.c.bf16 %v2804, %v2802
    %v2843 = vpack.c.bf16 %v2807, %v2805
    %v2844 = vpack.c.bf16 %v2808, %v2806
    %v2845 = vpack.c.bf16 %v2811, %v2809
    %v2846 = vpack.c.bf16 %v2812, %v2810
    %v2847 = vpack.c.bf16 %v2815, %v2813
    %v2848 = vpack.c.bf16 %v2816, %v2814
    %v2849 = vld [vmem:[#allocation8] sm:$0xf]
    %v2850 = vld [vmem:[#allocation8 + $0x4] sm:$0xf]
    %v2851 = vld [vmem:[#allocation8 + $0x8] sm:$0xf]
    %v2852 = vld [vmem:[#allocation8 + $0xc] sm:$0xf]
    %v2853 = vld [vmem:[#allocation8 + $0x10] sm:$0xf]
    %v2854 = vld [vmem:[#allocation8 + $0x14] sm:$0xf]
    %v2855 = vld [vmem:[#allocation8 + $0x18] sm:$0xf]
    %v2856 = vld [vmem:[#allocation8 + $0x1c] sm:$0xf]
    %v2857 = vld [vmem:[#allocation8 + $0x20] sm:$0xf]
    %v2858 = vld [vmem:[#allocation8 + $0x24] sm:$0xf]
    %v2859 = vld [vmem:[#allocation8 + $0x28] sm:$0xf]
    %v2860 = vld [vmem:[#allocation8 + $0x2c] sm:$0xf]
    %v2861 = vld [vmem:[#allocation8 + $0x30] sm:$0xf]
    %v2862 = vld [vmem:[#allocation8 + $0x34] sm:$0xf]
    %v2863 = vld [vmem:[#allocation8 + $0x38] sm:$0xf]
    %v2864 = vld [vmem:[#allocation8 + $0x3c] sm:$0xf]
    %v2865 = vld [vmem:[#allocation8 + $0x40] sm:$0xf]
    %v2866 = vld [vmem:[#allocation8 + $0x44] sm:$0xf]
    %v2867 = vld [vmem:[#allocation8 + $0x48] sm:$0xf]
    %v2868 = vld [vmem:[#allocation8 + $0x4c] sm:$0xf]
    %v2869 = vld [vmem:[#allocation8 + $0x50] sm:$0xf]
    %v2870 = vld [vmem:[#allocation8 + $0x54] sm:$0xf]
    %v2871 = vld [vmem:[#allocation8 + $0x58] sm:$0xf]
    %v2872 = vld [vmem:[#allocation8 + $0x5c] sm:$0xf]
    %v2873 = vld [vmem:[#allocation8 + $0x60] sm:$0xf]
    %v2874 = vld [vmem:[#allocation8 + $0x64] sm:$0xf]
    %v2875 = vld [vmem:[#allocation8 + $0x68] sm:$0xf]
    %v2876 = vld [vmem:[#allocation8 + $0x6c] sm:$0xf]
    %v2877 = vld [vmem:[#allocation8 + $0x70] sm:$0xf]
    %v2878 = vld [vmem:[#allocation8 + $0x74] sm:$0xf]
    %v2879 = vld [vmem:[#allocation8 + $0x78] sm:$0xf]
    %v2880 = vld [vmem:[#allocation8 + $0x7c] sm:$0xf]
    %v2881 = vld [vmem:[%s4] sm:$0x1]
    %v2883 = vperm.slane %v2881, 0
    %v2917 = vunpack.c.l.b16 %v2849
    %v2918 = vunpack.c.l.b16 %v2850
    %v2919 = vunpack.c.l.b16 %v2851
    %v2920 = vunpack.c.l.b16 %v2852
    %v2921 = vunpack.c.l.b16 %v2853
    %v2922 = vunpack.c.l.b16 %v2854
    %v2923 = vunpack.c.l.b16 %v2855
    %v2924 = vunpack.c.l.b16 %v2856
    %v2925 = vunpack.c.l.b16 %v2857
    %v2926 = vunpack.c.l.b16 %v2858
    %v2927 = vunpack.c.l.b16 %v2859
    %v2928 = vunpack.c.l.b16 %v2860
    %v2929 = vunpack.c.l.b16 %v2861
    %v2930 = vunpack.c.l.b16 %v2862
    %v2931 = vunpack.c.l.b16 %v2863
    %v2932 = vunpack.c.l.b16 %v2864
    %v2933 = vunpack.c.l.b16 %v2865
    %v2934 = vunpack.c.l.b16 %v2866
    %v2935 = vunpack.c.l.b16 %v2867
    %v2936 = vunpack.c.l.b16 %v2868
    %v2937 = vunpack.c.l.b16 %v2869
    %v2938 = vunpack.c.l.b16 %v2870
    %v2939 = vunpack.c.l.b16 %v2871
    %v2940 = vunpack.c.l.b16 %v2872
    %v2941 = vunpack.c.l.b16 %v2873
    %v2942 = vunpack.c.l.b16 %v2874
    %v2943 = vunpack.c.l.b16 %v2875
    %v2944 = vunpack.c.l.b16 %v2876
    %v2945 = vunpack.c.l.b16 %v2877
    %v2946 = vunpack.c.l.b16 %v2878
    %v2947 = vunpack.c.l.b16 %v2879
    %v2948 = vunpack.c.l.b16 %v2880
    %v2949 = vpack.c.b16 %v2918, %v2917
    %v2950 = vpack.c.b16 %v2920, %v2919
    %v2951 = vpack.c.b16 %v2922, %v2921
    %v2952 = vpack.c.b16 %v2924, %v2923
    %v2953 = vpack.c.b16 %v2926, %v2925
    %v2954 = vpack.c.b16 %v2928, %v2927
    %v2955 = vpack.c.b16 %v2930, %v2929
    %v2956 = vpack.c.b16 %v2932, %v2931
    %v2957 = vpack.c.b16 %v2934, %v2933
    %v2958 = vpack.c.b16 %v2936, %v2935
    %v2959 = vpack.c.b16 %v2938, %v2937
    %v2960 = vpack.c.b16 %v2940, %v2939
    %v2961 = vpack.c.b16 %v2942, %v2941
    %v2962 = vpack.c.b16 %v2944, %v2943
    %v2963 = vpack.c.b16 %v2946, %v2945
    %v2964 = vpack.c.b16 %v2948, %v2947
    %2981 = vmatpush.bf16.msra.mxu0 %v2956
    %2982 = vmatpush.bf16.msra.mxu0 %v2955
    %2983 = vmatpush.bf16.msra.mxu0 %v2954
    %2984 = vmatpush.bf16.msra.mxu0 %v2953
    %2985 = vmatpush.bf16.msra.mxu0 %v2952
    %2986 = vmatpush.bf16.msra.mxu0 %v2951
    %2987 = vmatpush.bf16.msra.mxu0 %v2950
    %2988 = vmatpush.bf16.msra.mxu0 %v2949
    %2989 = vmatmul.bf16.gmra.mxu0 %v2817
    %v2990 = vpop.f32.mrf.mxu0
    %v2991 = vadd.f32 %v2883, %v2990
    %v2992 = vpop.f32.mrf.mxu0
    %v2993 = vadd.f32 %v2883, %v2992
    %2994 = vmatmul.bf16.gmra.mxu0 %v2819
    %v2995 = vpop.f32.mrf.mxu0
    %v2996 = vadd.f32 %v2883, %v2995
    %v2997 = vpop.f32.mrf.mxu0
    %v2998 = vadd.f32 %v2883, %v2997
    %2999 = vmatmul.bf16.gmra.mxu0 %v2821
    %v3000 = vpop.f32.mrf.mxu0
    %v3001 = vadd.f32 %v2883, %v3000
    %v3002 = vpop.f32.mrf.mxu0
    %v3003 = vadd.f32 %v2883, %v3002
    %3004 = vmatmul.bf16.gmra.mxu0 %v2823
    %v3005 = vpop.f32.mrf.mxu0
    %v3006 = vadd.f32 %v2883, %v3005
    %v3007 = vpop.f32.mrf.mxu0
    %v3008 = vadd.f32 %v2883, %v3007
    %3009 = vmatmul.bf16.gmra.mxu0 %v2825
    %v3010 = vpop.f32.mrf.mxu0
    %v3011 = vadd.f32 %v2883, %v3010
    %v3012 = vpop.f32.mrf.mxu0
    %v3013 = vadd.f32 %v2883, %v3012
    %3014 = vmatmul.bf16.gmra.mxu0 %v2827
    %v3015 = vpop.f32.mrf.mxu0
    %v3016 = vadd.f32 %v2883, %v3015
    %v3017 = vpop.f32.mrf.mxu0
    %v3018 = vadd.f32 %v2883, %v3017
    %3019 = vmatmul.bf16.gmra.mxu0 %v2829
    %v3020 = vpop.f32.mrf.mxu0
    %v3021 = vadd.f32 %v2883, %v3020
    %v3022 = vpop.f32.mrf.mxu0
    %v3023 = vadd.f32 %v2883, %v3022
    %3024 = vmatmul.bf16.gmra.mxu0 %v2831
    %v3025 = vpop.f32.mrf.mxu0
    %v3026 = vadd.f32 %v2883, %v3025
    %v3027 = vpop.f32.mrf.mxu0
    %v3028 = vadd.f32 %v2883, %v3027
    %3029 = vmatmul.bf16.gmra.mxu0 %v2833
    %v3030 = vpop.f32.mrf.mxu0
    %v3031 = vadd.f32 %v2883, %v3030
    %v3032 = vpop.f32.mrf.mxu0
    %v3033 = vadd.f32 %v2883, %v3032
    %3034 = vmatmul.bf16.gmra.mxu0 %v2835
    %v3035 = vpop.f32.mrf.mxu0
    %v3036 = vadd.f32 %v2883, %v3035
    %v3037 = vpop.f32.mrf.mxu0
    %v3038 = vadd.f32 %v2883, %v3037
    %3039 = vmatmul.bf16.gmra.mxu0 %v2837
    %v3040 = vpop.f32.mrf.mxu0
    %v3041 = vadd.f32 %v2883, %v3040
    %v3042 = vpop.f32.mrf.mxu0
    %v3043 = vadd.f32 %v2883, %v3042
    %3044 = vmatmul.bf16.gmra.mxu0 %v2839
    %v3045 = vpop.f32.mrf.mxu0
    %v3046 = vadd.f32 %v2883, %v3045
    %v3047 = vpop.f32.mrf.mxu0
    %v3048 = vadd.f32 %v2883, %v3047
    %3049 = vmatmul.bf16.gmra.mxu0 %v2841
    %v3050 = vpop.f32.mrf.mxu0
    %v3051 = vadd.f32 %v2883, %v3050
    %v3052 = vpop.f32.mrf.mxu0
    %v3053 = vadd.f32 %v2883, %v3052
    %3054 = vmatmul.bf16.gmra.mxu0 %v2843
    %v3055 = vpop.f32.mrf.mxu0
    %v3056 = vadd.f32 %v2883, %v3055
    %v3057 = vpop.f32.mrf.mxu0
    %v3058 = vadd.f32 %v2883, %v3057
    %3059 = vmatmul.bf16.gmra.mxu0 %v2845
    %v3060 = vpop.f32.mrf.mxu0
    %v3061 = vadd.f32 %v2883, %v3060
    %v3062 = vpop.f32.mrf.mxu0
    %v3063 = vadd.f32 %v2883, %v3062
    %3064 = vmatmul.bf16.gmra.mxu0 %v2847
    %v3065 = vpop.f32.mrf.mxu0
    %v3066 = vadd.f32 %v2883, %v3065
    %v3067 = vpop.f32.mrf.mxu0
    %v3068 = vadd.f32 %v2883, %v3067
    %3069 = vdwg.mxu0
    %3070 = vmatpush.bf16.msra.mxu0 %v2964
    %3071 = vmatpush.bf16.msra.mxu0 %v2963
    %3072 = vmatpush.bf16.msra.mxu0 %v2962
    %3073 = vmatpush.bf16.msra.mxu0 %v2961
    %3074 = vmatpush.bf16.msra.mxu0 %v2960
    %3075 = vmatpush.bf16.msra.mxu0 %v2959
    %3076 = vmatpush.bf16.msra.mxu0 %v2958
    %3077 = vmatpush.bf16.msra.mxu0 %v2957
    %3078 = vmatmul.bf16.gmra.mxu0 %v2818
    %v3079 = vpop.f32.mrf.mxu0
    %v3080 = vadd.f32 %v2991, %v3079
    %v3081 = vpop.f32.mrf.mxu0
    %v3082 = vadd.f32 %v2993, %v3081
    %3083 = vmatmul.bf16.gmra.mxu0 %v2820
    %v3084 = vpop.f32.mrf.mxu0
    %v3085 = vadd.f32 %v2996, %v3084
    %v3086 = vpop.f32.mrf.mxu0
    %v3087 = vadd.f32 %v2998, %v3086
    %3088 = vmatmul.bf16.gmra.mxu0 %v2822
    %v3089 = vpop.f32.mrf.mxu0
    %v3090 = vadd.f32 %v3001, %v3089
    %v3091 = vpop.f32.mrf.mxu0
    %v3092 = vadd.f32 %v3003, %v3091
    %3093 = vmatmul.bf16.gmra.mxu0 %v2824
    %v3094 = vpop.f32.mrf.mxu0
    %v3095 = vadd.f32 %v3006, %v3094
    %v3096 = vpop.f32.mrf.mxu0
    %v3097 = vadd.f32 %v3008, %v3096
    %3098 = vmatmul.bf16.gmra.mxu0 %v2826
    %v3099 = vpop.f32.mrf.mxu0
    %v3100 = vadd.f32 %v3011, %v3099
    %v3101 = vpop.f32.mrf.mxu0
    %v3102 = vadd.f32 %v3013, %v3101
    %3103 = vmatmul.bf16.gmra.mxu0 %v2828
    %v3104 = vpop.f32.mrf.mxu0
    %v3105 = vadd.f32 %v3016, %v3104
    %v3106 = vpop.f32.mrf.mxu0
    %v3107 = vadd.f32 %v3018, %v3106
    %3108 = vmatmul.bf16.gmra.mxu0 %v2830
    %v3109 = vpop.f32.mrf.mxu0
    %v3110 = vadd.f32 %v3021, %v3109
    %v3111 = vpop.f32.mrf.mxu0
    %v3112 = vadd.f32 %v3023, %v3111
    %3113 = vmatmul.bf16.gmra.mxu0 %v2832
    %v3114 = vpop.f32.mrf.mxu0
    %v3115 = vadd.f32 %v3026, %v3114
    %v3116 = vpop.f32.mrf.mxu0
    %v3117 = vadd.f32 %v3028, %v3116
    %3118 = vmatmul.bf16.gmra.mxu0 %v2834
    %v3119 = vpop.f32.mrf.mxu0
    %v3120 = vadd.f32 %v3031, %v3119
    %v3121 = vpop.f32.mrf.mxu0
    %v3122 = vadd.f32 %v3033, %v3121
    %3123 = vmatmul.bf16.gmra.mxu0 %v2836
    %v3124 = vpop.f32.mrf.mxu0
    %v3125 = vadd.f32 %v3036, %v3124
    %v3126 = vpop.f32.mrf.mxu0
    %v3127 = vadd.f32 %v3038, %v3126
    %3128 = vmatmul.bf16.gmra.mxu0 %v2838
    %v3129 = vpop.f32.mrf.mxu0
    %v3130 = vadd.f32 %v3041, %v3129
    %v3131 = vpop.f32.mrf.mxu0
    %v3132 = vadd.f32 %v3043, %v3131
    %3133 = vmatmul.bf16.gmra.mxu0 %v2840
    %v3134 = vpop.f32.mrf.mxu0
    %v3135 = vadd.f32 %v3046, %v3134
    %v3136 = vpop.f32.mrf.mxu0
    %v3137 = vadd.f32 %v3048, %v3136
    %3138 = vmatmul.bf16.gmra.mxu0 %v2842
    %v3139 = vpop.f32.mrf.mxu0
    %v3140 = vadd.f32 %v3051, %v3139
    %v3141 = vpop.f32.mrf.mxu0
    %v3142 = vadd.f32 %v3053, %v3141
    %3143 = vmatmul.bf16.gmra.mxu0 %v2844
    %v3144 = vpop.f32.mrf.mxu0
    %v3145 = vadd.f32 %v3056, %v3144
    %v3146 = vpop.f32.mrf.mxu0
    %v3147 = vadd.f32 %v3058, %v3146
    %3148 = vmatmul.bf16.gmra.mxu0 %v2846
    %v3149 = vpop.f32.mrf.mxu0
    %v3150 = vadd.f32 %v3061, %v3149
    %v3151 = vpop.f32.mrf.mxu0
    %v3152 = vadd.f32 %v3063, %v3151
    %3153 = vmatmul.bf16.gmra.mxu0 %v2848
    %v3154 = vpop.f32.mrf.mxu0
    %v3155 = vadd.f32 %v3066, %v3154
    %v3156 = vpop.f32.mrf.mxu0
    %v3157 = vadd.f32 %v3068, %v3156
    %3158 = vdwg.mxu0
    %v3159 = vmax.f32 %v3080, 0.0
    %v3160 = vmax.f32 %v3082, 0.0
    %v3161 = vmax.f32 %v3085, 0.0
    %v3162 = vmax.f32 %v3087, 0.0
    %v3163 = vmax.f32 %v3090, 0.0
    %v3164 = vmax.f32 %v3092, 0.0
    %v3165 = vmax.f32 %v3095, 0.0
    %v3166 = vmax.f32 %v3097, 0.0
    %v3167 = vmax.f32 %v3100, 0.0
    %v3168 = vmax.f32 %v3102, 0.0
    %v3169 = vmax.f32 %v3105, 0.0
    %v3170 = vmax.f32 %v3107, 0.0
    %v3171 = vmax.f32 %v3110, 0.0
    %v3172 = vmax.f32 %v3112, 0.0
    %v3173 = vmax.f32 %v3115, 0.0
    %v3174 = vmax.f32 %v3117, 0.0
    %v3175 = vmax.f32 %v3120, 0.0
    %v3176 = vmax.f32 %v3122, 0.0
    %v3177 = vmax.f32 %v3125, 0.0
    %v3178 = vmax.f32 %v3127, 0.0
    %v3179 = vmax.f32 %v3130, 0.0
    %v3180 = vmax.f32 %v3132, 0.0
    %v3181 = vmax.f32 %v3135, 0.0
    %v3182 = vmax.f32 %v3137, 0.0
    %v3183 = vmax.f32 %v3140, 0.0
    %v3184 = vmax.f32 %v3142, 0.0
    %v3185 = vmax.f32 %v3145, 0.0
    %v3186 = vmax.f32 %v3147, 0.0
    %v3187 = vmax.f32 %v3150, 0.0
    %v3188 = vmax.f32 %v3152, 0.0
    %v3189 = vmax.f32 %v3155, 0.0
    %v3190 = vmax.f32 %v3157, 0.0
    %v3191 = vpack.c.bf16 %v3160, %v3159
    %v3192 = vpack.c.bf16 %v3162, %v3161
    %v3193 = vpack.c.bf16 %v3164, %v3163
    %v3194 = vpack.c.bf16 %v3166, %v3165
    %v3195 = vpack.c.bf16 %v3168, %v3167
    %v3196 = vpack.c.bf16 %v3170, %v3169
    %v3197 = vpack.c.bf16 %v3172, %v3171
    %v3198 = vpack.c.bf16 %v3174, %v3173
    %v3199 = vpack.c.bf16 %v3176, %v3175
    %v3200 = vpack.c.bf16 %v3178, %v3177
    %v3201 = vpack.c.bf16 %v3180, %v3179
    %v3202 = vpack.c.bf16 %v3182, %v3181
    %v3203 = vpack.c.bf16 %v3184, %v3183
    %v3204 = vpack.c.bf16 %v3186, %v3185
    %v3205 = vpack.c.bf16 %v3188, %v3187
    %v3206 = vpack.c.bf16 %v3190, %v3189
    %v3207 = vld [vmem:[#allocation10] sm:$0xf]
    %v3208 = vld [vmem:[#allocation10 + $0x4] sm:$0xf]
    %v3209 = vld [vmem:[#allocation10 + $0x8] sm:$0xf]
    %v3210 = vld [vmem:[#allocation10 + $0xc] sm:$0xf]
    %v3211 = vld [vmem:[#allocation10 + $0x10] sm:$0xf]
    %v3212 = vld [vmem:[#allocation10 + $0x14] sm:$0xf]
    %v3213 = vld [vmem:[#allocation10 + $0x18] sm:$0xf]
    %v3214 = vld [vmem:[#allocation10 + $0x1c] sm:$0xf]
    %v3215 = vld [vmem:[#allocation10 + $0x20] sm:$0xf]
    %v3216 = vld [vmem:[#allocation10 + $0x24] sm:$0xf]
    %v3217 = vld [vmem:[#allocation10 + $0x28] sm:$0xf]
    %v3218 = vld [vmem:[#allocation10 + $0x2c] sm:$0xf]
    %v3219 = vld [vmem:[#allocation10 + $0x30] sm:$0xf]
    %v3220 = vld [vmem:[#allocation10 + $0x34] sm:$0xf]
    %v3221 = vld [vmem:[#allocation10 + $0x38] sm:$0xf]
    %v3222 = vld [vmem:[#allocation10 + $0x3c] sm:$0xf]
    %v3223 = vld [vmem:[%s6] sm:$0x1]
    %v3225 = vperm.slane %v3223, 0
    %v3243 = vunpack.c.l.b16 %v3207
    %v3244 = vunpack.c.l.b16 %v3208
    %v3245 = vunpack.c.l.b16 %v3209
    %v3246 = vunpack.c.l.b16 %v3210
    %v3247 = vunpack.c.l.b16 %v3211
    %v3248 = vunpack.c.l.b16 %v3212
    %v3249 = vunpack.c.l.b16 %v3213
    %v3250 = vunpack.c.l.b16 %v3214
    %v3251 = vunpack.c.l.b16 %v3215
    %v3252 = vunpack.c.l.b16 %v3216
    %v3253 = vunpack.c.l.b16 %v3217
    %v3254 = vunpack.c.l.b16 %v3218
    %v3255 = vunpack.c.l.b16 %v3219
    %v3256 = vunpack.c.l.b16 %v3220
    %v3257 = vunpack.c.l.b16 %v3221
    %v3258 = vunpack.c.l.b16 %v3222
    %v3259 = vpack.c.b16 %v3244, %v3243
    %v3260 = vpack.c.b16 %v3246, %v3245
    %v3261 = vpack.c.b16 %v3248, %v3247
    %v3262 = vpack.c.b16 %v3250, %v3249
    %v3263 = vpack.c.b16 %v3252, %v3251
    %v3264 = vpack.c.b16 %v3254, %v3253
    %v3265 = vpack.c.b16 %v3256, %v3255
    %v3266 = vpack.c.b16 %v3258, %v3257
    %3275 = vmatpush.bf16.msra.mxu0 %v3266
    %3276 = vmatpush.bf16.msra.mxu0 %v3265
    %3277 = vmatpush.bf16.msra.mxu0 %v3264
    %3278 = vmatpush.bf16.msra.mxu0 %v3263
    %3279 = vmatpush.bf16.msra.mxu0 %v3262
    %3280 = vmatpush.bf16.msra.mxu0 %v3261
    %3281 = vmatpush.bf16.msra.mxu0 %v3260
    %3282 = vmatpush.bf16.msra.mxu0 %v3259
    %3283 = vmatmul.bf16.gmra.mxu0 %v3191
    %v3284 = vpop.f32.mrf.mxu0
    %v3285 = vadd.f32 %v3225, %v3284
    %v3286 = vpop.f32.mrf.mxu0
    %v3287 = vadd.f32 %v3225, %v3286
    %3288 = vmatmul.bf16.gmra.mxu0 %v3192
    %v3289 = vpop.f32.mrf.mxu0
    %v3290 = vadd.f32 %v3225, %v3289
    %v3291 = vpop.f32.mrf.mxu0
    %v3292 = vadd.f32 %v3225, %v3291
    %3293 = vmatmul.bf16.gmra.mxu0 %v3193
    %v3294 = vpop.f32.mrf.mxu0
    %v3295 = vadd.f32 %v3225, %v3294
    %v3296 = vpop.f32.mrf.mxu0
    %v3297 = vadd.f32 %v3225, %v3296
    %3298 = vmatmul.bf16.gmra.mxu0 %v3194
    %v3299 = vpop.f32.mrf.mxu0
    %v3300 = vadd.f32 %v3225, %v3299
    %v3301 = vpop.f32.mrf.mxu0
    %v3302 = vadd.f32 %v3225, %v3301
    %3303 = vmatmul.bf16.gmra.mxu0 %v3195
    %v3304 = vpop.f32.mrf.mxu0
    %v3305 = vadd.f32 %v3225, %v3304
    %v3306 = vpop.f32.mrf.mxu0
    %v3307 = vadd.f32 %v3225, %v3306
    %3308 = vmatmul.bf16.gmra.mxu0 %v3196
    %v3309 = vpop.f32.mrf.mxu0
    %v3310 = vadd.f32 %v3225, %v3309
    %v3311 = vpop.f32.mrf.mxu0
    %v3312 = vadd.f32 %v3225, %v3311
    %3313 = vmatmul.bf16.gmra.mxu0 %v3197
    %v3314 = vpop.f32.mrf.mxu0
    %v3315 = vadd.f32 %v3225, %v3314
    %v3316 = vpop.f32.mrf.mxu0
    %v3317 = vadd.f32 %v3225, %v3316
    %3318 = vmatmul.bf16.gmra.mxu0 %v3198
    %v3319 = vpop.f32.mrf.mxu0
    %v3320 = vadd.f32 %v3225, %v3319
    %v3321 = vpop.f32.mrf.mxu0
    %v3322 = vadd.f32 %v3225, %v3321
    %3323 = vmatmul.bf16.gmra.mxu0 %v3199
    %v3324 = vpop.f32.mrf.mxu0
    %v3325 = vadd.f32 %v3225, %v3324
    %v3326 = vpop.f32.mrf.mxu0
    %v3327 = vadd.f32 %v3225, %v3326
    %3328 = vmatmul.bf16.gmra.mxu0 %v3200
    %v3329 = vpop.f32.mrf.mxu0
    %v3330 = vadd.f32 %v3225, %v3329
    %v3331 = vpop.f32.mrf.mxu0
    %v3332 = vadd.f32 %v3225, %v3331
    %3333 = vmatmul.bf16.gmra.mxu0 %v3201
    %v3334 = vpop.f32.mrf.mxu0
    %v3335 = vadd.f32 %v3225, %v3334
    %v3336 = vpop.f32.mrf.mxu0
    %v3337 = vadd.f32 %v3225, %v3336
    %3338 = vmatmul.bf16.gmra.mxu0 %v3202
    %v3339 = vpop.f32.mrf.mxu0
    %v3340 = vadd.f32 %v3225, %v3339
    %v3341 = vpop.f32.mrf.mxu0
    %v3342 = vadd.f32 %v3225, %v3341
    %3343 = vmatmul.bf16.gmra.mxu0 %v3203
    %v3344 = vpop.f32.mrf.mxu0
    %v3345 = vadd.f32 %v3225, %v3344
    %v3346 = vpop.f32.mrf.mxu0
    %v3347 = vadd.f32 %v3225, %v3346
    %3348 = vmatmul.bf16.gmra.mxu0 %v3204
    %v3349 = vpop.f32.mrf.mxu0
    %v3350 = vadd.f32 %v3225, %v3349
    %v3351 = vpop.f32.mrf.mxu0
    %v3352 = vadd.f32 %v3225, %v3351
    %3353 = vmatmul.bf16.gmra.mxu0 %v3205
    %v3354 = vpop.f32.mrf.mxu0
    %v3355 = vadd.f32 %v3225, %v3354
    %v3356 = vpop.f32.mrf.mxu0
    %v3357 = vadd.f32 %v3225, %v3356
    %3358 = vmatmul.bf16.gmra.mxu0 %v3206
    %v3359 = vpop.f32.mrf.mxu0
    %v3360 = vadd.f32 %v3225, %v3359
    %v3361 = vpop.f32.mrf.mxu0
    %v3362 = vadd.f32 %v3225, %v3361
    %3363 = vdwg.mxu0
    %v3364 = vmax.f32 %v3285, 0.0
    %v3365 = vmax.f32 %v3287, 0.0
    %v3366 = vmax.f32 %v3290, 0.0
    %v3367 = vmax.f32 %v3292, 0.0
    %v3368 = vmax.f32 %v3295, 0.0
    %v3369 = vmax.f32 %v3297, 0.0
    %v3370 = vmax.f32 %v3300, 0.0
    %v3371 = vmax.f32 %v3302, 0.0
    %v3372 = vmax.f32 %v3305, 0.0
    %v3373 = vmax.f32 %v3307, 0.0
    %v3374 = vmax.f32 %v3310, 0.0
    %v3375 = vmax.f32 %v3312, 0.0
    %v3376 = vmax.f32 %v3315, 0.0
    %v3377 = vmax.f32 %v3317, 0.0
    %v3378 = vmax.f32 %v3320, 0.0
    %v3379 = vmax.f32 %v3322, 0.0
    %v3380 = vmax.f32 %v3325, 0.0
    %v3381 = vmax.f32 %v3327, 0.0
    %v3382 = vmax.f32 %v3330, 0.0
    %v3383 = vmax.f32 %v3332, 0.0
    %v3384 = vmax.f32 %v3335, 0.0
    %v3385 = vmax.f32 %v3337, 0.0
    %v3386 = vmax.f32 %v3340, 0.0
    %v3387 = vmax.f32 %v3342, 0.0
    %v3388 = vmax.f32 %v3345, 0.0
    %v3389 = vmax.f32 %v3347, 0.0
    %v3390 = vmax.f32 %v3350, 0.0
    %v3391 = vmax.f32 %v3352, 0.0
    %v3392 = vmax.f32 %v3355, 0.0
    %v3393 = vmax.f32 %v3357, 0.0
    %v3394 = vmax.f32 %v3360, 0.0
    %v3395 = vmax.f32 %v3362, 0.0
    %v3396 = vpack.c.bf16 %v3365, %v3364
    %v3397 = vpack.c.bf16 %v3367, %v3366
    %v3398 = vpack.c.bf16 %v3369, %v3368
    %v3399 = vpack.c.bf16 %v3371, %v3370
    %v3400 = vpack.c.bf16 %v3373, %v3372
    %v3401 = vpack.c.bf16 %v3375, %v3374
    %v3402 = vpack.c.bf16 %v3377, %v3376
    %v3403 = vpack.c.bf16 %v3379, %v3378
    %v3404 = vpack.c.bf16 %v3381, %v3380
    %v3405 = vpack.c.bf16 %v3383, %v3382
    %v3406 = vpack.c.bf16 %v3385, %v3384
    %v3407 = vpack.c.bf16 %v3387, %v3386
    %v3408 = vpack.c.bf16 %v3389, %v3388
    %v3409 = vpack.c.bf16 %v3391, %v3390
    %v3410 = vpack.c.bf16 %v3393, %v3392
    %v3411 = vpack.c.bf16 %v3395, %v3394
    %v3412 = vld [vmem:[#allocation11] sm:$0xf]
    %v3413 = vld [vmem:[#allocation11 + $0x4] sm:$0xf]
    %v3414 = vld [vmem:[#allocation11 + $0x8] sm:$0xf]
    %v3415 = vld [vmem:[#allocation11 + $0xc] sm:$0xf]
    %v3416 = vld [vmem:[#allocation11 + $0x10] sm:$0xf]
    %v3417 = vld [vmem:[#allocation11 + $0x14] sm:$0xf]
    %v3418 = vld [vmem:[#allocation11 + $0x18] sm:$0xf]
    %v3419 = vld [vmem:[#allocation11 + $0x1c] sm:$0xf]
    %v3420 = vld [vmem:[#allocation11 + $0x20] sm:$0xf]
    %v3421 = vld [vmem:[#allocation11 + $0x24] sm:$0xf]
    %v3422 = vld [vmem:[#allocation11 + $0x28] sm:$0xf]
    %v3423 = vld [vmem:[#allocation11 + $0x2c] sm:$0xf]
    %v3424 = vld [vmem:[#allocation11 + $0x30] sm:$0xf]
    %v3425 = vld [vmem:[#allocation11 + $0x34] sm:$0xf]
    %v3426 = vld [vmem:[#allocation11 + $0x38] sm:$0xf]
    %v3427 = vld [vmem:[#allocation11 + $0x3c] sm:$0xf]
    %v3428 = vld [vmem:[%s8] sm:$0x1]
    %v3430 = vperm.slane %v3428, 0
    %v3448 = vunpack.c.l.b16 %v3412
    %v3449 = vunpack.c.l.b16 %v3413
    %v3450 = vunpack.c.l.b16 %v3414
    %v3451 = vunpack.c.l.b16 %v3415
    %v3452 = vunpack.c.l.b16 %v3416
    %v3453 = vunpack.c.l.b16 %v3417
    %v3454 = vunpack.c.l.b16 %v3418
    %v3455 = vunpack.c.l.b16 %v3419
    %v3456 = vunpack.c.l.b16 %v3420
    %v3457 = vunpack.c.l.b16 %v3421
    %v3458 = vunpack.c.l.b16 %v3422
    %v3459 = vunpack.c.l.b16 %v3423
    %v3460 = vunpack.c.l.b16 %v3424
    %v3461 = vunpack.c.l.b16 %v3425
    %v3462 = vunpack.c.l.b16 %v3426
    %v3463 = vunpack.c.l.b16 %v3427
    %v3464 = vpack.c.b16 %v3449, %v3448
    %v3465 = vpack.c.b16 %v3451, %v3450
    %v3466 = vpack.c.b16 %v3453, %v3452
    %v3467 = vpack.c.b16 %v3455, %v3454
    %v3468 = vpack.c.b16 %v3457, %v3456
    %v3469 = vpack.c.b16 %v3459, %v3458
    %v3470 = vpack.c.b16 %v3461, %v3460
    %v3471 = vpack.c.b16 %v3463, %v3462
    %3480 = vmatpush.bf16.msra.mxu0 %v3471
    %3481 = vmatpush.bf16.msra.mxu0 %v3470
    %3482 = vmatpush.bf16.msra.mxu0 %v3469
    %3483 = vmatpush.bf16.msra.mxu0 %v3468
    %3484 = vmatpush.bf16.msra.mxu0 %v3467
    %3485 = vmatpush.bf16.msra.mxu0 %v3466
    %3486 = vmatpush.bf16.msra.mxu0 %v3465
    %3487 = vmatpush.bf16.msra.mxu0 %v3464
    %3488 = vmatmul.bf16.gmra.mxu0 %v3396
    %v3489 = vpop.f32.mrf.mxu0
    %v3490 = vadd.f32 %v3430, %v3489
    %v3491 = vpop.f32.mrf.mxu0
    %v3492 = vadd.f32 %v3430, %v3491
    %3493 = vmatmul.bf16.gmra.mxu0 %v3397
    %v3494 = vpop.f32.mrf.mxu0
    %v3495 = vadd.f32 %v3430, %v3494
    %v3496 = vpop.f32.mrf.mxu0
    %v3497 = vadd.f32 %v3430, %v3496
    %3498 = vmatmul.bf16.gmra.mxu0 %v3398
    %v3499 = vpop.f32.mrf.mxu0
    %v3500 = vadd.f32 %v3430, %v3499
    %v3501 = vpop.f32.mrf.mxu0
    %v3502 = vadd.f32 %v3430, %v3501
    %3503 = vmatmul.bf16.gmra.mxu0 %v3399
    %v3504 = vpop.f32.mrf.mxu0
    %v3505 = vadd.f32 %v3430, %v3504
    %v3506 = vpop.f32.mrf.mxu0
    %v3507 = vadd.f32 %v3430, %v3506
    %3508 = vmatmul.bf16.gmra.mxu0 %v3400
    %v3509 = vpop.f32.mrf.mxu0
    %v3510 = vadd.f32 %v3430, %v3509
    %v3511 = vpop.f32.mrf.mxu0
    %v3512 = vadd.f32 %v3430, %v3511
    %3513 = vmatmul.bf16.gmra.mxu0 %v3401
    %v3514 = vpop.f32.mrf.mxu0
    %v3515 = vadd.f32 %v3430, %v3514
    %v3516 = vpop.f32.mrf.mxu0
    %v3517 = vadd.f32 %v3430, %v3516
    %3518 = vmatmul.bf16.gmra.mxu0 %v3402
    %v3519 = vpop.f32.mrf.mxu0
    %v3520 = vadd.f32 %v3430, %v3519
    %v3521 = vpop.f32.mrf.mxu0
    %v3522 = vadd.f32 %v3430, %v3521
    %3523 = vmatmul.bf16.gmra.mxu0 %v3403
    %v3524 = vpop.f32.mrf.mxu0
    %v3525 = vadd.f32 %v3430, %v3524
    %v3526 = vpop.f32.mrf.mxu0
    %v3527 = vadd.f32 %v3430, %v3526
    %3528 = vmatmul.bf16.gmra.mxu0 %v3404
    %v3529 = vpop.f32.mrf.mxu0
    %v3530 = vadd.f32 %v3430, %v3529
    %v3531 = vpop.f32.mrf.mxu0
    %v3532 = vadd.f32 %v3430, %v3531
    %3533 = vmatmul.bf16.gmra.mxu0 %v3405
    %v3534 = vpop.f32.mrf.mxu0
    %v3535 = vadd.f32 %v3430, %v3534
    %v3536 = vpop.f32.mrf.mxu0
    %v3537 = vadd.f32 %v3430, %v3536
    %3538 = vmatmul.bf16.gmra.mxu0 %v3406
    %v3539 = vpop.f32.mrf.mxu0
    %v3540 = vadd.f32 %v3430, %v3539
    %v3541 = vpop.f32.mrf.mxu0
    %v3542 = vadd.f32 %v3430, %v3541
    %3543 = vmatmul.bf16.gmra.mxu0 %v3407
    %v3544 = vpop.f32.mrf.mxu0
    %v3545 = vadd.f32 %v3430, %v3544
    %v3546 = vpop.f32.mrf.mxu0
    %v3547 = vadd.f32 %v3430, %v3546
    %3548 = vmatmul.bf16.gmra.mxu0 %v3408
    %v3549 = vpop.f32.mrf.mxu0
    %v3550 = vadd.f32 %v3430, %v3549
    %v3551 = vpop.f32.mrf.mxu0
    %v3552 = vadd.f32 %v3430, %v3551
    %3553 = vmatmul.bf16.gmra.mxu0 %v3409
    %v3554 = vpop.f32.mrf.mxu0
    %v3555 = vadd.f32 %v3430, %v3554
    %v3556 = vpop.f32.mrf.mxu0
    %v3557 = vadd.f32 %v3430, %v3556
    %3558 = vmatmul.bf16.gmra.mxu0 %v3410
    %v3559 = vpop.f32.mrf.mxu0
    %v3560 = vadd.f32 %v3430, %v3559
    %v3561 = vpop.f32.mrf.mxu0
    %v3562 = vadd.f32 %v3430, %v3561
    %3563 = vmatmul.bf16.gmra.mxu0 %v3411
    %v3564 = vpop.f32.mrf.mxu0
    %v3565 = vadd.f32 %v3430, %v3564
    %v3566 = vpop.f32.mrf.mxu0
    %v3567 = vadd.f32 %v3430, %v3566
    %3568 = vdwg.mxu0
    %3569 = vst [vmem:[#allocation13] sm:$0xff] %v3490
    %3570 = vst [vmem:[#allocation13 + $0x8] sm:$0xff] %v3492
    %3571 = vst [vmem:[#allocation13 + $0x10] sm:$0xff] %v3495
    %3572 = vst [vmem:[#allocation13 + $0x18] sm:$0xff] %v3497
    %3573 = vst [vmem:[#allocation13 + $0x20] sm:$0xff] %v3500
    %3574 = vst [vmem:[#allocation13 + $0x28] sm:$0xff] %v3502
    %3575 = vst [vmem:[#allocation13 + $0x30] sm:$0xff] %v3505
    %3576 = vst [vmem:[#allocation13 + $0x38] sm:$0xff] %v3507
    %3577 = vst [vmem:[#allocation13 + $0x40] sm:$0xff] %v3510
    %3578 = vst [vmem:[#allocation13 + $0x48] sm:$0xff] %v3512
    %3579 = vst [vmem:[#allocation13 + $0x50] sm:$0xff] %v3515
    %3580 = vst [vmem:[#allocation13 + $0x58] sm:$0xff] %v3517
    %3581 = vst [vmem:[#allocation13 + $0x60] sm:$0xff] %v3520
    %3582 = vst [vmem:[#allocation13 + $0x68] sm:$0xff] %v3522
    %3583 = vst [vmem:[#allocation13 + $0x70] sm:$0xff] %v3525
    %3584 = vst [vmem:[#allocation13 + $0x78] sm:$0xff] %v3527
    %3585 = vst [vmem:[#allocation13 + $0x80] sm:$0xff] %v3530
    %3586 = vst [vmem:[#allocation13 + $0x88] sm:$0xff] %v3532
    %3587 = vst [vmem:[#allocation13 + $0x90] sm:$0xff] %v3535
    %3588 = vst [vmem:[#allocation13 + $0x98] sm:$0xff] %v3537
    %3589 = vst [vmem:[#allocation13 + $0xa0] sm:$0xff] %v3540
    %3590 = vst [vmem:[#allocation13 + $0xa8] sm:$0xff] %v3542
    %3591 = vst [vmem:[#allocation13 + $0xb0] sm:$0xff] %v3545
    %3592 = vst [vmem:[#allocation13 + $0xb8] sm:$0xff] %v3547
    %3593 = vst [vmem:[#allocation13 + $0xc0] sm:$0xff] %v3550
    %3594 = vst [vmem:[#allocation13 + $0xc8] sm:$0xff] %v3552
    %3595 = vst [vmem:[#allocation13 + $0xd0] sm:$0xff] %v3555
    %3596 = vst [vmem:[#allocation13 + $0xd8] sm:$0xff] %v3557
    %3597 = vst [vmem:[#allocation13 + $0xe0] sm:$0xff] %v3560
    %3598 = vst [vmem:[#allocation13 + $0xe8] sm:$0xff] %v3562
    %3599 = vst [vmem:[#allocation13 + $0xf0] sm:$0xff] %v3565
    %3600 = vst [vmem:[#allocation13 + $0xf8] sm:$0xff] %v3567
    // Predicated region
    $region62: #{tpu_custom_call.1} parent=1 // pred_check
      _
    $region63: #{tpu_custom_call.1} parent=1 // pred_check_branch
      %3602 = sbr.rel (0) target = $region65
    $region64: #{tpu_custom_call.1} parent=1 // pred_region
      %3604 = vsyncadd [#allocation4], 0
      %s3605 = sshll.u32 [#allocation13], 4
      %s3606 = int_to_ptr.vmem [resolvable:$true] %s3605
      %s3607 = sshll.u32 %s9, 4
      %s3608 = int_to_ptr.hbm [resolvable:$true] %s3607
      %3613 = dma.vmem_to_hbm [thread:$0]  %s3606, 4096, %s3608, [#allocation4], 128, 128, 8
    $region65: #{tpu_custom_call.1} parent=1 // pred_fallthru
      _
    // Predicated region
    $region66: #{tpu_custom_call.1} parent=1 // pred_check
      _
    $region67: #{tpu_custom_call.1} parent=1 // pred_check_branch
      %3615 = sbr.rel (0) target = $region69
    $region68: #{tpu_custom_call.1} parent=1 // pred_region
      %3617 = dma.done [#allocation4], 4096
    $region69: #{tpu_custom_call.1} parent=1 // pred_fallthru
      _
    %3618 = vsyncpa [#allocation3], 1
    %3619 = vsyncpa [#allocation6], 1
    %3620 = vsyncpa [#allocation9], 1
    %3621 = vsyncpa [#allocation12], 1
    %3622 = vsyncpa [#allocation4], 1

</llo_original>
